<compile_context>
chip_gen: v7x
topology: tpu7x:2x2x1
jax: 0.10.0
libtpu: 0.0.40
codegen_flags: <defaults>
</compile_context>

<pallas_src>
import functools

import jax
import jax.numpy as jnp
import numpy as np
from jax.experimental import pallas as pl
from jax.experimental.pallas import tpu as pltpu

LN_EPS = 1e-5


def _layernorm(x, gamma, beta):
    mu = jnp.mean(x, axis=-1, keepdims=True)
    var = jnp.mean((x - mu) ** 2, axis=-1, keepdims=True)
    return (x - mu) * jax.lax.rsqrt(var + LN_EPS) * gamma + beta


def decoder_kernel(
    x_ref,                  # (S*B, H)   encoder input, time-major, batch padded to 8
    ln_g_ref, ln_b_ref,     # (1, H)
    wvo_ref, bvo_ref,       # (H, H), (1, H)   fused attention Wv@Wo / bias
    whh_ref,                # (L, H, 4H)       hidden-to-hidden, gate-scaled
    wxh_ref,                # (L, H, 4H)       input-to-hidden,  gate-scaled
    b_ref,                  # (L, 1, 4H)       (bhh + bxh),      gate-scaled
    fc_w_ref,               # (S*H, O_pad)     fc weight, lane-padded
    fc_b_ref,               # (1, O_pad)
    o_ref,                  # (B, O_pad)
    *,
    num_layers,
    seq_len,
    batch,
    mxu_dtype,
):
    H = x_ref.shape[1]
    S = seq_len
    B = batch
    f32 = jnp.float32

    def mm(a, b):
        return jnp.dot(a.astype(mxu_dtype), b.astype(mxu_dtype),
                       preferred_element_type=f32)

    # ---------------- time-parallel prework (one batched pass over all S) ----
    x = x_ref[...]                                              # (S*B, H)
    ln_x = _layernorm(x, ln_g_ref[...], ln_b_ref[...])
    attn = mm(ln_x, wvo_ref[...]) + bvo_ref[...]                # (S*B, H)
    # layer-0 x-side gate contribution; bias and 0.5 gate-scale already folded in.
    xg0 = mm(attn, wxh_ref[0]) + b_ref[0]                       # (S*B, 4H)

    # ---------------- load recurrent weights once (cast once, outside loop) --
    whh = [whh_ref[l].astype(mxu_dtype) for l in range(num_layers)]
    wxh = [wxh_ref[l].astype(mxu_dtype) for l in range(1, num_layers)]
    bg = [b_ref[l] for l in range(1, num_layers)]

    # ---------------- serial recurrence (static unroll, S is small) ----------
    hs = [jnp.zeros((B, H), f32) for _ in range(num_layers)]
    cs = [jnp.zeros((B, H), f32) for _ in range(num_layers)]
    h_tops = []

    for s in range(S):
        # h-side matmuls for every layer depend only on step s-1 state; issue
        # them up front so they overlap the activation chain of earlier layers.
        hg = [jnp.dot(hs[l].astype(mxu_dtype), whh[l],
                      preferred_element_type=f32)
              for l in range(num_layers)]
        inp = None
        for l in range(num_layers):
            if l == 0:
                # tile-aligned static slice (B is a multiple of 8)
                gates = hg[0] + xg0[s * B:(s + 1) * B]
            else:
                gates = (hg[l]
                         + jnp.dot(inp.astype(mxu_dtype), wxh[l - 1],
                                   preferred_element_type=f32)
                         + bg[l - 1])
            # gates columns are pre-scaled: 0.5 on i/f/o, 1.0 on g
            #   sigmoid(x) = 0.5 * tanh(0.5 x) + 0.5   (one full-lane EUP pass)
            t = jnp.tanh(gates)                                  # (B, 4H)
            sg = 0.5 * t + 0.5
            i_g = sg[:, 0:H]
            f_g = sg[:, H:2 * H]
            g_g = t[:, 2 * H:3 * H]
            o_g = sg[:, 3 * H:4 * H]
            c_new = f_g * cs[l] + i_g * g_g
            h_new = o_g * jnp.tanh(c_new)
            cs[l] = c_new
            hs[l] = h_new
            inp = h_new
        h_tops.append(inp)

    # ---------------- single K = S*H fc matmul after the loop ----------------
    h_cat = jnp.concatenate(h_tops, axis=-1)                    # (B, S*H)
    o_ref[...] = mm(h_cat, fc_w_ref[...]) + fc_b_ref[...]


def decoder_forward(x_enc, params, mxu_dtype=jnp.float32):
    """x_enc: (seq_len, batch, hidden).  Set mxu_dtype=jnp.bfloat16 on v6e/v7x."""
    S, B, H = x_enc.shape
    L = params["whh"].shape[0]
    O = params["fc_w_t"].shape[1]

    B_pad = max(8, -(-B // 8) * 8)          # f32 sublane tile
    O_pad = -(-O // 128) * 128              # lane-dense output store

    # ----- one-time host-side fusions (would normally live in param init) ----
    # Gate column scale: fold the 0.5 of sigmoid(x)=0.5*tanh(0.5x)+0.5 into the
    # i/f/o weight columns and biases (exact: *0.5 is a power of two).
    sc = np.ones((1, 4 * H), np.float32)
    sc[:, :2 * H] = 0.5
    sc[:, 3 * H:] = 0.5
    sc = jnp.asarray(sc)

    whh_s = params["whh"] * sc                                  # (L, H, 4H)
    wxh_s = params["wxh"] * sc                                  # (L, H, 4H)
    b_s = (params["bhh"] + params["bxh"]) * sc                  # (L, 1, 4H)

    # Single-key attention: softmax weight == 1.0, query path cancels exactly.
    wvo = params["wv_t"] @ params["wo_t"]                       # (H, H)
    bvo = params["bv"] @ params["wo_t"] + params["bo"]          # (1, H)

    fc_w = jnp.pad(params["fc_w_t"], ((0, 0), (0, O_pad - O)))  # (S*H, O_pad)
    fc_b = jnp.pad(params["fc_b"], ((0, 0), (0, O_pad - O)))    # (1, O_pad)

    # Pad batch to the sublane tile; padded rows are independent garbage rows
    # (LayerNorm of zeros is finite) and are sliced off below.
    x_pad = jnp.pad(x_enc, ((0, 0), (0, B_pad - B), (0, 0)))
    x2d = x_pad.reshape(S * B_pad, H)                           # time-major rows

    kernel = functools.partial(decoder_kernel, num_layers=L, seq_len=S,
                               batch=B_pad, mxu_dtype=mxu_dtype)

    out = pl.pallas_call(
        kernel,
        out_shape=jax.ShapeDtypeStruct((B_pad, O_pad), jnp.float32),
        grid=(1,),
        in_specs=[
            pl.BlockSpec((S * B_pad, H), lambda i: (0, 0)),
            pl.BlockSpec((1, H), lambda i: (0, 0)),
            pl.BlockSpec((1, H), lambda i: (0, 0)),
            pl.BlockSpec((H, H), lambda i: (0, 0)),
            pl.BlockSpec((1, H), lambda i: (0, 0)),
            pl.BlockSpec((L, H, 4 * H), lambda i: (0, 0, 0)),
            pl.BlockSpec((L, H, 4 * H), lambda i: (0, 0, 0)),
            pl.BlockSpec((L, 1, 4 * H), lambda i: (0, 0, 0)),
            pl.BlockSpec((S * H, O_pad), lambda i: (0, 0)),
            pl.BlockSpec((1, O_pad), lambda i: (0, 0)),
        ],
        out_specs=pl.BlockSpec((B_pad, O_pad), lambda i: (0, 0)),
        compiler_params=pltpu.CompilerParams(
            dimension_semantics=("arbitrary",)),
    )(x2d, params["ln_g"], params["ln_b"], wvo, bvo,
      whh_s, wxh_s, b_s, fc_w, fc_b)
    return out[:B, :O]


def reference_forward(x_enc, params):
    """Pure-JAX replica of the PyTorch Decoder.forward (unfused) for validation."""
    S, B, H = x_enc.shape
    L = params["whh"].shape[0]
    h = [jnp.zeros((B, H), jnp.float32) for _ in range(L)]
    c = [jnp.zeros((B, H), jnp.float32) for _ in range(L)]
    outs = []
    for s in range(S):
        ln_x = _layernorm(x_enc[s], params["ln_g"], params["ln_b"])
        v = ln_x @ params["wv_t"] + params["bv"]
        inp = v @ params["wo_t"] + params["bo"]
        for l in range(L):
            gates = (h[l] @ params["whh"][l] + params["bhh"][l]
                     + inp @ params["wxh"][l] + params["bxh"][l])
            i = jax.nn.sigmoid(gates[:, :H])
            f = jax.nn.sigmoid(gates[:, H:2 * H])
            g = jnp.tanh(gates[:, 2 * H:3 * H])
            o = jax.nn.sigmoid(gates[:, 3 * H:])
            c[l] = f * c[l] + i * g
            h[l] = o * jnp.tanh(c[l])
            inp = h[l]
        outs.append(inp)
    flat = jnp.transpose(jnp.stack(outs), (1, 0, 2)).reshape(B, S * H)
    return flat @ params["fc_w_t"] + params["fc_b"]


def init_params(key, hidden, num_layers, input_seq_len, output_size, output_seq_len):
    ks = jax.random.split(key, 16)
    std = 1.0 / np.sqrt(hidden)
    u = lambda k, shape, s: jax.random.uniform(k, shape, jnp.float32, -s, s)
    params = {
        "ln_g": jnp.ones((1, hidden), jnp.float32),
        "ln_b": jnp.zeros((1, hidden), jnp.float32),
        "wv_t": u(ks[0], (hidden, hidden), std),
        "bv": u(ks[1], (1, hidden), std),
        "wo_t": u(ks[2], (hidden, hidden), std),
        "bo": u(ks[3], (1, hidden), std),
        "whh": u(ks[4], (num_layers, hidden, 4 * hidden), std),
        "bhh": u(ks[5], (num_layers, 1, 4 * hidden), std),
        "wxh": u(ks[6], (num_layers, hidden, 4 * hidden), std),
        "bxh": u(ks[7], (num_layers, 1, 4 * hidden), std),
        "fc_w_t": u(ks[8], (hidden * input_seq_len, output_size * output_seq_len),
                    1.0 / np.sqrt(hidden * input_seq_len)),
        "fc_b": u(ks[9], (1, output_size * output_seq_len),
                  1.0 / np.sqrt(hidden * input_seq_len)),
    }
    return params


if __name__ == "__main__":
    # Small, shape-consistent config (hidden == embedding == input feature dim,
    # as required by LayerNorm(hidden) applied to X_encoder features).
    batch = 2
    hidden = 32
    num_layers = 2
    input_seq_len = 8
    output_size = 4
    output_seq_len = 3

    key = jax.random.PRNGKey(0)
    k_x, k_p = jax.random.split(key)
    # layout: (seq_len, batch, hidden)
    x_enc = jax.random.normal(k_x, (input_seq_len, batch, hidden), jnp.float32)
    params = init_params(k_p, hidden, num_layers, input_seq_len,
                         output_size, output_seq_len)

    out = decoder_forward(x_enc, params)          # f32 MXU operands (safe on all gens)
    out = jax.block_until_ready(out)

    ref = reference_forward(x_enc, params)
    np.testing.assert_allclose(np.asarray(out), np.asarray(ref),
                               rtol=2e-2, atol=2e-2)
    assert out.shape == (batch, output_size * output_seq_len)
    print("KERNEL_OK")
</pallas_src>

<mosaic_0001>
module attributes {stable_mosaic.version = 11 : i64} {
  func.func @decoder_kernel(%arg0: i32, %arg1: memref<64x32xf32, #tpu.memory_space<vmem>>, %arg2: memref<1x32xf32, #tpu.memory_space<vmem>>, %arg3: memref<1x32xf32, #tpu.memory_space<vmem>>, %arg4: memref<32x32xf32, #tpu.memory_space<vmem>>, %arg5: memref<1x32xf32, #tpu.memory_space<vmem>>, %arg6: memref<2x32x128xf32, #tpu.memory_space<vmem>>, %arg7: memref<2x32x128xf32, #tpu.memory_space<vmem>>, %arg8: memref<2x1x128xf32, #tpu.memory_space<vmem>>, %arg9: memref<256x128xf32, #tpu.memory_space<vmem>>, %arg10: memref<1x128xf32, #tpu.memory_space<vmem>>, %arg11: memref<8x128xf32, #tpu.memory_space<vmem>>) attributes {dimension_semantics = [#tpu.dimension_semantics<arbitrary>], iteration_bounds = array<i64: 1>, scalar_prefetch = 0 : i64, scratch_operands = 0 : i64, tpu.core_type = #tpu.core_type<tc>, window_params = [{pipeline_mode = #tpu.pipeline_mode<synchronous>, transform_indices = @transform_0, window_bounds = array<i64: 64, 32>}, {pipeline_mode = #tpu.pipeline_mode<synchronous>, transform_indices = @transform_1, window_bounds = array<i64: 1, 32>}, {pipeline_mode = #tpu.pipeline_mode<synchronous>, transform_indices = @transform_2, window_bounds = array<i64: 1, 32>}, {pipeline_mode = #tpu.pipeline_mode<synchronous>, transform_indices = @transform_3, window_bounds = array<i64: 32, 32>}, {pipeline_mode = #tpu.pipeline_mode<synchronous>, transform_indices = @transform_4, window_bounds = array<i64: 1, 32>}, {pipeline_mode = #tpu.pipeline_mode<synchronous>, transform_indices = @transform_5, window_bounds = array<i64: 2, 32, 128>}, {pipeline_mode = #tpu.pipeline_mode<synchronous>, transform_indices = @transform_6, window_bounds = array<i64: 2, 32, 128>}, {pipeline_mode = #tpu.pipeline_mode<synchronous>, transform_indices = @transform_7, window_bounds = array<i64: 2, 1, 128>}, {pipeline_mode = #tpu.pipeline_mode<synchronous>, transform_indices = @transform_8, window_bounds = array<i64: 256, 128>}, {pipeline_mode = #tpu.pipeline_mode<synchronous>, transform_indices = @transform_9, window_bounds = array<i64: 1, 128>}, {pipeline_mode = #tpu.pipeline_mode<synchronous>, transform_indices = @transform_10, window_bounds = array<i64: 8, 128>}]} {
    %c0 = arith.constant 0 : index
    %c0_0 = arith.constant 0 : index
    %0 = vector.load %arg1[%c0, %c0_0] : memref<64x32xf32, #tpu.memory_space<vmem>>, vector<64x32xf32>
    %c0_1 = arith.constant 0 : index
    %c0_2 = arith.constant 0 : index
    %1 = vector.load %arg2[%c0_1, %c0_2] : memref<1x32xf32, #tpu.memory_space<vmem>>, vector<1x32xf32>
    %c0_3 = arith.constant 0 : index
    %c0_4 = arith.constant 0 : index
    %2 = vector.load %arg3[%c0_3, %c0_4] : memref<1x32xf32, #tpu.memory_space<vmem>>, vector<1x32xf32>
    %cst = arith.constant dense<0.000000e+00> : vector<64xf32>
    %3 = vector.multi_reduction <add>, %0, %cst [1] : vector<64x32xf32> to vector<64xf32>
    %4 = vector.shape_cast %3 : vector<64xf32> to vector<64x1xf32>
    %cst_5 = arith.constant 3.200000e+01 : f32
    %5 = vector.broadcast %cst_5 : f32 to vector<64x1xf32>
    %6 = arith.divf %4, %5 : vector<64x1xf32>
    %7 = vector.broadcast %6 : vector<64x1xf32> to vector<64x32xf32>
    %8 = arith.subf %0, %7 : vector<64x32xf32>
    %9 = arith.mulf %8, %8 : vector<64x32xf32>
    %cst_6 = arith.constant dense<0.000000e+00> : vector<64xf32>
    %10 = vector.multi_reduction <add>, %9, %cst_6 [1] : vector<64x32xf32> to vector<64xf32>
    %11 = vector.shape_cast %10 : vector<64xf32> to vector<64x1xf32>
    %cst_7 = arith.constant 3.200000e+01 : f32
    %12 = vector.broadcast %cst_7 : f32 to vector<64x1xf32>
    %13 = arith.divf %11, %12 : vector<64x1xf32>
    %14 = vector.broadcast %6 : vector<64x1xf32> to vector<64x32xf32>
    %15 = arith.subf %0, %14 : vector<64x32xf32>
    %cst_8 = arith.constant 9.99999974E-6 : f32
    %16 = vector.broadcast %cst_8 : f32 to vector<64x1xf32>
    %17 = arith.addf %13, %16 : vector<64x1xf32>
    %18 = math.rsqrt %17 : vector<64x1xf32>
    %19 = vector.broadcast %18 : vector<64x1xf32> to vector<64x32xf32>
    %20 = arith.mulf %15, %19 : vector<64x32xf32>
    %21 = vector.broadcast %1 : vector<1x32xf32> to vector<64x32xf32>
    %22 = arith.mulf %20, %21 : vector<64x32xf32>
    %23 = vector.broadcast %2 : vector<1x32xf32> to vector<64x32xf32>
    %24 = arith.addf %22, %23 : vector<64x32xf32>
    %c0_9 = arith.constant 0 : index
    %c0_10 = arith.constant 0 : index
    %25 = vector.load %arg4[%c0_9, %c0_10] : memref<32x32xf32, #tpu.memory_space<vmem>>, vector<32x32xf32>
    %cst_11 = arith.constant dense<0.000000e+00> : vector<64x32xf32>
    %26 = tpu.matmul %24, %25, %cst_11 {dimension_numbers = #tpu.dot_dimension_numbers<[1], [0], [0], [1], [0, 0, 1, 1], [], []>} : vector<64x32xf32>, vector<32x32xf32>, vector<64x32xf32> -> vector<64x32xf32>
    %c0_12 = arith.constant 0 : index
    %c0_13 = arith.constant 0 : index
    %27 = vector.load %arg5[%c0_12, %c0_13] : memref<1x32xf32, #tpu.memory_space<vmem>>, vector<1x32xf32>
    %28 = vector.broadcast %27 : vector<1x32xf32> to vector<64x32xf32>
    %29 = arith.addf %26, %28 : vector<64x32xf32>
    %c0_14 = arith.constant 0 : index
    %c0_15 = arith.constant 0 : index
    %c0_16 = arith.constant 0 : index
    %30 = vector.load %arg7[%c0_14, %c0_15, %c0_16] : memref<2x32x128xf32, #tpu.memory_space<vmem>>, vector<1x32x128xf32>
    %31 = vector.shape_cast %30 : vector<1x32x128xf32> to vector<32x128xf32>
    %cst_17 = arith.constant dense<0.000000e+00> : vector<64x128xf32>
    %32 = tpu.matmul %29, %31, %cst_17 {dimension_numbers = #tpu.dot_dimension_numbers<[1], [0], [0], [1], [0, 0, 1, 1], [], []>} : vector<64x32xf32>, vector<32x128xf32>, vector<64x128xf32> -> vector<64x128xf32>
    %c0_18 = arith.constant 0 : index
    %c0_19 = arith.constant 0 : index
    %c0_20 = arith.constant 0 : index
    %33 = vector.load %arg8[%c0_18, %c0_19, %c0_20] : memref<2x1x128xf32, #tpu.memory_space<vmem>>, vector<1x1x128xf32>
    %34 = vector.shape_cast %33 : vector<1x1x128xf32> to vector<1x128xf32>
    %35 = vector.broadcast %34 : vector<1x128xf32> to vector<64x128xf32>
    %36 = arith.addf %32, %35 : vector<64x128xf32>
    %c0_21 = arith.constant 0 : index
    %c0_22 = arith.constant 0 : index
    %c0_23 = arith.constant 0 : index
    %37 = vector.load %arg6[%c0_21, %c0_22, %c0_23] : memref<2x32x128xf32, #tpu.memory_space<vmem>>, vector<1x32x128xf32>
    %38 = vector.shape_cast %37 : vector<1x32x128xf32> to vector<32x128xf32>
    %c1 = arith.constant 1 : index
    %c0_24 = arith.constant 0 : index
    %c0_25 = arith.constant 0 : index
    %39 = vector.load %arg6[%c1, %c0_24, %c0_25] : memref<2x32x128xf32, #tpu.memory_space<vmem>>, vector<1x32x128xf32>
    %40 = vector.shape_cast %39 : vector<1x32x128xf32> to vector<32x128xf32>
    %c1_26 = arith.constant 1 : index
    %c0_27 = arith.constant 0 : index
    %c0_28 = arith.constant 0 : index
    %41 = vector.load %arg7[%c1_26, %c0_27, %c0_28] : memref<2x32x128xf32, #tpu.memory_space<vmem>>, vector<1x32x128xf32>
    %42 = vector.shape_cast %41 : vector<1x32x128xf32> to vector<32x128xf32>
    %c1_29 = arith.constant 1 : index
    %c0_30 = arith.constant 0 : index
    %c0_31 = arith.constant 0 : index
    %43 = vector.load %arg8[%c1_29, %c0_30, %c0_31] : memref<2x1x128xf32, #tpu.memory_space<vmem>>, vector<1x1x128xf32>
    %44 = vector.shape_cast %43 : vector<1x1x128xf32> to vector<1x128xf32>
    %cst_32 = arith.constant 0.000000e+00 : f32
    %45 = vector.broadcast %cst_32 : f32 to vector<8x32xf32>
    %cst_33 = arith.constant 0.000000e+00 : f32
    %46 = vector.broadcast %cst_33 : f32 to vector<8x32xf32>
    %cst_34 = arith.constant 0.000000e+00 : f32
    %47 = vector.broadcast %cst_34 : f32 to vector<8x32xf32>
    %cst_35 = arith.constant 0.000000e+00 : f32
    %48 = vector.broadcast %cst_35 : f32 to vector<8x32xf32>
    %cst_36 = arith.constant dense<0.000000e+00> : vector<8x128xf32>
    %49 = tpu.matmul %45, %38, %cst_36 {dimension_numbers = #tpu.dot_dimension_numbers<[1], [0], [0], [1], [0, 0, 1, 1], [], []>} : vector<8x32xf32>, vector<32x128xf32>, vector<8x128xf32> -> vector<8x128xf32>
    %cst_37 = arith.constant dense<0.000000e+00> : vector<8x128xf32>
    %50 = tpu.matmul %46, %40, %cst_37 {dimension_numbers = #tpu.dot_dimension_numbers<[1], [0], [0], [1], [0, 0, 1, 1], [], []>} : vector<8x32xf32>, vector<32x128xf32>, vector<8x128xf32> -> vector<8x128xf32>
    %51 = vector.extract_strided_slice %36 {offsets = [0, 0], sizes = [8, 128], strides = [1, 1]} : vector<64x128xf32> to vector<8x128xf32>
    %52 = arith.addf %49, %51 : vector<8x128xf32>
    %53 = math.tanh %52 : vector<8x128xf32>
    %cst_38 = arith.constant 5.000000e-01 : f32
    %54 = vector.broadcast %cst_38 : f32 to vector<8x128xf32>
    %55 = arith.mulf %54, %53 : vector<8x128xf32>
    %cst_39 = arith.constant 5.000000e-01 : f32
    %56 = vector.broadcast %cst_39 : f32 to vector<8x128xf32>
    %57 = arith.addf %55, %56 : vector<8x128xf32>
    %58 = vector.extract_strided_slice %57 {offsets = [0, 0], sizes = [8, 32], strides = [1, 1]} : vector<8x128xf32> to vector<8x32xf32>
    %59 = vector.extract_strided_slice %57 {offsets = [0, 32], sizes = [8, 32], strides = [1, 1]} : vector<8x128xf32> to vector<8x32xf32>
    %60 = vector.extract_strided_slice %53 {offsets = [0, 64], sizes = [8, 32], strides = [1, 1]} : vector<8x128xf32> to vector<8x32xf32>
    %61 = vector.extract_strided_slice %57 {offsets = [0, 96], sizes = [8, 32], strides = [1, 1]} : vector<8x128xf32> to vector<8x32xf32>
    %62 = arith.mulf %59, %47 : vector<8x32xf32>
    %63 = arith.mulf %58, %60 : vector<8x32xf32>
    %64 = arith.addf %62, %63 : vector<8x32xf32>
    %65 = math.tanh %64 : vector<8x32xf32>
    %66 = arith.mulf %61, %65 : vector<8x32xf32>
    %cst_40 = arith.constant dense<0.000000e+00> : vector<8x128xf32>
    %67 = tpu.matmul %66, %42, %cst_40 {dimension_numbers = #tpu.dot_dimension_numbers<[1], [0], [0], [1], [0, 0, 1, 1], [], []>} : vector<8x32xf32>, vector<32x128xf32>, vector<8x128xf32> -> vector<8x128xf32>
    %68 = arith.addf %50, %67 : vector<8x128xf32>
    %69 = vector.broadcast %44 : vector<1x128xf32> to vector<8x128xf32>
    %70 = arith.addf %68, %69 : vector<8x128xf32>
    %71 = math.tanh %70 : vector<8x128xf32>
    %cst_41 = arith.constant 5.000000e-01 : f32
    %72 = vector.broadcast %cst_41 : f32 to vector<8x128xf32>
    %73 = arith.mulf %72, %71 : vector<8x128xf32>
    %cst_42 = arith.constant 5.000000e-01 : f32
    %74 = vector.broadcast %cst_42 : f32 to vector<8x128xf32>
    %75 = arith.addf %73, %74 : vector<8x128xf32>
    %76 = vector.extract_strided_slice %75 {offsets = [0, 0], sizes = [8, 32], strides = [1, 1]} : vector<8x128xf32> to vector<8x32xf32>
    %77 = vector.extract_strided_slice %75 {offsets = [0, 32], sizes = [8, 32], strides = [1, 1]} : vector<8x128xf32> to vector<8x32xf32>
    %78 = vector.extract_strided_slice %71 {offsets = [0, 64], sizes = [8, 32], strides = [1, 1]} : vector<8x128xf32> to vector<8x32xf32>
    %79 = vector.extract_strided_slice %75 {offsets = [0, 96], sizes = [8, 32], strides = [1, 1]} : vector<8x128xf32> to vector<8x32xf32>
    %80 = arith.mulf %77, %48 : vector<8x32xf32>
    %81 = arith.mulf %76, %78 : vector<8x32xf32>
    %82 = arith.addf %80, %81 : vector<8x32xf32>
    %83 = math.tanh %82 : vector<8x32xf32>
    %84 = arith.mulf %79, %83 : vector<8x32xf32>
    %cst_43 = arith.constant dense<0.000000e+00> : vector<8x128xf32>
    %85 = tpu.matmul %66, %38, %cst_43 {dimension_numbers = #tpu.dot_dimension_numbers<[1], [0], [0], [1], [0, 0, 1, 1], [], []>} : vector<8x32xf32>, vector<32x128xf32>, vector<8x128xf32> -> vector<8x128xf32>
    %cst_44 = arith.constant dense<0.000000e+00> : vector<8x128xf32>
    %86 = tpu.matmul %84, %40, %cst_44 {dimension_numbers = #tpu.dot_dimension_numbers<[1], [0], [0], [1], [0, 0, 1, 1], [], []>} : vector<8x32xf32>, vector<32x128xf32>, vector<8x128xf32> -> vector<8x128xf32>
    %87 = vector.extract_strided_slice %36 {offsets = [8, 0], sizes = [8, 128], strides = [1, 1]} : vector<64x128xf32> to vector<8x128xf32>
    %88 = arith.addf %85, %87 : vector<8x128xf32>
    %89 = math.tanh %88 : vector<8x128xf32>
    %cst_45 = arith.constant 5.000000e-01 : f32
    %90 = vector.broadcast %cst_45 : f32 to vector<8x128xf32>
    %91 = arith.mulf %90, %89 : vector<8x128xf32>
    %cst_46 = arith.constant 5.000000e-01 : f32
    %92 = vector.broadcast %cst_46 : f32 to vector<8x128xf32>
    %93 = arith.addf %91, %92 : vector<8x128xf32>
    %94 = vector.extract_strided_slice %93 {offsets = [0, 0], sizes = [8, 32], strides = [1, 1]} : vector<8x128xf32> to vector<8x32xf32>
    %95 = vector.extract_strided_slice %93 {offsets = [0, 32], sizes = [8, 32], strides = [1, 1]} : vector<8x128xf32> to vector<8x32xf32>
    %96 = vector.extract_strided_slice %89 {offsets = [0, 64], sizes = [8, 32], strides = [1, 1]} : vector<8x128xf32> to vector<8x32xf32>
    %97 = vector.extract_strided_slice %93 {offsets = [0, 96], sizes = [8, 32], strides = [1, 1]} : vector<8x128xf32> to vector<8x32xf32>
    %98 = arith.mulf %95, %64 : vector<8x32xf32>
    %99 = arith.mulf %94, %96 : vector<8x32xf32>
    %100 = arith.addf %98, %99 : vector<8x32xf32>
    %101 = math.tanh %100 : vector<8x32xf32>
    %102 = arith.mulf %97, %101 : vector<8x32xf32>
    %cst_47 = arith.constant dense<0.000000e+00> : vector<8x128xf32>
    %103 = tpu.matmul %102, %42, %cst_47 {dimension_numbers = #tpu.dot_dimension_numbers<[1], [0], [0], [1], [0, 0, 1, 1], [], []>} : vector<8x32xf32>, vector<32x128xf32>, vector<8x128xf32> -> vector<8x128xf32>
    %104 = arith.addf %86, %103 : vector<8x128xf32>
    %105 = vector.broadcast %44 : vector<1x128xf32> to vector<8x128xf32>
    %106 = arith.addf %104, %105 : vector<8x128xf32>
    %107 = math.tanh %106 : vector<8x128xf32>
    %cst_48 = arith.constant 5.000000e-01 : f32
    %108 = vector.broadcast %cst_48 : f32 to vector<8x128xf32>
    %109 = arith.mulf %108, %107 : vector<8x128xf32>
    %cst_49 = arith.constant 5.000000e-01 : f32
    %110 = vector.broadcast %cst_49 : f32 to vector<8x128xf32>
    %111 = arith.addf %109, %110 : vector<8x128xf32>
    %112 = vector.extract_strided_slice %111 {offsets = [0, 0], sizes = [8, 32], strides = [1, 1]} : vector<8x128xf32> to vector<8x32xf32>
    %113 = vector.extract_strided_slice %111 {offsets = [0, 32], sizes = [8, 32], strides = [1, 1]} : vector<8x128xf32> to vector<8x32xf32>
    %114 = vector.extract_strided_slice %107 {offsets = [0, 64], sizes = [8, 32], strides = [1, 1]} : vector<8x128xf32> to vector<8x32xf32>
    %115 = vector.extract_strided_slice %111 {offsets = [0, 96], sizes = [8, 32], strides = [1, 1]} : vector<8x128xf32> to vector<8x32xf32>
    %116 = arith.mulf %113, %82 : vector<8x32xf32>
    %117 = arith.mulf %112, %114 : vector<8x32xf32>
    %118 = arith.addf %116, %117 : vector<8x32xf32>
    %119 = math.tanh %118 : vector<8x32xf32>
    %120 = arith.mulf %115, %119 : vector<8x32xf32>
    %cst_50 = arith.constant dense<0.000000e+00> : vector<8x128xf32>
    %121 = tpu.matmul %102, %38, %cst_50 {dimension_numbers = #tpu.dot_dimension_numbers<[1], [0], [0], [1], [0, 0, 1, 1], [], []>} : vector<8x32xf32>, vector<32x128xf32>, vector<8x128xf32> -> vector<8x128xf32>
    %cst_51 = arith.constant dense<0.000000e+00> : vector<8x128xf32>
    %122 = tpu.matmul %120, %40, %cst_51 {dimension_numbers = #tpu.dot_dimension_numbers<[1], [0], [0], [1], [0, 0, 1, 1], [], []>} : vector<8x32xf32>, vector<32x128xf32>, vector<8x128xf32> -> vector<8x128xf32>
    %123 = vector.extract_strided_slice %36 {offsets = [16, 0], sizes = [8, 128], strides = [1, 1]} : vector<64x128xf32> to vector<8x128xf32>
    %124 = arith.addf %121, %123 : vector<8x128xf32>
    %125 = math.tanh %124 : vector<8x128xf32>
    %cst_52 = arith.constant 5.000000e-01 : f32
    %126 = vector.broadcast %cst_52 : f32 to vector<8x128xf32>
    %127 = arith.mulf %126, %125 : vector<8x128xf32>
    %cst_53 = arith.constant 5.000000e-01 : f32
    %128 = vector.broadcast %cst_53 : f32 to vector<8x128xf32>
    %129 = arith.addf %127, %128 : vector<8x128xf32>
    %130 = vector.extract_strided_slice %129 {offsets = [0, 0], sizes = [8, 32], strides = [1, 1]} : vector<8x128xf32> to vector<8x32xf32>
    %131 = vector.extract_strided_slice %129 {offsets = [0, 32], sizes = [8, 32], strides = [1, 1]} : vector<8x128xf32> to vector<8x32xf32>
    %132 = vector.extract_strided_slice %125 {offsets = [0, 64], sizes = [8, 32], strides = [1, 1]} : vector<8x128xf32> to vector<8x32xf32>
    %133 = vector.extract_strided_slice %129 {offsets = [0, 96], sizes = [8, 32], strides = [1, 1]} : vector<8x128xf32> to vector<8x32xf32>
    %134 = arith.mulf %131, %100 : vector<8x32xf32>
    %135 = arith.mulf %130, %132 : vector<8x32xf32>
    %136 = arith.addf %134, %135 : vector<8x32xf32>
    %137 = math.tanh %136 : vector<8x32xf32>
    %138 = arith.mulf %133, %137 : vector<8x32xf32>
    %cst_54 = arith.constant dense<0.000000e+00> : vector<8x128xf32>
    %139 = tpu.matmul %138, %42, %cst_54 {dimension_numbers = #tpu.dot_dimension_numbers<[1], [0], [0], [1], [0, 0, 1, 1], [], []>} : vector<8x32xf32>, vector<32x128xf32>, vector<8x128xf32> -> vector<8x128xf32>
    %140 = arith.addf %122, %139 : vector<8x128xf32>
    %141 = vector.broadcast %44 : vector<1x128xf32> to vector<8x128xf32>
    %142 = arith.addf %140, %141 : vector<8x128xf32>
    %143 = math.tanh %142 : vector<8x128xf32>
    %cst_55 = arith.constant 5.000000e-01 : f32
    %144 = vector.broadcast %cst_55 : f32 to vector<8x128xf32>
    %145 = arith.mulf %144, %143 : vector<8x128xf32>
    %cst_56 = arith.constant 5.000000e-01 : f32
    %146 = vector.broadcast %cst_56 : f32 to vector<8x128xf32>
    %147 = arith.addf %145, %146 : vector<8x128xf32>
    %148 = vector.extract_strided_slice %147 {offsets = [0, 0], sizes = [8, 32], strides = [1, 1]} : vector<8x128xf32> to vector<8x32xf32>
    %149 = vector.extract_strided_slice %147 {offsets = [0, 32], sizes = [8, 32], strides = [1, 1]} : vector<8x128xf32> to vector<8x32xf32>
    %150 = vector.extract_strided_slice %143 {offsets = [0, 64], sizes = [8, 32], strides = [1, 1]} : vector<8x128xf32> to vector<8x32xf32>
    %151 = vector.extract_strided_slice %147 {offsets = [0, 96], sizes = [8, 32], strides = [1, 1]} : vector<8x128xf32> to vector<8x32xf32>
    %152 = arith.mulf %149, %118 : vector<8x32xf32>
    %153 = arith.mulf %148, %150 : vector<8x32xf32>
    %154 = arith.addf %152, %153 : vector<8x32xf32>
    %155 = math.tanh %154 : vector<8x32xf32>
    %156 = arith.mulf %151, %155 : vector<8x32xf32>
    %cst_57 = arith.constant dense<0.000000e+00> : vector<8x128xf32>
    %157 = tpu.matmul %138, %38, %cst_57 {dimension_numbers = #tpu.dot_dimension_numbers<[1], [0], [0], [1], [0, 0, 1, 1], [], []>} : vector<8x32xf32>, vector<32x128xf32>, vector<8x128xf32> -> vector<8x128xf32>
    %cst_58 = arith.constant dense<0.000000e+00> : vector<8x128xf32>
    %158 = tpu.matmul %156, %40, %cst_58 {dimension_numbers = #tpu.dot_dimension_numbers<[1], [0], [0], [1], [0, 0, 1, 1], [], []>} : vector<8x32xf32>, vector<32x128xf32>, vector<8x128xf32> -> vector<8x128xf32>
    %159 = vector.extract_strided_slice %36 {offsets = [24, 0], sizes = [8, 128], strides = [1, 1]} : vector<64x128xf32> to vector<8x128xf32>
    %160 = arith.addf %157, %159 : vector<8x128xf32>
    %161 = math.tanh %160 : vector<8x128xf32>
    %cst_59 = arith.constant 5.000000e-01 : f32
    %162 = vector.broadcast %cst_59 : f32 to vector<8x128xf32>
    %163 = arith.mulf %162, %161 : vector<8x128xf32>
    %cst_60 = arith.constant 5.000000e-01 : f32
    %164 = vector.broadcast %cst_60 : f32 to vector<8x128xf32>
    %165 = arith.addf %163, %164 : vector<8x128xf32>
    %166 = vector.extract_strided_slice %165 {offsets = [0, 0], sizes = [8, 32], strides = [1, 1]} : vector<8x128xf32> to vector<8x32xf32>
    %167 = vector.extract_strided_slice %165 {offsets = [0, 32], sizes = [8, 32], strides = [1, 1]} : vector<8x128xf32> to vector<8x32xf32>
    %168 = vector.extract_strided_slice %161 {offsets = [0, 64], sizes = [8, 32], strides = [1, 1]} : vector<8x128xf32> to vector<8x32xf32>
    %169 = vector.extract_strided_slice %165 {offsets = [0, 96], sizes = [8, 32], strides = [1, 1]} : vector<8x128xf32> to vector<8x32xf32>
    %170 = arith.mulf %167, %136 : vector<8x32xf32>
    %171 = arith.mulf %166, %168 : vector<8x32xf32>
    %172 = arith.addf %170, %171 : vector<8x32xf32>
    %173 = math.tanh %172 : vector<8x32xf32>
    %174 = arith.mulf %169, %173 : vector<8x32xf32>
    %cst_61 = arith.constant dense<0.000000e+00> : vector<8x128xf32>
    %175 = tpu.matmul %174, %42, %cst_61 {dimension_numbers = #tpu.dot_dimension_numbers<[1], [0], [0], [1], [0, 0, 1, 1], [], []>} : vector<8x32xf32>, vector<32x128xf32>, vector<8x128xf32> -> vector<8x128xf32>
    %176 = arith.addf %158, %175 : vector<8x128xf32>
    %177 = vector.broadcast %44 : vector<1x128xf32> to vector<8x128xf32>
    %178 = arith.addf %176, %177 : vector<8x128xf32>
    %179 = math.tanh %178 : vector<8x128xf32>
    %cst_62 = arith.constant 5.000000e-01 : f32
    %180 = vector.broadcast %cst_62 : f32 to vector<8x128xf32>
    %181 = arith.mulf %180, %179 : vector<8x128xf32>
    %cst_63 = arith.constant 5.000000e-01 : f32
    %182 = vector.broadcast %cst_63 : f32 to vector<8x128xf32>
    %183 = arith.addf %181, %182 : vector<8x128xf32>
    %184 = vector.extract_strided_slice %183 {offsets = [0, 0], sizes = [8, 32], strides = [1, 1]} : vector<8x128xf32> to vector<8x32xf32>
    %185 = vector.extract_strided_slice %183 {offsets = [0, 32], sizes = [8, 32], strides = [1, 1]} : vector<8x128xf32> to vector<8x32xf32>
    %186 = vector.extract_strided_slice %179 {offsets = [0, 64], sizes = [8, 32], strides = [1, 1]} : vector<8x128xf32> to vector<8x32xf32>
    %187 = vector.extract_strided_slice %183 {offsets = [0, 96], sizes = [8, 32], strides = [1, 1]} : vector<8x128xf32> to vector<8x32xf32>
    %188 = arith.mulf %185, %154 : vector<8x32xf32>
    %189 = arith.mulf %184, %186 : vector<8x32xf32>
    %190 = arith.addf %188, %189 : vector<8x32xf32>
    %191 = math.tanh %190 : vector<8x32xf32>
    %192 = arith.mulf %187, %191 : vector<8x32xf32>
    %cst_64 = arith.constant dense<0.000000e+00> : vector<8x128xf32>
    %193 = tpu.matmul %174, %38, %cst_64 {dimension_numbers = #tpu.dot_dimension_numbers<[1], [0], [0], [1], [0, 0, 1, 1], [], []>} : vector<8x32xf32>, vector<32x128xf32>, vector<8x128xf32> -> vector<8x128xf32>
    %cst_65 = arith.constant dense<0.000000e+00> : vector<8x128xf32>
    %194 = tpu.matmul %192, %40, %cst_65 {dimension_numbers = #tpu.dot_dimension_numbers<[1], [0], [0], [1], [0, 0, 1, 1], [], []>} : vector<8x32xf32>, vector<32x128xf32>, vector<8x128xf32> -> vector<8x128xf32>
    %195 = vector.extract_strided_slice %36 {offsets = [32, 0], sizes = [8, 128], strides = [1, 1]} : vector<64x128xf32> to vector<8x128xf32>
    %196 = arith.addf %193, %195 : vector<8x128xf32>
    %197 = math.tanh %196 : vector<8x128xf32>
    %cst_66 = arith.constant 5.000000e-01 : f32
    %198 = vector.broadcast %cst_66 : f32 to vector<8x128xf32>
    %199 = arith.mulf %198, %197 : vector<8x128xf32>
    %cst_67 = arith.constant 5.000000e-01 : f32
    %200 = vector.broadcast %cst_67 : f32 to vector<8x128xf32>
    %201 = arith.addf %199, %200 : vector<8x128xf32>
    %202 = vector.extract_strided_slice %201 {offsets = [0, 0], sizes = [8, 32], strides = [1, 1]} : vector<8x128xf32> to vector<8x32xf32>
    %203 = vector.extract_strided_slice %201 {offsets = [0, 32], sizes = [8, 32], strides = [1, 1]} : vector<8x128xf32> to vector<8x32xf32>
    %204 = vector.extract_strided_slice %197 {offsets = [0, 64], sizes = [8, 32], strides = [1, 1]} : vector<8x128xf32> to vector<8x32xf32>
    %205 = vector.extract_strided_slice %201 {offsets = [0, 96], sizes = [8, 32], strides = [1, 1]} : vector<8x128xf32> to vector<8x32xf32>
    %206 = arith.mulf %203, %172 : vector<8x32xf32>
    %207 = arith.mulf %202, %204 : vector<8x32xf32>
    %208 = arith.addf %206, %207 : vector<8x32xf32>
    %209 = math.tanh %208 : vector<8x32xf32>
    %210 = arith.mulf %205, %209 : vector<8x32xf32>
    %cst_68 = arith.constant dense<0.000000e+00> : vector<8x128xf32>
    %211 = tpu.matmul %210, %42, %cst_68 {dimension_numbers = #tpu.dot_dimension_numbers<[1], [0], [0], [1], [0, 0, 1, 1], [], []>} : vector<8x32xf32>, vector<32x128xf32>, vector<8x128xf32> -> vector<8x128xf32>
    %212 = arith.addf %194, %211 : vector<8x128xf32>
    %213 = vector.broadcast %44 : vector<1x128xf32> to vector<8x128xf32>
    %214 = arith.addf %212, %213 : vector<8x128xf32>
    %215 = math.tanh %214 : vector<8x128xf32>
    %cst_69 = arith.constant 5.000000e-01 : f32
    %216 = vector.broadcast %cst_69 : f32 to vector<8x128xf32>
    %217 = arith.mulf %216, %215 : vector<8x128xf32>
    %cst_70 = arith.constant 5.000000e-01 : f32
    %218 = vector.broadcast %cst_70 : f32 to vector<8x128xf32>
    %219 = arith.addf %217, %218 : vector<8x128xf32>
    %220 = vector.extract_strided_slice %219 {offsets = [0, 0], sizes = [8, 32], strides = [1, 1]} : vector<8x128xf32> to vector<8x32xf32>
    %221 = vector.extract_strided_slice %219 {offsets = [0, 32], sizes = [8, 32], strides = [1, 1]} : vector<8x128xf32> to vector<8x32xf32>
    %222 = vector.extract_strided_slice %215 {offsets = [0, 64], sizes = [8, 32], strides = [1, 1]} : vector<8x128xf32> to vector<8x32xf32>
    %223 = vector.extract_strided_slice %219 {offsets = [0, 96], sizes = [8, 32], strides = [1, 1]} : vector<8x128xf32> to vector<8x32xf32>
    %224 = arith.mulf %221, %190 : vector<8x32xf32>
    %225 = arith.mulf %220, %222 : vector<8x32xf32>
    %226 = arith.addf %224, %225 : vector<8x32xf32>
    %227 = math.tanh %226 : vector<8x32xf32>
    %228 = arith.mulf %223, %227 : vector<8x32xf32>
    %cst_71 = arith.constant dense<0.000000e+00> : vector<8x128xf32>
    %229 = tpu.matmul %210, %38, %cst_71 {dimension_numbers = #tpu.dot_dimension_numbers<[1], [0], [0], [1], [0, 0, 1, 1], [], []>} : vector<8x32xf32>, vector<32x128xf32>, vector<8x128xf32> -> vector<8x128xf32>
    %cst_72 = arith.constant dense<0.000000e+00> : vector<8x128xf32>
    %230 = tpu.matmul %228, %40, %cst_72 {dimension_numbers = #tpu.dot_dimension_numbers<[1], [0], [0], [1], [0, 0, 1, 1], [], []>} : vector<8x32xf32>, vector<32x128xf32>, vector<8x128xf32> -> vector<8x128xf32>
    %231 = vector.extract_strided_slice %36 {offsets = [40, 0], sizes = [8, 128], strides = [1, 1]} : vector<64x128xf32> to vector<8x128xf32>
    %232 = arith.addf %229, %231 : vector<8x128xf32>
    %233 = math.tanh %232 : vector<8x128xf32>
    %cst_73 = arith.constant 5.000000e-01 : f32
    %234 = vector.broadcast %cst_73 : f32 to vector<8x128xf32>
    %235 = arith.mulf %234, %233 : vector<8x128xf32>
    %cst_74 = arith.constant 5.000000e-01 : f32
    %236 = vector.broadcast %cst_74 : f32 to vector<8x128xf32>
    %237 = arith.addf %235, %236 : vector<8x128xf32>
    %238 = vector.extract_strided_slice %237 {offsets = [0, 0], sizes = [8, 32], strides = [1, 1]} : vector<8x128xf32> to vector<8x32xf32>
    %239 = vector.extract_strided_slice %237 {offsets = [0, 32], sizes = [8, 32], strides = [1, 1]} : vector<8x128xf32> to vector<8x32xf32>
    %240 = vector.extract_strided_slice %233 {offsets = [0, 64], sizes = [8, 32], strides = [1, 1]} : vector<8x128xf32> to vector<8x32xf32>
    %241 = vector.extract_strided_slice %237 {offsets = [0, 96], sizes = [8, 32], strides = [1, 1]} : vector<8x128xf32> to vector<8x32xf32>
    %242 = arith.mulf %239, %208 : vector<8x32xf32>
    %243 = arith.mulf %238, %240 : vector<8x32xf32>
    %244 = arith.addf %242, %243 : vector<8x32xf32>
    %245 = math.tanh %244 : vector<8x32xf32>
    %246 = arith.mulf %241, %245 : vector<8x32xf32>
    %cst_75 = arith.constant dense<0.000000e+00> : vector<8x128xf32>
    %247 = tpu.matmul %246, %42, %cst_75 {dimension_numbers = #tpu.dot_dimension_numbers<[1], [0], [0], [1], [0, 0, 1, 1], [], []>} : vector<8x32xf32>, vector<32x128xf32>, vector<8x128xf32> -> vector<8x128xf32>
    %248 = arith.addf %230, %247 : vector<8x128xf32>
    %249 = vector.broadcast %44 : vector<1x128xf32> to vector<8x128xf32>
    %250 = arith.addf %248, %249 : vector<8x128xf32>
    %251 = math.tanh %250 : vector<8x128xf32>
    %cst_76 = arith.constant 5.000000e-01 : f32
    %252 = vector.broadcast %cst_76 : f32 to vector<8x128xf32>
    %253 = arith.mulf %252, %251 : vector<8x128xf32>
    %cst_77 = arith.constant 5.000000e-01 : f32
    %254 = vector.broadcast %cst_77 : f32 to vector<8x128xf32>
    %255 = arith.addf %253, %254 : vector<8x128xf32>
    %256 = vector.extract_strided_slice %255 {offsets = [0, 0], sizes = [8, 32], strides = [1, 1]} : vector<8x128xf32> to vector<8x32xf32>
    %257 = vector.extract_strided_slice %255 {offsets = [0, 32], sizes = [8, 32], strides = [1, 1]} : vector<8x128xf32> to vector<8x32xf32>
    %258 = vector.extract_strided_slice %251 {offsets = [0, 64], sizes = [8, 32], strides = [1, 1]} : vector<8x128xf32> to vector<8x32xf32>
    %259 = vector.extract_strided_slice %255 {offsets = [0, 96], sizes = [8, 32], strides = [1, 1]} : vector<8x128xf32> to vector<8x32xf32>
    %260 = arith.mulf %257, %226 : vector<8x32xf32>
    %261 = arith.mulf %256, %258 : vector<8x32xf32>
    %262 = arith.addf %260, %261 : vector<8x32xf32>
    %263 = math.tanh %262 : vector<8x32xf32>
    %264 = arith.mulf %259, %263 : vector<8x32xf32>
    %cst_78 = arith.constant dense<0.000000e+00> : vector<8x128xf32>
    %265 = tpu.matmul %246, %38, %cst_78 {dimension_numbers = #tpu.dot_dimension_numbers<[1], [0], [0], [1], [0, 0, 1, 1], [], []>} : vector<8x32xf32>, vector<32x128xf32>, vector<8x128xf32> -> vector<8x128xf32>
    %cst_79 = arith.constant dense<0.000000e+00> : vector<8x128xf32>
    %266 = tpu.matmul %264, %40, %cst_79 {dimension_numbers = #tpu.dot_dimension_numbers<[1], [0], [0], [1], [0, 0, 1, 1], [], []>} : vector<8x32xf32>, vector<32x128xf32>, vector<8x128xf32> -> vector<8x128xf32>
    %267 = vector.extract_strided_slice %36 {offsets = [48, 0], sizes = [8, 128], strides = [1, 1]} : vector<64x128xf32> to vector<8x128xf32>
    %268 = arith.addf %265, %267 : vector<8x128xf32>
    %269 = math.tanh %268 : vector<8x128xf32>
    %cst_80 = arith.constant 5.000000e-01 : f32
    %270 = vector.broadcast %cst_80 : f32 to vector<8x128xf32>
    %271 = arith.mulf %270, %269 : vector<8x128xf32>
    %cst_81 = arith.constant 5.000000e-01 : f32
    %272 = vector.broadcast %cst_81 : f32 to vector<8x128xf32>
    %273 = arith.addf %271, %272 : vector<8x128xf32>
    %274 = vector.extract_strided_slice %273 {offsets = [0, 0], sizes = [8, 32], strides = [1, 1]} : vector<8x128xf32> to vector<8x32xf32>
    %275 = vector.extract_strided_slice %273 {offsets = [0, 32], sizes = [8, 32], strides = [1, 1]} : vector<8x128xf32> to vector<8x32xf32>
    %276 = vector.extract_strided_slice %269 {offsets = [0, 64], sizes = [8, 32], strides = [1, 1]} : vector<8x128xf32> to vector<8x32xf32>
    %277 = vector.extract_strided_slice %273 {offsets = [0, 96], sizes = [8, 32], strides = [1, 1]} : vector<8x128xf32> to vector<8x32xf32>
    %278 = arith.mulf %275, %244 : vector<8x32xf32>
    %279 = arith.mulf %274, %276 : vector<8x32xf32>
    %280 = arith.addf %278, %279 : vector<8x32xf32>
    %281 = math.tanh %280 : vector<8x32xf32>
    %282 = arith.mulf %277, %281 : vector<8x32xf32>
    %cst_82 = arith.constant dense<0.000000e+00> : vector<8x128xf32>
    %283 = tpu.matmul %282, %42, %cst_82 {dimension_numbers = #tpu.dot_dimension_numbers<[1], [0], [0], [1], [0, 0, 1, 1], [], []>} : vector<8x32xf32>, vector<32x128xf32>, vector<8x128xf32> -> vector<8x128xf32>
    %284 = arith.addf %266, %283 : vector<8x128xf32>
    %285 = vector.broadcast %44 : vector<1x128xf32> to vector<8x128xf32>
    %286 = arith.addf %284, %285 : vector<8x128xf32>
    %287 = math.tanh %286 : vector<8x128xf32>
    %cst_83 = arith.constant 5.000000e-01 : f32
    %288 = vector.broadcast %cst_83 : f32 to vector<8x128xf32>
    %289 = arith.mulf %288, %287 : vector<8x128xf32>
    %cst_84 = arith.constant 5.000000e-01 : f32
    %290 = vector.broadcast %cst_84 : f32 to vector<8x128xf32>
    %291 = arith.addf %289, %290 : vector<8x128xf32>
    %292 = vector.extract_strided_slice %291 {offsets = [0, 0], sizes = [8, 32], strides = [1, 1]} : vector<8x128xf32> to vector<8x32xf32>
    %293 = vector.extract_strided_slice %291 {offsets = [0, 32], sizes = [8, 32], strides = [1, 1]} : vector<8x128xf32> to vector<8x32xf32>
    %294 = vector.extract_strided_slice %287 {offsets = [0, 64], sizes = [8, 32], strides = [1, 1]} : vector<8x128xf32> to vector<8x32xf32>
    %295 = vector.extract_strided_slice %291 {offsets = [0, 96], sizes = [8, 32], strides = [1, 1]} : vector<8x128xf32> to vector<8x32xf32>
    %296 = arith.mulf %293, %262 : vector<8x32xf32>
    %297 = arith.mulf %292, %294 : vector<8x32xf32>
    %298 = arith.addf %296, %297 : vector<8x32xf32>
    %299 = math.tanh %298 : vector<8x32xf32>
    %300 = arith.mulf %295, %299 : vector<8x32xf32>
    %cst_85 = arith.constant dense<0.000000e+00> : vector<8x128xf32>
    %301 = tpu.matmul %282, %38, %cst_85 {dimension_numbers = #tpu.dot_dimension_numbers<[1], [0], [0], [1], [0, 0, 1, 1], [], []>} : vector<8x32xf32>, vector<32x128xf32>, vector<8x128xf32> -> vector<8x128xf32>
    %cst_86 = arith.constant dense<0.000000e+00> : vector<8x128xf32>
    %302 = tpu.matmul %300, %40, %cst_86 {dimension_numbers = #tpu.dot_dimension_numbers<[1], [0], [0], [1], [0, 0, 1, 1], [], []>} : vector<8x32xf32>, vector<32x128xf32>, vector<8x128xf32> -> vector<8x128xf32>
    %303 = vector.extract_strided_slice %36 {offsets = [56, 0], sizes = [8, 128], strides = [1, 1]} : vector<64x128xf32> to vector<8x128xf32>
    %304 = arith.addf %301, %303 : vector<8x128xf32>
    %305 = math.tanh %304 : vector<8x128xf32>
    %cst_87 = arith.constant 5.000000e-01 : f32
    %306 = vector.broadcast %cst_87 : f32 to vector<8x128xf32>
    %307 = arith.mulf %306, %305 : vector<8x128xf32>
    %cst_88 = arith.constant 5.000000e-01 : f32
    %308 = vector.broadcast %cst_88 : f32 to vector<8x128xf32>
    %309 = arith.addf %307, %308 : vector<8x128xf32>
    %310 = vector.extract_strided_slice %309 {offsets = [0, 0], sizes = [8, 32], strides = [1, 1]} : vector<8x128xf32> to vector<8x32xf32>
    %311 = vector.extract_strided_slice %309 {offsets = [0, 32], sizes = [8, 32], strides = [1, 1]} : vector<8x128xf32> to vector<8x32xf32>
    %312 = vector.extract_strided_slice %305 {offsets = [0, 64], sizes = [8, 32], strides = [1, 1]} : vector<8x128xf32> to vector<8x32xf32>
    %313 = vector.extract_strided_slice %309 {offsets = [0, 96], sizes = [8, 32], strides = [1, 1]} : vector<8x128xf32> to vector<8x32xf32>
    %314 = arith.mulf %311, %280 : vector<8x32xf32>
    %315 = arith.mulf %310, %312 : vector<8x32xf32>
    %316 = arith.addf %314, %315 : vector<8x32xf32>
    %317 = math.tanh %316 : vector<8x32xf32>
    %318 = arith.mulf %313, %317 : vector<8x32xf32>
    %cst_89 = arith.constant dense<0.000000e+00> : vector<8x128xf32>
    %319 = tpu.matmul %318, %42, %cst_89 {dimension_numbers = #tpu.dot_dimension_numbers<[1], [0], [0], [1], [0, 0, 1, 1], [], []>} : vector<8x32xf32>, vector<32x128xf32>, vector<8x128xf32> -> vector<8x128xf32>
    %320 = arith.addf %302, %319 : vector<8x128xf32>
    %321 = vector.broadcast %44 : vector<1x128xf32> to vector<8x128xf32>
    %322 = arith.addf %320, %321 : vector<8x128xf32>
    %323 = math.tanh %322 : vector<8x128xf32>
    %cst_90 = arith.constant 5.000000e-01 : f32
    %324 = vector.broadcast %cst_90 : f32 to vector<8x128xf32>
    %325 = arith.mulf %324, %323 : vector<8x128xf32>
    %cst_91 = arith.constant 5.000000e-01 : f32
    %326 = vector.broadcast %cst_91 : f32 to vector<8x128xf32>
    %327 = arith.addf %325, %326 : vector<8x128xf32>
    %328 = vector.extract_strided_slice %327 {offsets = [0, 0], sizes = [8, 32], strides = [1, 1]} : vector<8x128xf32> to vector<8x32xf32>
    %329 = vector.extract_strided_slice %327 {offsets = [0, 32], sizes = [8, 32], strides = [1, 1]} : vector<8x128xf32> to vector<8x32xf32>
    %330 = vector.extract_strided_slice %323 {offsets = [0, 64], sizes = [8, 32], strides = [1, 1]} : vector<8x128xf32> to vector<8x32xf32>
    %331 = vector.extract_strided_slice %327 {offsets = [0, 96], sizes = [8, 32], strides = [1, 1]} : vector<8x128xf32> to vector<8x32xf32>
    %332 = arith.mulf %329, %298 : vector<8x32xf32>
    %333 = arith.mulf %328, %330 : vector<8x32xf32>
    %334 = arith.addf %332, %333 : vector<8x32xf32>
    %335 = math.tanh %334 : vector<8x32xf32>
    %336 = arith.mulf %331, %335 : vector<8x32xf32>
    %337 = tpu.concatenate %84, %120, %156, %192, %228, %264, %300, %336 in 1 : vector<8x32xf32>, vector<8x32xf32>, vector<8x32xf32>, vector<8x32xf32>, vector<8x32xf32>, vector<8x32xf32>, vector<8x32xf32>, vector<8x32xf32> -> vector<8x256xf32>
    %c0_92 = arith.constant 0 : index
    %c0_93 = arith.constant 0 : index
    %338 = vector.load %arg9[%c0_92, %c0_93] : memref<256x128xf32, #tpu.memory_space<vmem>>, vector<256x128xf32>
    %cst_94 = arith.constant dense<0.000000e+00> : vector<8x128xf32>
    %339 = tpu.matmul %337, %338, %cst_94 {dimension_numbers = #tpu.dot_dimension_numbers<[1], [0], [0], [1], [0, 0, 1, 1], [], []>} : vector<8x256xf32>, vector<256x128xf32>, vector<8x128xf32> -> vector<8x128xf32>
    %c0_95 = arith.constant 0 : index
    %c0_96 = arith.constant 0 : index
    %340 = vector.load %arg10[%c0_95, %c0_96] : memref<1x128xf32, #tpu.memory_space<vmem>>, vector<1x128xf32>
    %341 = vector.broadcast %340 : vector<1x128xf32> to vector<8x128xf32>
    %342 = arith.addf %339, %341 : vector<8x128xf32>
    %c0_97 = arith.constant 0 : index
    %c0_98 = arith.constant 0 : index
    %343 = vector.load %arg11[%c0_97, %c0_98] : memref<8x128xf32, #tpu.memory_space<vmem>>, vector<8x128xf32>
    tpu.vector_store %arg11[%c0_97, %c0_98], %342 {strides = array<i32>} : memref<8x128xf32, #tpu.memory_space<vmem>>, vector<8x128xf32>,
    return
  }
  func.func @transform_0(%arg0: i32) -> (i32, i32) {
    %c0_i32 = arith.constant 0 : i32
    %c0_i32_0 = arith.constant 0 : i32
    %c0_i32_1 = arith.constant 0 : i32
    return %c0_i32, %c0_i32_0 : i32, i32
  }
  func.func @transform_1(%arg0: i32) -> (i32, i32) {
    %c0_i32 = arith.constant 0 : i32
    %c0_i32_0 = arith.constant 0 : i32
    %c0_i32_1 = arith.constant 0 : i32
    return %c0_i32, %c0_i32_0 : i32, i32
  }
  func.func @transform_2(%arg0: i32) -> (i32, i32) {
    %c0_i32 = arith.constant 0 : i32
    %c0_i32_0 = arith.constant 0 : i32
    %c0_i32_1 = arith.constant 0 : i32
    return %c0_i32, %c0_i32_0 : i32, i32
  }
  func.func @transform_3(%arg0: i32) -> (i32, i32) {
    %c0_i32 = arith.constant 0 : i32
    %c0_i32_0 = arith.constant 0 : i32
    %c0_i32_1 = arith.constant 0 : i32
    return %c0_i32, %c0_i32_0 : i32, i32
  }
  func.func @transform_4(%arg0: i32) -> (i32, i32) {
    %c0_i32 = arith.constant 0 : i32
    %c0_i32_0 = arith.constant 0 : i32
    %c0_i32_1 = arith.constant 0 : i32
    return %c0_i32, %c0_i32_0 : i32, i32
  }
  func.func @transform_5(%arg0: i32) -> (i32, i32, i32) {
    %c0_i32 = arith.constant 0 : i32
    %c0_i32_0 = arith.constant 0 : i32
    %c0_i32_1 = arith.constant 0 : i32
    %c0_i32_2 = arith.constant 0 : i32
    return %c0_i32, %c0_i32_0, %c0_i32_1 : i32, i32, i32
  }
  func.func @transform_6(%arg0: i32) -> (i32, i32, i32) {
    %c0_i32 = arith.constant 0 : i32
    %c0_i32_0 = arith.constant 0 : i32
    %c0_i32_1 = arith.constant 0 : i32
    %c0_i32_2 = arith.constant 0 : i32
    return %c0_i32, %c0_i32_0, %c0_i32_1 : i32, i32, i32
  }
  func.func @transform_7(%arg0: i32) -> (i32, i32, i32) {
    %c0_i32 = arith.constant 0 : i32
    %c0_i32_0 = arith.constant 0 : i32
    %c0_i32_1 = arith.constant 0 : i32
    %c0_i32_2 = arith.constant 0 : i32
    return %c0_i32, %c0_i32_0, %c0_i32_1 : i32, i32, i32
  }
  func.func @transform_8(%arg0: i32) -> (i32, i32) {
    %c0_i32 = arith.constant 0 : i32
    %c0_i32_0 = arith.constant 0 : i32
    %c0_i32_1 = arith.constant 0 : i32
    return %c0_i32, %c0_i32_0 : i32, i32
  }
  func.func @transform_9(%arg0: i32) -> (i32, i32) {
    %c0_i32 = arith.constant 0 : i32
    %c0_i32_0 = arith.constant 0 : i32
    %c0_i32_1 = arith.constant 0 : i32
    return %c0_i32, %c0_i32_0 : i32, i32
  }
  func.func @transform_10(%arg0: i32) -> (i32, i32) {
    %c0_i32 = arith.constant 0 : i32
    %c0_i32_0 = arith.constant 0 : i32
    %c0_i32_1 = arith.constant 0 : i32
    return %c0_i32, %c0_i32_0 : i32, i32
  }
}

</mosaic_0001>

<llo_original>
// kernel: tpu_custom_call.1
$region0: #{tpu_custom_call.1}
  #allocation0 [shape = 'u32[]', space=smem, size = 0x4, offset = 0x4, fixed_abs, tag = 'smem constant byte address 0x4 - core index']
  #allocation1 [shape = 'u32[144,128]{1,0:T(1,128)}', space=vmem, size = 0x12000, scoped, tag = 'internal scratch']
  %s0 = inlined_call_operand.vmem [shape: f32[64,32], index: 0, kind: input, shape index: {}]
  %s1 = inlined_call_operand.vmem [shape: f32[1,32], index: 1, kind: input, shape index: {}]
  %s2 = inlined_call_operand.vmem [shape: f32[1,32], index: 2, kind: input, shape index: {}]
  %s3 = inlined_call_operand.vmem [shape: f32[32,32], index: 3, kind: input, shape index: {}]
  %s4 = inlined_call_operand.vmem [shape: f32[1,32], index: 4, kind: input, shape index: {}]
  %s5 = inlined_call_operand.vmem [shape: f32[2,32,128], index: 5, kind: input, shape index: {}]
  %s6 = inlined_call_operand.hbm [shape: f32[2,32,128], index: 6, kind: input, shape index: {}]
  %s7 = inlined_call_operand.vmem [shape: f32[2,1,128], index: 7, kind: input, shape index: {}]
  %s8 = inlined_call_operand.hbm [shape: f32[256,128], index: 8, kind: input, shape index: {}]
  %s9 = inlined_call_operand.vmem [shape: f32[1,128], index: 9, kind: input, shape index: {}]
  %s10 = inlined_call_operand.hbm [shape: f32[8,128], index: 10, kind: output, shape index: {}]
  %s11 = sld [smem:[#allocation0]]
  $region58: #{tpu_custom_call.1} parent=0
    _
  %s13 = ssub.s32 1, %s11
  %s14 = scalar_select 0, %s13, %s11
  $region1: #{tpu_custom_call.1} parent=0
    #allocation2 [shape = 'u8[32768]{0}', space=vmem, size = 0x8000, scoped, tag = 'input window, operand 6, single buffered']
    #allocation3 [shape = 's32[1]{0}', space=sflag, size = 0x4, scoped, tag = 'scoped memory for tpu_custom_call.1']
    #allocation4 [shape = 's32[1]{0}', space=sflag, size = 0x4, scoped, tag = 'scoped memory for tpu_custom_call.1']
    #allocation5 [shape = 'u8[131072]{0}', space=vmem, size = 0x20000, scoped, tag = 'input window, operand 8, single buffered']
    #allocation6 [shape = 's32[1]{0}', space=sflag, size = 0x4, scoped, tag = 'scoped memory for tpu_custom_call.1']
    #allocation7 [shape = 'u8[4096]{0}', space=vmem, size = 0x1000, scoped, tag = 'output window, operand 0, single buffered']
    %15 = vsyncpa [#allocation3], 0
    %16 = vsyncpa [#allocation6], 0
    %17 = vsyncpa [#allocation4], 0
    // Predicated region
    $region2: #{tpu_custom_call.1} parent=1 // pred_check
      _
    $region3: #{tpu_custom_call.1} parent=1 // pred_check_branch
      %19 = sbr.rel (0) target = $region5
    $region4: #{tpu_custom_call.1} parent=1 // pred_region
      _
    $region5: #{tpu_custom_call.1} parent=1 // pred_fallthru
      _
    // Predicated region
    $region6: #{tpu_custom_call.1} parent=1 // pred_check
      _
    $region7: #{tpu_custom_call.1} parent=1 // pred_check_branch
      %21 = sbr.rel (0) target = $region9
    $region8: #{tpu_custom_call.1} parent=1 // pred_region
      _
    $region9: #{tpu_custom_call.1} parent=1 // pred_fallthru
      _
    // Predicated region
    $region10: #{tpu_custom_call.1} parent=1 // pred_check
      _
    $region11: #{tpu_custom_call.1} parent=1 // pred_check_branch
      %23 = sbr.rel (0) target = $region13
    $region12: #{tpu_custom_call.1} parent=1 // pred_region
      _
    $region13: #{tpu_custom_call.1} parent=1 // pred_fallthru
      _
    // Predicated region
    $region14: #{tpu_custom_call.1} parent=1 // pred_check
      _
    $region15: #{tpu_custom_call.1} parent=1 // pred_check_branch
      %25 = sbr.rel (0) target = $region17
    $region16: #{tpu_custom_call.1} parent=1 // pred_region
      _
    $region17: #{tpu_custom_call.1} parent=1 // pred_fallthru
      _
    // Predicated region
    $region18: #{tpu_custom_call.1} parent=1 // pred_check
      _
    $region19: #{tpu_custom_call.1} parent=1 // pred_check_branch
      %27 = sbr.rel (0) target = $region21
    $region20: #{tpu_custom_call.1} parent=1 // pred_region
      _
    $region21: #{tpu_custom_call.1} parent=1 // pred_fallthru
      _
    // Predicated region
    $region22: #{tpu_custom_call.1} parent=1 // pred_check
      _
    $region23: #{tpu_custom_call.1} parent=1 // pred_check_branch
      %29 = sbr.rel (0) target = $region25
    $region24: #{tpu_custom_call.1} parent=1 // pred_region
      _
    $region25: #{tpu_custom_call.1} parent=1 // pred_fallthru
      _
    // Predicated region
    $region26: #{tpu_custom_call.1} parent=1 // pred_check
      _
    $region27: #{tpu_custom_call.1} parent=1 // pred_check_branch
      %31 = sbr.rel (0) target = $region29
    $region28: #{tpu_custom_call.1} parent=1 // pred_region
      %s33 = ssub.s32 1024, 1024
      %34 = vsyncadd [#allocation3], %s33
      %s35 = sshll.u32 [#allocation2], 4
      %s36 = int_to_ptr.vmem [resolvable:$true] %s35
      %41 = dma.hbm_to_vmem [thread:$0]  %s6, 1024, %s36, [#allocation3], 128, 128, 8
    $region29: #{tpu_custom_call.1} parent=1 // pred_fallthru
      _
    // Predicated region
    $region30: #{tpu_custom_call.1} parent=1 // pred_check
      _
    $region31: #{tpu_custom_call.1} parent=1 // pred_check_branch
      %43 = sbr.rel (0) target = $region33
    $region32: #{tpu_custom_call.1} parent=1 // pred_region
      _
    $region33: #{tpu_custom_call.1} parent=1 // pred_fallthru
      _
    // Predicated region
    $region34: #{tpu_custom_call.1} parent=1 // pred_check
      _
    $region35: #{tpu_custom_call.1} parent=1 // pred_check_branch
      %45 = sbr.rel (0) target = $region37
    $region36: #{tpu_custom_call.1} parent=1 // pred_region
      %s47 = ssub.s32 4096, 4096
      %48 = vsyncadd [#allocation6], %s47
      %s49 = sshll.u32 [#allocation5], 4
      %s50 = int_to_ptr.vmem [resolvable:$true] %s49
      %55 = dma.hbm_to_vmem [thread:$0]  %s8, 4096, %s50, [#allocation6], 128, 128, 8
    $region37: #{tpu_custom_call.1} parent=1 // pred_fallthru
      _
    // Predicated region
    $region38: #{tpu_custom_call.1} parent=1 // pred_check
      _
    $region39: #{tpu_custom_call.1} parent=1 // pred_check_branch
      %57 = sbr.rel (0) target = $region41
    $region40: #{tpu_custom_call.1} parent=1 // pred_region
      _
    $region41: #{tpu_custom_call.1} parent=1 // pred_fallthru
      _
    // Predicated region
    $region42: #{tpu_custom_call.1} parent=1 // pred_check
      _
    $region43: #{tpu_custom_call.1} parent=1 // pred_check_branch
      %59 = sbr.rel (0) target = $region45
    $region44: #{tpu_custom_call.1} parent=1 // pred_region
      %60 = dma.done [#allocation3], 1024
    $region45: #{tpu_custom_call.1} parent=1 // pred_fallthru
      _
    // Predicated region
    $region46: #{tpu_custom_call.1} parent=1 // pred_check
      _
    $region47: #{tpu_custom_call.1} parent=1 // pred_check_branch
      %62 = sbr.rel (0) target = $region49
    $region48: #{tpu_custom_call.1} parent=1 // pred_region
      %63 = dma.done [#allocation6], 4096
    $region49: #{tpu_custom_call.1} parent=1 // pred_fallthru
      _
    %v64 = vld [vmem:[%s0] sm:$0xff]
    %v65 = vld [vmem:[%s0 + $0x8] sm:$0xff]
    %v66 = vld [vmem:[%s0 + $0x10] sm:$0xff]
    %v67 = vld [vmem:[%s0 + $0x18] sm:$0xff]
    %v68 = vld [vmem:[%s0 + $0x20] sm:$0xff]
    %v69 = vld [vmem:[%s0 + $0x28] sm:$0xff]
    %v70 = vld [vmem:[%s0 + $0x30] sm:$0xff]
    %v71 = vld [vmem:[%s0 + $0x38] sm:$0xff]
    %v72 = vld [vmem:[%s1] sm:$0x1]
    %v73 = vld [vmem:[%s2] sm:$0x1]
    %vm74 = vcmask 261120
    %v75 = vsel %vm74, %v64, 0.0
    %76 = vadd.xlane.f32.xlu0 %v75
    %v77 = vpop.xlane.xlu0 %76
    %v78 = vsel %vm74, %v65, 0.0
    %79 = vadd.xlane.f32.xlu0 %v78
    %v80 = vpop.xlane.xlu0 %79
    %v81 = vsel %vm74, %v66, 0.0
    %82 = vadd.xlane.f32.xlu0 %v81
    %v83 = vpop.xlane.xlu0 %82
    %v84 = vsel %vm74, %v67, 0.0
    %85 = vadd.xlane.f32.xlu0 %v84
    %v86 = vpop.xlane.xlu0 %85
    %v87 = vsel %vm74, %v68, 0.0
    %88 = vadd.xlane.f32.xlu0 %v87
    %v89 = vpop.xlane.xlu0 %88
    %v90 = vsel %vm74, %v69, 0.0
    %91 = vadd.xlane.f32.xlu0 %v90
    %v92 = vpop.xlane.xlu0 %91
    %v93 = vsel %vm74, %v70, 0.0
    %94 = vadd.xlane.f32.xlu0 %v93
    %v95 = vpop.xlane.xlu0 %94
    %v96 = vsel %vm74, %v71, 0.0
    %97 = vadd.xlane.f32.xlu0 %v96
    %v98 = vpop.xlane.xlu0 %97
    %v99 = vrcp.pop 32.0
    %v100 = vmul.f32 %v77, %v99
    %v101 = vmul.f32 %v80, %v99
    %v102 = vmul.f32 %v83, %v99
    %v103 = vmul.f32 %v86, %v99
    %v104 = vmul.f32 %v89, %v99
    %v105 = vmul.f32 %v92, %v99
    %v106 = vmul.f32 %v95, %v99
    %v107 = vmul.f32 %v98, %v99
    %v108 = vsub.f32 %v64, %v100
    %v109 = vsub.f32 %v65, %v101
    %v110 = vsub.f32 %v66, %v102
    %v111 = vsub.f32 %v67, %v103
    %v112 = vsub.f32 %v68, %v104
    %v113 = vsub.f32 %v69, %v105
    %v114 = vsub.f32 %v70, %v106
    %v115 = vsub.f32 %v71, %v107
    %v116 = vmul.f32 %v108, %v108
    %v117 = vmul.f32 %v109, %v109
    %v118 = vmul.f32 %v110, %v110
    %v119 = vmul.f32 %v111, %v111
    %v120 = vmul.f32 %v112, %v112
    %v121 = vmul.f32 %v113, %v113
    %v122 = vmul.f32 %v114, %v114
    %v123 = vmul.f32 %v115, %v115
    %v124 = vsel %vm74, %v116, 0.0
    %125 = vadd.xlane.f32.xlu0 %v124
    %v126 = vpop.xlane.xlu0 %125
    %v127 = vsel %vm74, %v117, 0.0
    %128 = vadd.xlane.f32.xlu0 %v127
    %v129 = vpop.xlane.xlu0 %128
    %v130 = vsel %vm74, %v118, 0.0
    %131 = vadd.xlane.f32.xlu0 %v130
    %v132 = vpop.xlane.xlu0 %131
    %v133 = vsel %vm74, %v119, 0.0
    %134 = vadd.xlane.f32.xlu0 %v133
    %v135 = vpop.xlane.xlu0 %134
    %v136 = vsel %vm74, %v120, 0.0
    %137 = vadd.xlane.f32.xlu0 %v136
    %v138 = vpop.xlane.xlu0 %137
    %v139 = vsel %vm74, %v121, 0.0
    %140 = vadd.xlane.f32.xlu0 %v139
    %v141 = vpop.xlane.xlu0 %140
    %v142 = vsel %vm74, %v122, 0.0
    %143 = vadd.xlane.f32.xlu0 %v142
    %v144 = vpop.xlane.xlu0 %143
    %v145 = vsel %vm74, %v123, 0.0
    %146 = vadd.xlane.f32.xlu0 %v145
    %v147 = vpop.xlane.xlu0 %146
    %v148 = vmul.f32 %v126, %v99
    %v149 = vmul.f32 %v129, %v99
    %v150 = vmul.f32 %v132, %v99
    %v151 = vmul.f32 %v135, %v99
    %v152 = vmul.f32 %v138, %v99
    %v153 = vmul.f32 %v141, %v99
    %v154 = vmul.f32 %v144, %v99
    %v155 = vmul.f32 %v147, %v99
    %v156 = vadd.f32 %v148, 1e-05
    %v157 = vadd.f32 %v149, 1e-05
    %v158 = vadd.f32 %v150, 1e-05
    %v159 = vadd.f32 %v151, 1e-05
    %v160 = vadd.f32 %v152, 1e-05
    %v161 = vadd.f32 %v153, 1e-05
    %v162 = vadd.f32 %v154, 1e-05
    %v163 = vadd.f32 %v155, 1e-05
    %v164 = vrsqrt.pop %v156
    %v165 = vrsqrt.pop %v157
    %v166 = vrsqrt.pop %v158
    %v167 = vrsqrt.pop %v159
    %v168 = vrsqrt.pop %v160
    %v169 = vrsqrt.pop %v161
    %v170 = vrsqrt.pop %v162
    %v171 = vrsqrt.pop %v163
    %v172 = vmul.f32 %v108, %v164
    %v173 = vmul.f32 %v109, %v165
    %v174 = vmul.f32 %v110, %v166
    %v175 = vmul.f32 %v111, %v167
    %v176 = vmul.f32 %v112, %v168
    %v177 = vmul.f32 %v113, %v169
    %v178 = vmul.f32 %v114, %v170
    %v179 = vmul.f32 %v115, %v171
    %v181 = vlaneseq
    %v182 = vshrl.u32 %v181, 7
    %v183 = vsub.s32 0, %v182
    %v184 = vrot.slane %v72, %v183
    %v186 = vmul.f32 %v172, %v184
    %v187 = vmul.f32 %v173, %v184
    %v188 = vmul.f32 %v174, %v184
    %v189 = vmul.f32 %v175, %v184
    %v190 = vmul.f32 %v176, %v184
    %v191 = vmul.f32 %v177, %v184
    %v192 = vmul.f32 %v178, %v184
    %v193 = vmul.f32 %v179, %v184
    %v195 = vlaneseq
    %v196 = vshrl.u32 %v195, 7
    %v197 = vsub.s32 0, %v196
    %v198 = vrot.slane %v73, %v197
    %v200 = vadd.f32 %v186, %v198
    %v201 = vadd.f32 %v187, %v198
    %v202 = vadd.f32 %v188, %v198
    %v203 = vadd.f32 %v189, %v198
    %v204 = vadd.f32 %v190, %v198
    %v205 = vadd.f32 %v191, %v198
    %v206 = vadd.f32 %v192, %v198
    %v207 = vadd.f32 %v193, %v198
    %v208 = vld [vmem:[%s3] sm:$0xff]
    %v209 = vld [vmem:[%s3 + $0x8] sm:$0xff]
    %v210 = vld [vmem:[%s3 + $0x10] sm:$0xff]
    %v211 = vld [vmem:[%s3 + $0x18] sm:$0xff]
    %v212 = vld [vmem:[%s4] sm:$0x1]
    %v214 = vlaneseq
    %v215 = vshrl.u32 %v214, 7
    %v216 = vsub.s32 0, %v215
    %v217 = vrot.slane %v212, %v216
    %v220 = vsel %vm74, %v200, 0
    %v223 = vsel %vm74, %v201, 0
    %v226 = vsel %vm74, %v202, 0
    %v229 = vsel %vm74, %v203, 0
    %v232 = vsel %vm74, %v204, 0
    %v235 = vsel %vm74, %v205, 0
    %v238 = vsel %vm74, %v206, 0
    %v241 = vsel %vm74, %v207, 0
    %243 = vmatprep.subr.mxu0 0.0
    %244 = vmatpush1.msra.mxu0 %v208
    %245 = vmatprep.subr.mxu0 0.0
    %246 = vmatpush1.msra.mxu0 %v209
    %247 = vmatprep.subr.mxu0 0.0
    %248 = vmatpush1.msra.mxu0 %v210
    %249 = vmatprep.subr.mxu0 0.0
    %250 = vmatpush1.msra.mxu0 %v211
    %251 = vmatprep.subr.mxu0 0.0
    %252 = vmatpush1.msra.mxu0 0.0
    %253 = vmatprep.subr.mxu0 0.0
    %254 = vmatpush1.msra.mxu0 0.0
    %255 = vmatprep.subr.mxu0 0.0
    %256 = vmatpush1.msra.mxu0 0.0
    %257 = vmatprep.subr.mxu0 0.0
    %258 = vmatpush1.msra.mxu0 0.0
    %259 = vmatprep.subr.mxu0 0.0
    %260 = vmatpush1.msra.mxu0 0.0
    %261 = vmatprep.subr.mxu0 0.0
    %262 = vmatpush1.msra.mxu0 0.0
    %263 = vmatprep.subr.mxu0 0.0
    %264 = vmatpush1.msra.mxu0 0.0
    %265 = vmatprep.subr.mxu0 0.0
    %266 = vmatpush1.msra.mxu0 0.0
    %267 = vmatprep.subr.mxu0 0.0
    %268 = vmatpush1.msra.mxu0 0.0
    %269 = vmatprep.subr.mxu0 0.0
    %270 = vmatpush1.msra.mxu0 0.0
    %271 = vmatprep.subr.mxu0 0.0
    %272 = vmatpush1.msra.mxu0 0.0
    %273 = vmatprep.subr.mxu0 0.0
    %274 = vmatpush1.msra.mxu0 0.0
    %275 = vmatprep.subr.mxu0 0.0
    %276 = vmatpush1.msra.mxu0 0.0
    %277 = vmatprep.subr.mxu0 0.0
    %278 = vmatpush1.msra.mxu0 0.0
    %279 = vmatprep.subr.mxu0 0.0
    %280 = vmatpush1.msra.mxu0 0.0
    %281 = vmatprep.subr.mxu0 0.0
    %282 = vmatpush1.msra.mxu0 0.0
    %283 = vmatprep.subr.mxu0 0.0
    %284 = vmatpush1.msra.mxu0 0.0
    %285 = vmatprep.subr.mxu0 0.0
    %286 = vmatpush1.msra.mxu0 0.0
    %287 = vmatprep.subr.mxu0 0.0
    %288 = vmatpush1.msra.mxu0 0.0
    %289 = vmatprep.subr.mxu0 0.0
    %290 = vmatpush1.msra.mxu0 0.0
    %291 = vmatprep.subr.mxu0 0.0
    %292 = vmatpush1.msra.mxu0 0.0
    %293 = vmatprep.subr.mxu0 0.0
    %294 = vmatpush1.msra.mxu0 0.0
    %295 = vmatprep.subr.mxu0 0.0
    %296 = vmatpush1.msra.mxu0 0.0
    %297 = vmatprep.subr.mxu0 0.0
    %298 = vmatpush1.msra.mxu0 0.0
    %299 = vmatprep.subr.mxu0 0.0
    %300 = vmatpush1.msra.mxu0 0.0
    %301 = vmatprep.subr.mxu0 0.0
    %302 = vmatpush1.msra.mxu0 0.0
    %303 = vmatprep.subr.mxu0 0.0
    %304 = vmatpush1.msra.mxu0 0.0
    %305 = vmatprep.subr.mxu0 0.0
    %306 = vmatpush1.msra.mxu0 0.0
    %307 = vmatprep.mubr.f32.mxu0 0.0
    %308 = vmatmul.mubr.f32.gmra.mrb[0].mxu0 %v220
    %v309 = vpop.f32.mrb[0].mxu0
    %v310 = vadd.f32 %v217, %v309
    %v311 = vpop.f32.mrb[0].mxu0
    %312 = vmatprep.mubr.f32.mxu0 0.0
    %313 = vmatmul.mubr.f32.gmra.mrb[0].mxu0 %v223
    %v314 = vpop.f32.mrb[0].mxu0
    %v315 = vadd.f32 %v217, %v314
    %v316 = vpop.f32.mrb[0].mxu0
    %317 = vmatprep.mubr.f32.mxu0 0.0
    %318 = vmatmul.mubr.f32.gmra.mrb[0].mxu0 %v226
    %v319 = vpop.f32.mrb[0].mxu0
    %v320 = vadd.f32 %v217, %v319
    %v321 = vpop.f32.mrb[0].mxu0
    %322 = vmatprep.mubr.f32.mxu0 0.0
    %323 = vmatmul.mubr.f32.gmra.mrb[0].mxu0 %v229
    %v324 = vpop.f32.mrb[0].mxu0
    %v325 = vadd.f32 %v217, %v324
    %v326 = vpop.f32.mrb[0].mxu0
    %327 = vmatprep.mubr.f32.mxu0 0.0
    %328 = vmatmul.mubr.f32.gmra.mrb[0].mxu0 %v232
    %v329 = vpop.f32.mrb[0].mxu0
    %v330 = vadd.f32 %v217, %v329
    %v331 = vpop.f32.mrb[0].mxu0
    %332 = vmatprep.mubr.f32.mxu0 0.0
    %333 = vmatmul.mubr.f32.gmra.mrb[0].mxu0 %v235
    %v334 = vpop.f32.mrb[0].mxu0
    %v335 = vadd.f32 %v217, %v334
    %v336 = vpop.f32.mrb[0].mxu0
    %337 = vmatprep.mubr.f32.mxu0 0.0
    %338 = vmatmul.mubr.f32.gmra.mrb[0].mxu0 %v238
    %v339 = vpop.f32.mrb[0].mxu0
    %v340 = vadd.f32 %v217, %v339
    %v341 = vpop.f32.mrb[0].mxu0
    %342 = vmatprep.mubr.f32.mxu0 0.0
    %343 = vmatmul.mubr.f32.gmra.mrb[0].mxu0 %v241
    %v344 = vpop.f32.mrb[0].mxu0
    %v345 = vadd.f32 %v217, %v344
    %v346 = vpop.f32.mrb[0].mxu0
    %347 = vdwg.mxu0
    %v348 = vld [vmem:[#allocation2] sm:$0xff]
    %v349 = vld [vmem:[#allocation2 + $0x8] sm:$0xff]
    %v350 = vld [vmem:[#allocation2 + $0x10] sm:$0xff]
    %v351 = vld [vmem:[#allocation2 + $0x18] sm:$0xff]
    %v352 = vld [vmem:[%s7] sm:$0x1]
    %v354 = vlaneseq
    %v355 = vshrl.u32 %v354, 7
    %v356 = vsub.s32 0, %v355
    %v357 = vrot.slane %v352, %v356
    %v360 = vsel %vm74, %v310, 0
    %v363 = vsel %vm74, %v315, 0
    %v366 = vsel %vm74, %v320, 0
    %v369 = vsel %vm74, %v325, 0
    %v372 = vsel %vm74, %v330, 0
    %v375 = vsel %vm74, %v335, 0
    %v378 = vsel %vm74, %v340, 0
    %v381 = vsel %vm74, %v345, 0
    %383 = vmatprep.subr.mxu0 0.0
    %384 = vmatpush1.msra.mxu0 %v348
    %385 = vmatprep.subr.mxu0 0.0
    %386 = vmatpush1.msra.mxu0 %v349
    %387 = vmatprep.subr.mxu0 0.0
    %388 = vmatpush1.msra.mxu0 %v350
    %389 = vmatprep.subr.mxu0 0.0
    %390 = vmatpush1.msra.mxu0 %v351
    %391 = vmatprep.subr.mxu0 0.0
    %392 = vmatpush1.msra.mxu0 0.0
    %393 = vmatprep.subr.mxu0 0.0
    %394 = vmatpush1.msra.mxu0 0.0
    %395 = vmatprep.subr.mxu0 0.0
    %396 = vmatpush1.msra.mxu0 0.0
    %397 = vmatprep.subr.mxu0 0.0
    %398 = vmatpush1.msra.mxu0 0.0
    %399 = vmatprep.subr.mxu0 0.0
    %400 = vmatpush1.msra.mxu0 0.0
    %401 = vmatprep.subr.mxu0 0.0
    %402 = vmatpush1.msra.mxu0 0.0
    %403 = vmatprep.subr.mxu0 0.0
    %404 = vmatpush1.msra.mxu0 0.0
    %405 = vmatprep.subr.mxu0 0.0
    %406 = vmatpush1.msra.mxu0 0.0
    %407 = vmatprep.subr.mxu0 0.0
    %408 = vmatpush1.msra.mxu0 0.0
    %409 = vmatprep.subr.mxu0 0.0
    %410 = vmatpush1.msra.mxu0 0.0
    %411 = vmatprep.subr.mxu0 0.0
    %412 = vmatpush1.msra.mxu0 0.0
    %413 = vmatprep.subr.mxu0 0.0
    %414 = vmatpush1.msra.mxu0 0.0
    %415 = vmatprep.subr.mxu0 0.0
    %416 = vmatpush1.msra.mxu0 0.0
    %417 = vmatprep.subr.mxu0 0.0
    %418 = vmatpush1.msra.mxu0 0.0
    %419 = vmatprep.subr.mxu0 0.0
    %420 = vmatpush1.msra.mxu0 0.0
    %421 = vmatprep.subr.mxu0 0.0
    %422 = vmatpush1.msra.mxu0 0.0
    %423 = vmatprep.subr.mxu0 0.0
    %424 = vmatpush1.msra.mxu0 0.0
    %425 = vmatprep.subr.mxu0 0.0
    %426 = vmatpush1.msra.mxu0 0.0
    %427 = vmatprep.subr.mxu0 0.0
    %428 = vmatpush1.msra.mxu0 0.0
    %429 = vmatprep.subr.mxu0 0.0
    %430 = vmatpush1.msra.mxu0 0.0
    %431 = vmatprep.subr.mxu0 0.0
    %432 = vmatpush1.msra.mxu0 0.0
    %433 = vmatprep.subr.mxu0 0.0
    %434 = vmatpush1.msra.mxu0 0.0
    %435 = vmatprep.subr.mxu0 0.0
    %436 = vmatpush1.msra.mxu0 0.0
    %437 = vmatprep.subr.mxu0 0.0
    %438 = vmatpush1.msra.mxu0 0.0
    %439 = vmatprep.subr.mxu0 0.0
    %440 = vmatpush1.msra.mxu0 0.0
    %441 = vmatprep.subr.mxu0 0.0
    %442 = vmatpush1.msra.mxu0 0.0
    %443 = vmatprep.subr.mxu0 0.0
    %444 = vmatpush1.msra.mxu0 0.0
    %445 = vmatprep.subr.mxu0 0.0
    %446 = vmatpush1.msra.mxu0 0.0
    %447 = vmatprep.mubr.f32.mxu0 0.0
    %448 = vmatmul.mubr.f32.gmra.mrb[0].mxu0 %v360
    %v449 = vpop.f32.mrb[0].mxu0
    %v450 = vadd.f32 %v357, %v449
    %v451 = vpop.f32.mrb[0].mxu0
    %452 = vmatprep.mubr.f32.mxu0 0.0
    %453 = vmatmul.mubr.f32.gmra.mrb[0].mxu0 %v363
    %v454 = vpop.f32.mrb[0].mxu0
    %v455 = vadd.f32 %v357, %v454
    %v456 = vpop.f32.mrb[0].mxu0
    %457 = vmatprep.mubr.f32.mxu0 0.0
    %458 = vmatmul.mubr.f32.gmra.mrb[0].mxu0 %v366
    %v459 = vpop.f32.mrb[0].mxu0
    %v460 = vadd.f32 %v357, %v459
    %v461 = vpop.f32.mrb[0].mxu0
    %462 = vmatprep.mubr.f32.mxu0 0.0
    %463 = vmatmul.mubr.f32.gmra.mrb[0].mxu0 %v369
    %v464 = vpop.f32.mrb[0].mxu0
    %v465 = vadd.f32 %v357, %v464
    %v466 = vpop.f32.mrb[0].mxu0
    %467 = vmatprep.mubr.f32.mxu0 0.0
    %468 = vmatmul.mubr.f32.gmra.mrb[0].mxu0 %v372
    %v469 = vpop.f32.mrb[0].mxu0
    %v470 = vadd.f32 %v357, %v469
    %v471 = vpop.f32.mrb[0].mxu0
    %472 = vmatprep.mubr.f32.mxu0 0.0
    %473 = vmatmul.mubr.f32.gmra.mrb[0].mxu0 %v375
    %v474 = vpop.f32.mrb[0].mxu0
    %v475 = vadd.f32 %v357, %v474
    %v476 = vpop.f32.mrb[0].mxu0
    %477 = vmatprep.mubr.f32.mxu0 0.0
    %478 = vmatmul.mubr.f32.gmra.mrb[0].mxu0 %v378
    %v479 = vpop.f32.mrb[0].mxu0
    %v480 = vadd.f32 %v357, %v479
    %v481 = vpop.f32.mrb[0].mxu0
    %482 = vmatprep.mubr.f32.mxu0 0.0
    %483 = vmatmul.mubr.f32.gmra.mrb[0].mxu0 %v381
    %v484 = vpop.f32.mrb[0].mxu0
    %v485 = vadd.f32 %v357, %v484
    %v486 = vpop.f32.mrb[0].mxu0
    %487 = vdwg.mxu0
    %v488 = vld [vmem:[%s5] sm:$0xff]
    %v489 = vld [vmem:[%s5 + $0x8] sm:$0xff]
    %v490 = vld [vmem:[%s5 + $0x10] sm:$0xff]
    %v491 = vld [vmem:[%s5 + $0x18] sm:$0xff]
    %s492 = scalar_lea.vmem %s5, 32
    %v493 = vld [vmem:[%s492] sm:$0xff]
    %v494 = vld [vmem:[%s492 + $0x8] sm:$0xff]
    %v495 = vld [vmem:[%s492 + $0x10] sm:$0xff]
    %v496 = vld [vmem:[%s492 + $0x18] sm:$0xff]
    %s497 = scalar_lea.vmem [#allocation2], 32
    %v498 = vld [vmem:[%s497] sm:$0xff]
    %v499 = vld [vmem:[%s497 + $0x8] sm:$0xff]
    %v500 = vld [vmem:[%s497 + $0x10] sm:$0xff]
    %v501 = vld [vmem:[%s497 + $0x18] sm:$0xff]
    %s502 = scalar_lea.vmem %s7, 1
    %v503 = vld [vmem:[%s502] sm:$0x1]
    %v505 = vsel %vm74, 0.0, 0
    %507 = vmatprep.subr.mxu0 0.0
    %508 = vmatpush1.msra.mxu0 %v488
    %509 = vmatprep.subr.mxu0 0.0
    %510 = vmatpush1.msra.mxu0 %v489
    %511 = vmatprep.subr.mxu0 0.0
    %512 = vmatpush1.msra.mxu0 %v490
    %513 = vmatprep.subr.mxu0 0.0
    %514 = vmatpush1.msra.mxu0 %v491
    %515 = vmatprep.subr.mxu0 0.0
    %516 = vmatpush1.msra.mxu0 0.0
    %517 = vmatprep.subr.mxu0 0.0
    %518 = vmatpush1.msra.mxu0 0.0
    %519 = vmatprep.subr.mxu0 0.0
    %520 = vmatpush1.msra.mxu0 0.0
    %521 = vmatprep.subr.mxu0 0.0
    %522 = vmatpush1.msra.mxu0 0.0
    %523 = vmatprep.subr.mxu0 0.0
    %524 = vmatpush1.msra.mxu0 0.0
    %525 = vmatprep.subr.mxu0 0.0
    %526 = vmatpush1.msra.mxu0 0.0
    %527 = vmatprep.subr.mxu0 0.0
    %528 = vmatpush1.msra.mxu0 0.0
    %529 = vmatprep.subr.mxu0 0.0
    %530 = vmatpush1.msra.mxu0 0.0
    %531 = vmatprep.subr.mxu0 0.0
    %532 = vmatpush1.msra.mxu0 0.0
    %533 = vmatprep.subr.mxu0 0.0
    %534 = vmatpush1.msra.mxu0 0.0
    %535 = vmatprep.subr.mxu0 0.0
    %536 = vmatpush1.msra.mxu0 0.0
    %537 = vmatprep.subr.mxu0 0.0
    %538 = vmatpush1.msra.mxu0 0.0
    %539 = vmatprep.subr.mxu0 0.0
    %540 = vmatpush1.msra.mxu0 0.0
    %541 = vmatprep.subr.mxu0 0.0
    %542 = vmatpush1.msra.mxu0 0.0
    %543 = vmatprep.subr.mxu0 0.0
    %544 = vmatpush1.msra.mxu0 0.0
    %545 = vmatprep.subr.mxu0 0.0
    %546 = vmatpush1.msra.mxu0 0.0
    %547 = vmatprep.subr.mxu0 0.0
    %548 = vmatpush1.msra.mxu0 0.0
    %549 = vmatprep.subr.mxu0 0.0
    %550 = vmatpush1.msra.mxu0 0.0
    %551 = vmatprep.subr.mxu0 0.0
    %552 = vmatpush1.msra.mxu0 0.0
    %553 = vmatprep.subr.mxu0 0.0
    %554 = vmatpush1.msra.mxu0 0.0
    %555 = vmatprep.subr.mxu0 0.0
    %556 = vmatpush1.msra.mxu0 0.0
    %557 = vmatprep.subr.mxu0 0.0
    %558 = vmatpush1.msra.mxu0 0.0
    %559 = vmatprep.subr.mxu0 0.0
    %560 = vmatpush1.msra.mxu0 0.0
    %561 = vmatprep.subr.mxu0 0.0
    %562 = vmatpush1.msra.mxu0 0.0
    %563 = vmatprep.subr.mxu0 0.0
    %564 = vmatpush1.msra.mxu0 0.0
    %565 = vmatprep.subr.mxu0 0.0
    %566 = vmatpush1.msra.mxu0 0.0
    %567 = vmatprep.subr.mxu0 0.0
    %568 = vmatpush1.msra.mxu0 0.0
    %569 = vmatprep.subr.mxu0 0.0
    %570 = vmatpush1.msra.mxu0 0.0
    %571 = vmatprep.mubr.f32.mxu0 0.0
    %572 = vmatmul.mubr.f32.gmra.mrb[0].mxu0 %v505
    %v573 = vpop.f32.mrb[0].mxu0
    %v574 = vadd.f32 %v450, %v573
    %v575 = vpop.f32.mrb[0].mxu0
    %576 = vdwg.mxu0
    %v577 = vtanh.pop %v574
    %v578 = vmul.f32 %v577, 0.5
    %v579 = vadd.f32 %v578, 0.5
    %v580 = vmul.f32 %v579, 0.0
    %582 = vrot.lane.b32.xlu0 %v577, 64
    %v583 = vpop.permute.xlu0 %582
    %v585 = vmul.f32 %v579, %v583
    %587 = vrot.lane.b32.xlu0 %v585, 32
    %v588 = vpop.permute.xlu0 %587
    %v590 = vadd.f32 %v580, %v588
    %v591 = vtanh.pop %v590
    %593 = vrot.lane.b32.xlu0 %v591, 64
    %v594 = vpop.permute.xlu0 %593
    %v596 = vmul.f32 %v579, %v594
    %598 = vrot.lane.b32.xlu0 %v596, 32
    %v599 = vpop.permute.xlu0 %598
    %v600 = vsel %vm74, %v599, 0
    %602 = vmatprep.subr.mxu0 0.0
    %603 = vmatpush1.msra.mxu0 %v498
    %604 = vmatprep.subr.mxu0 0.0
    %605 = vmatpush1.msra.mxu0 %v499
    %606 = vmatprep.subr.mxu0 0.0
    %607 = vmatpush1.msra.mxu0 %v500
    %608 = vmatprep.subr.mxu0 0.0
    %609 = vmatpush1.msra.mxu0 %v501
    %610 = vmatprep.subr.mxu0 0.0
    %611 = vmatpush1.msra.mxu0 0.0
    %612 = vmatprep.subr.mxu0 0.0
    %613 = vmatpush1.msra.mxu0 0.0
    %614 = vmatprep.subr.mxu0 0.0
    %615 = vmatpush1.msra.mxu0 0.0
    %616 = vmatprep.subr.mxu0 0.0
    %617 = vmatpush1.msra.mxu0 0.0
    %618 = vmatprep.subr.mxu0 0.0
    %619 = vmatpush1.msra.mxu0 0.0
    %620 = vmatprep.subr.mxu0 0.0
    %621 = vmatpush1.msra.mxu0 0.0
    %622 = vmatprep.subr.mxu0 0.0
    %623 = vmatpush1.msra.mxu0 0.0
    %624 = vmatprep.subr.mxu0 0.0
    %625 = vmatpush1.msra.mxu0 0.0
    %626 = vmatprep.subr.mxu0 0.0
    %627 = vmatpush1.msra.mxu0 0.0
    %628 = vmatprep.subr.mxu0 0.0
    %629 = vmatpush1.msra.mxu0 0.0
    %630 = vmatprep.subr.mxu0 0.0
    %631 = vmatpush1.msra.mxu0 0.0
    %632 = vmatprep.subr.mxu0 0.0
    %633 = vmatpush1.msra.mxu0 0.0
    %634 = vmatprep.subr.mxu0 0.0
    %635 = vmatpush1.msra.mxu0 0.0
    %636 = vmatprep.subr.mxu0 0.0
    %637 = vmatpush1.msra.mxu0 0.0
    %638 = vmatprep.subr.mxu0 0.0
    %639 = vmatpush1.msra.mxu0 0.0
    %640 = vmatprep.subr.mxu0 0.0
    %641 = vmatpush1.msra.mxu0 0.0
    %642 = vmatprep.subr.mxu0 0.0
    %643 = vmatpush1.msra.mxu0 0.0
    %644 = vmatprep.subr.mxu0 0.0
    %645 = vmatpush1.msra.mxu0 0.0
    %646 = vmatprep.subr.mxu0 0.0
    %647 = vmatpush1.msra.mxu0 0.0
    %648 = vmatprep.subr.mxu0 0.0
    %649 = vmatpush1.msra.mxu0 0.0
    %650 = vmatprep.subr.mxu0 0.0
    %651 = vmatpush1.msra.mxu0 0.0
    %652 = vmatprep.subr.mxu0 0.0
    %653 = vmatpush1.msra.mxu0 0.0
    %654 = vmatprep.subr.mxu0 0.0
    %655 = vmatpush1.msra.mxu0 0.0
    %656 = vmatprep.subr.mxu0 0.0
    %657 = vmatpush1.msra.mxu0 0.0
    %658 = vmatprep.subr.mxu0 0.0
    %659 = vmatpush1.msra.mxu0 0.0
    %660 = vmatprep.subr.mxu0 0.0
    %661 = vmatpush1.msra.mxu0 0.0
    %662 = vmatprep.subr.mxu0 0.0
    %663 = vmatpush1.msra.mxu0 0.0
    %664 = vmatprep.subr.mxu0 0.0
    %665 = vmatpush1.msra.mxu0 0.0
    %666 = vmatprep.mubr.f32.mxu0 0.0
    %667 = vmatmul.mubr.f32.gmra.mrb[0].mxu0 %v600
    %v668 = vpop.f32.mrb[0].mxu0
    %v669 = vadd.f32 0.0, %v668
    %v670 = vpop.f32.mrb[0].mxu0
    %671 = vdwg.mxu0
    %672 = vmatprep.subr.mxu0 0.0
    %673 = vmatpush1.msra.mxu0 %v493
    %674 = vmatprep.subr.mxu0 0.0
    %675 = vmatpush1.msra.mxu0 %v494
    %676 = vmatprep.subr.mxu0 0.0
    %677 = vmatpush1.msra.mxu0 %v495
    %678 = vmatprep.subr.mxu0 0.0
    %679 = vmatpush1.msra.mxu0 %v496
    %680 = vmatprep.subr.mxu0 0.0
    %681 = vmatpush1.msra.mxu0 0.0
    %682 = vmatprep.subr.mxu0 0.0
    %683 = vmatpush1.msra.mxu0 0.0
    %684 = vmatprep.subr.mxu0 0.0
    %685 = vmatpush1.msra.mxu0 0.0
    %686 = vmatprep.subr.mxu0 0.0
    %687 = vmatpush1.msra.mxu0 0.0
    %688 = vmatprep.subr.mxu0 0.0
    %689 = vmatpush1.msra.mxu0 0.0
    %690 = vmatprep.subr.mxu0 0.0
    %691 = vmatpush1.msra.mxu0 0.0
    %692 = vmatprep.subr.mxu0 0.0
    %693 = vmatpush1.msra.mxu0 0.0
    %694 = vmatprep.subr.mxu0 0.0
    %695 = vmatpush1.msra.mxu0 0.0
    %696 = vmatprep.subr.mxu0 0.0
    %697 = vmatpush1.msra.mxu0 0.0
    %698 = vmatprep.subr.mxu0 0.0
    %699 = vmatpush1.msra.mxu0 0.0
    %700 = vmatprep.subr.mxu0 0.0
    %701 = vmatpush1.msra.mxu0 0.0
    %702 = vmatprep.subr.mxu0 0.0
    %703 = vmatpush1.msra.mxu0 0.0
    %704 = vmatprep.subr.mxu0 0.0
    %705 = vmatpush1.msra.mxu0 0.0
    %706 = vmatprep.subr.mxu0 0.0
    %707 = vmatpush1.msra.mxu0 0.0
    %708 = vmatprep.subr.mxu0 0.0
    %709 = vmatpush1.msra.mxu0 0.0
    %710 = vmatprep.subr.mxu0 0.0
    %711 = vmatpush1.msra.mxu0 0.0
    %712 = vmatprep.subr.mxu0 0.0
    %713 = vmatpush1.msra.mxu0 0.0
    %714 = vmatprep.subr.mxu0 0.0
    %715 = vmatpush1.msra.mxu0 0.0
    %716 = vmatprep.subr.mxu0 0.0
    %717 = vmatpush1.msra.mxu0 0.0
    %718 = vmatprep.subr.mxu0 0.0
    %719 = vmatpush1.msra.mxu0 0.0
    %720 = vmatprep.subr.mxu0 0.0
    %721 = vmatpush1.msra.mxu0 0.0
    %722 = vmatprep.subr.mxu0 0.0
    %723 = vmatpush1.msra.mxu0 0.0
    %724 = vmatprep.subr.mxu0 0.0
    %725 = vmatpush1.msra.mxu0 0.0
    %726 = vmatprep.subr.mxu0 0.0
    %727 = vmatpush1.msra.mxu0 0.0
    %728 = vmatprep.subr.mxu0 0.0
    %729 = vmatpush1.msra.mxu0 0.0
    %730 = vmatprep.subr.mxu0 0.0
    %731 = vmatpush1.msra.mxu0 0.0
    %732 = vmatprep.subr.mxu0 0.0
    %733 = vmatpush1.msra.mxu0 0.0
    %734 = vmatprep.subr.mxu0 0.0
    %735 = vmatpush1.msra.mxu0 0.0
    %736 = vmatprep.mubr.f32.mxu0 0.0
    %737 = vmatmul.mubr.f32.gmra.mrb[0].mxu0 %v505
    %v738 = vpop.f32.mrb[0].mxu0
    %v739 = vadd.f32 %v669, %v738
    %v740 = vpop.f32.mrb[0].mxu0
    %741 = vdwg.mxu0
    %v743 = vlaneseq
    %v744 = vshrl.u32 %v743, 7
    %v745 = vsub.s32 0, %v744
    %v746 = vrot.slane %v503, %v745
    %v748 = vadd.f32 %v739, %v746
    %v749 = vtanh.pop %v748
    %v750 = vmul.f32 %v749, 0.5
    %v751 = vadd.f32 %v750, 0.5
    %v752 = vmul.f32 %v751, 0.0
    %754 = vrot.lane.b32.xlu0 %v749, 64
    %v755 = vpop.permute.xlu0 %754
    %v757 = vmul.f32 %v751, %v755
    %759 = vrot.lane.b32.xlu0 %v757, 32
    %v760 = vpop.permute.xlu0 %759
    %v762 = vadd.f32 %v752, %v760
    %v763 = vtanh.pop %v762
    %765 = vrot.lane.b32.xlu0 %v763, 64
    %v766 = vpop.permute.xlu0 %765
    %v768 = vmul.f32 %v751, %v766
    %769 = vmatprep.subr.mxu0 0.0
    %770 = vmatpush1.msra.mxu0 %v488
    %771 = vmatprep.subr.mxu0 0.0
    %772 = vmatpush1.msra.mxu0 %v489
    %773 = vmatprep.subr.mxu0 0.0
    %774 = vmatpush1.msra.mxu0 %v490
    %775 = vmatprep.subr.mxu0 0.0
    %776 = vmatpush1.msra.mxu0 %v491
    %777 = vmatprep.subr.mxu0 0.0
    %778 = vmatpush1.msra.mxu0 0.0
    %779 = vmatprep.subr.mxu0 0.0
    %780 = vmatpush1.msra.mxu0 0.0
    %781 = vmatprep.subr.mxu0 0.0
    %782 = vmatpush1.msra.mxu0 0.0
    %783 = vmatprep.subr.mxu0 0.0
    %784 = vmatpush1.msra.mxu0 0.0
    %785 = vmatprep.subr.mxu0 0.0
    %786 = vmatpush1.msra.mxu0 0.0
    %787 = vmatprep.subr.mxu0 0.0
    %788 = vmatpush1.msra.mxu0 0.0
    %789 = vmatprep.subr.mxu0 0.0
    %790 = vmatpush1.msra.mxu0 0.0
    %791 = vmatprep.subr.mxu0 0.0
    %792 = vmatpush1.msra.mxu0 0.0
    %793 = vmatprep.subr.mxu0 0.0
    %794 = vmatpush1.msra.mxu0 0.0
    %795 = vmatprep.subr.mxu0 0.0
    %796 = vmatpush1.msra.mxu0 0.0
    %797 = vmatprep.subr.mxu0 0.0
    %798 = vmatpush1.msra.mxu0 0.0
    %799 = vmatprep.subr.mxu0 0.0
    %800 = vmatpush1.msra.mxu0 0.0
    %801 = vmatprep.subr.mxu0 0.0
    %802 = vmatpush1.msra.mxu0 0.0
    %803 = vmatprep.subr.mxu0 0.0
    %804 = vmatpush1.msra.mxu0 0.0
    %805 = vmatprep.subr.mxu0 0.0
    %806 = vmatpush1.msra.mxu0 0.0
    %807 = vmatprep.subr.mxu0 0.0
    %808 = vmatpush1.msra.mxu0 0.0
    %809 = vmatprep.subr.mxu0 0.0
    %810 = vmatpush1.msra.mxu0 0.0
    %811 = vmatprep.subr.mxu0 0.0
    %812 = vmatpush1.msra.mxu0 0.0
    %813 = vmatprep.subr.mxu0 0.0
    %814 = vmatpush1.msra.mxu0 0.0
    %815 = vmatprep.subr.mxu0 0.0
    %816 = vmatpush1.msra.mxu0 0.0
    %817 = vmatprep.subr.mxu0 0.0
    %818 = vmatpush1.msra.mxu0 0.0
    %819 = vmatprep.subr.mxu0 0.0
    %820 = vmatpush1.msra.mxu0 0.0
    %821 = vmatprep.subr.mxu0 0.0
    %822 = vmatpush1.msra.mxu0 0.0
    %823 = vmatprep.subr.mxu0 0.0
    %824 = vmatpush1.msra.mxu0 0.0
    %825 = vmatprep.subr.mxu0 0.0
    %826 = vmatpush1.msra.mxu0 0.0
    %827 = vmatprep.subr.mxu0 0.0
    %828 = vmatpush1.msra.mxu0 0.0
    %829 = vmatprep.subr.mxu0 0.0
    %830 = vmatpush1.msra.mxu0 0.0
    %831 = vmatprep.subr.mxu0 0.0
    %832 = vmatpush1.msra.mxu0 0.0
    %833 = vmatprep.mubr.f32.mxu0 0.0
    %834 = vmatmul.mubr.f32.gmra.mrb[0].mxu0 %v600
    %v835 = vpop.f32.mrb[0].mxu0
    %v836 = vadd.f32 %v455, %v835
    %v837 = vpop.f32.mrb[0].mxu0
    %838 = vdwg.mxu0
    %v839 = vtanh.pop %v836
    %v840 = vmul.f32 %v839, 0.5
    %v841 = vadd.f32 %v840, 0.5
    %v842 = vmul.f32 %v841, %v590
    %844 = vrot.lane.b32.xlu0 %v839, 64
    %v845 = vpop.permute.xlu0 %844
    %v847 = vmul.f32 %v841, %v845
    %849 = vrot.lane.b32.xlu0 %v847, 32
    %v850 = vpop.permute.xlu0 %849
    %v852 = vadd.f32 %v842, %v850
    %v853 = vtanh.pop %v852
    %855 = vrot.lane.b32.xlu0 %v853, 64
    %v856 = vpop.permute.xlu0 %855
    %v858 = vmul.f32 %v841, %v856
    %860 = vrot.lane.b32.xlu0 %v858, 32
    %v861 = vpop.permute.xlu0 %860
    %v862 = vsel %vm74, %v861, 0
    %864 = vmatprep.subr.mxu0 0.0
    %865 = vmatpush1.msra.mxu0 %v498
    %866 = vmatprep.subr.mxu0 0.0
    %867 = vmatpush1.msra.mxu0 %v499
    %868 = vmatprep.subr.mxu0 0.0
    %869 = vmatpush1.msra.mxu0 %v500
    %870 = vmatprep.subr.mxu0 0.0
    %871 = vmatpush1.msra.mxu0 %v501
    %872 = vmatprep.subr.mxu0 0.0
    %873 = vmatpush1.msra.mxu0 0.0
    %874 = vmatprep.subr.mxu0 0.0
    %875 = vmatpush1.msra.mxu0 0.0
    %876 = vmatprep.subr.mxu0 0.0
    %877 = vmatpush1.msra.mxu0 0.0
    %878 = vmatprep.subr.mxu0 0.0
    %879 = vmatpush1.msra.mxu0 0.0
    %880 = vmatprep.subr.mxu0 0.0
    %881 = vmatpush1.msra.mxu0 0.0
    %882 = vmatprep.subr.mxu0 0.0
    %883 = vmatpush1.msra.mxu0 0.0
    %884 = vmatprep.subr.mxu0 0.0
    %885 = vmatpush1.msra.mxu0 0.0
    %886 = vmatprep.subr.mxu0 0.0
    %887 = vmatpush1.msra.mxu0 0.0
    %888 = vmatprep.subr.mxu0 0.0
    %889 = vmatpush1.msra.mxu0 0.0
    %890 = vmatprep.subr.mxu0 0.0
    %891 = vmatpush1.msra.mxu0 0.0
    %892 = vmatprep.subr.mxu0 0.0
    %893 = vmatpush1.msra.mxu0 0.0
    %894 = vmatprep.subr.mxu0 0.0
    %895 = vmatpush1.msra.mxu0 0.0
    %896 = vmatprep.subr.mxu0 0.0
    %897 = vmatpush1.msra.mxu0 0.0
    %898 = vmatprep.subr.mxu0 0.0
    %899 = vmatpush1.msra.mxu0 0.0
    %900 = vmatprep.subr.mxu0 0.0
    %901 = vmatpush1.msra.mxu0 0.0
    %902 = vmatprep.subr.mxu0 0.0
    %903 = vmatpush1.msra.mxu0 0.0
    %904 = vmatprep.subr.mxu0 0.0
    %905 = vmatpush1.msra.mxu0 0.0
    %906 = vmatprep.subr.mxu0 0.0
    %907 = vmatpush1.msra.mxu0 0.0
    %908 = vmatprep.subr.mxu0 0.0
    %909 = vmatpush1.msra.mxu0 0.0
    %910 = vmatprep.subr.mxu0 0.0
    %911 = vmatpush1.msra.mxu0 0.0
    %912 = vmatprep.subr.mxu0 0.0
    %913 = vmatpush1.msra.mxu0 0.0
    %914 = vmatprep.subr.mxu0 0.0
    %915 = vmatpush1.msra.mxu0 0.0
    %916 = vmatprep.subr.mxu0 0.0
    %917 = vmatpush1.msra.mxu0 0.0
    %918 = vmatprep.subr.mxu0 0.0
    %919 = vmatpush1.msra.mxu0 0.0
    %920 = vmatprep.subr.mxu0 0.0
    %921 = vmatpush1.msra.mxu0 0.0
    %922 = vmatprep.subr.mxu0 0.0
    %923 = vmatpush1.msra.mxu0 0.0
    %924 = vmatprep.subr.mxu0 0.0
    %925 = vmatpush1.msra.mxu0 0.0
    %926 = vmatprep.subr.mxu0 0.0
    %927 = vmatpush1.msra.mxu0 0.0
    %928 = vmatprep.mubr.f32.mxu0 0.0
    %929 = vmatmul.mubr.f32.gmra.mrb[0].mxu0 %v862
    %v930 = vpop.f32.mrb[0].mxu0
    %v931 = vadd.f32 0.0, %v930
    %v932 = vpop.f32.mrb[0].mxu0
    %933 = vdwg.mxu0
    %935 = vrot.lane.b32.xlu0 %v768, 32
    %v936 = vpop.permute.xlu0 %935
    %v937 = vsel %vm74, %v936, 0
    %939 = vmatprep.subr.mxu0 0.0
    %940 = vmatpush1.msra.mxu0 %v493
    %941 = vmatprep.subr.mxu0 0.0
    %942 = vmatpush1.msra.mxu0 %v494
    %943 = vmatprep.subr.mxu0 0.0
    %944 = vmatpush1.msra.mxu0 %v495
    %945 = vmatprep.subr.mxu0 0.0
    %946 = vmatpush1.msra.mxu0 %v496
    %947 = vmatprep.subr.mxu0 0.0
    %948 = vmatpush1.msra.mxu0 0.0
    %949 = vmatprep.subr.mxu0 0.0
    %950 = vmatpush1.msra.mxu0 0.0
    %951 = vmatprep.subr.mxu0 0.0
    %952 = vmatpush1.msra.mxu0 0.0
    %953 = vmatprep.subr.mxu0 0.0
    %954 = vmatpush1.msra.mxu0 0.0
    %955 = vmatprep.subr.mxu0 0.0
    %956 = vmatpush1.msra.mxu0 0.0
    %957 = vmatprep.subr.mxu0 0.0
    %958 = vmatpush1.msra.mxu0 0.0
    %959 = vmatprep.subr.mxu0 0.0
    %960 = vmatpush1.msra.mxu0 0.0
    %961 = vmatprep.subr.mxu0 0.0
    %962 = vmatpush1.msra.mxu0 0.0
    %963 = vmatprep.subr.mxu0 0.0
    %964 = vmatpush1.msra.mxu0 0.0
    %965 = vmatprep.subr.mxu0 0.0
    %966 = vmatpush1.msra.mxu0 0.0
    %967 = vmatprep.subr.mxu0 0.0
    %968 = vmatpush1.msra.mxu0 0.0
    %969 = vmatprep.subr.mxu0 0.0
    %970 = vmatpush1.msra.mxu0 0.0
    %971 = vmatprep.subr.mxu0 0.0
    %972 = vmatpush1.msra.mxu0 0.0
    %973 = vmatprep.subr.mxu0 0.0
    %974 = vmatpush1.msra.mxu0 0.0
    %975 = vmatprep.subr.mxu0 0.0
    %976 = vmatpush1.msra.mxu0 0.0
    %977 = vmatprep.subr.mxu0 0.0
    %978 = vmatpush1.msra.mxu0 0.0
    %979 = vmatprep.subr.mxu0 0.0
    %980 = vmatpush1.msra.mxu0 0.0
    %981 = vmatprep.subr.mxu0 0.0
    %982 = vmatpush1.msra.mxu0 0.0
    %983 = vmatprep.subr.mxu0 0.0
    %984 = vmatpush1.msra.mxu0 0.0
    %985 = vmatprep.subr.mxu0 0.0
    %986 = vmatpush1.msra.mxu0 0.0
    %987 = vmatprep.subr.mxu0 0.0
    %988 = vmatpush1.msra.mxu0 0.0
    %989 = vmatprep.subr.mxu0 0.0
    %990 = vmatpush1.msra.mxu0 0.0
    %991 = vmatprep.subr.mxu0 0.0
    %992 = vmatpush1.msra.mxu0 0.0
    %993 = vmatprep.subr.mxu0 0.0
    %994 = vmatpush1.msra.mxu0 0.0
    %995 = vmatprep.subr.mxu0 0.0
    %996 = vmatpush1.msra.mxu0 0.0
    %997 = vmatprep.subr.mxu0 0.0
    %998 = vmatpush1.msra.mxu0 0.0
    %999 = vmatprep.subr.mxu0 0.0
    %1000 = vmatpush1.msra.mxu0 0.0
    %1001 = vmatprep.subr.mxu0 0.0
    %1002 = vmatpush1.msra.mxu0 0.0
    %1003 = vmatprep.mubr.f32.mxu0 0.0
    %1004 = vmatmul.mubr.f32.gmra.mrb[0].mxu0 %v937
    %v1005 = vpop.f32.mrb[0].mxu0
    %v1006 = vadd.f32 %v931, %v1005
    %v1007 = vpop.f32.mrb[0].mxu0
    %1008 = vdwg.mxu0
    %v1009 = vadd.f32 %v1006, %v746
    %v1010 = vtanh.pop %v1009
    %v1011 = vmul.f32 %v1010, 0.5
    %v1012 = vadd.f32 %v1011, 0.5
    %v1013 = vmul.f32 %v1012, %v762
    %1015 = vrot.lane.b32.xlu0 %v1010, 64
    %v1016 = vpop.permute.xlu0 %1015
    %v1018 = vmul.f32 %v1012, %v1016
    %1020 = vrot.lane.b32.xlu0 %v1018, 32
    %v1021 = vpop.permute.xlu0 %1020
    %v1023 = vadd.f32 %v1013, %v1021
    %v1024 = vtanh.pop %v1023
    %1026 = vrot.lane.b32.xlu0 %v1024, 64
    %v1027 = vpop.permute.xlu0 %1026
    %v1029 = vmul.f32 %v1012, %v1027
    %1030 = vmatprep.subr.mxu0 0.0
    %1031 = vmatpush1.msra.mxu0 %v488
    %1032 = vmatprep.subr.mxu0 0.0
    %1033 = vmatpush1.msra.mxu0 %v489
    %1034 = vmatprep.subr.mxu0 0.0
    %1035 = vmatpush1.msra.mxu0 %v490
    %1036 = vmatprep.subr.mxu0 0.0
    %1037 = vmatpush1.msra.mxu0 %v491
    %1038 = vmatprep.subr.mxu0 0.0
    %1039 = vmatpush1.msra.mxu0 0.0
    %1040 = vmatprep.subr.mxu0 0.0
    %1041 = vmatpush1.msra.mxu0 0.0
    %1042 = vmatprep.subr.mxu0 0.0
    %1043 = vmatpush1.msra.mxu0 0.0
    %1044 = vmatprep.subr.mxu0 0.0
    %1045 = vmatpush1.msra.mxu0 0.0
    %1046 = vmatprep.subr.mxu0 0.0
    %1047 = vmatpush1.msra.mxu0 0.0
    %1048 = vmatprep.subr.mxu0 0.0
    %1049 = vmatpush1.msra.mxu0 0.0
    %1050 = vmatprep.subr.mxu0 0.0
    %1051 = vmatpush1.msra.mxu0 0.0
    %1052 = vmatprep.subr.mxu0 0.0
    %1053 = vmatpush1.msra.mxu0 0.0
    %1054 = vmatprep.subr.mxu0 0.0
    %1055 = vmatpush1.msra.mxu0 0.0
    %1056 = vmatprep.subr.mxu0 0.0
    %1057 = vmatpush1.msra.mxu0 0.0
    %1058 = vmatprep.subr.mxu0 0.0
    %1059 = vmatpush1.msra.mxu0 0.0
    %1060 = vmatprep.subr.mxu0 0.0
    %1061 = vmatpush1.msra.mxu0 0.0
    %1062 = vmatprep.subr.mxu0 0.0
    %1063 = vmatpush1.msra.mxu0 0.0
    %1064 = vmatprep.subr.mxu0 0.0
    %1065 = vmatpush1.msra.mxu0 0.0
    %1066 = vmatprep.subr.mxu0 0.0
    %1067 = vmatpush1.msra.mxu0 0.0
    %1068 = vmatprep.subr.mxu0 0.0
    %1069 = vmatpush1.msra.mxu0 0.0
    %1070 = vmatprep.subr.mxu0 0.0
    %1071 = vmatpush1.msra.mxu0 0.0
    %1072 = vmatprep.subr.mxu0 0.0
    %1073 = vmatpush1.msra.mxu0 0.0
    %1074 = vmatprep.subr.mxu0 0.0
    %1075 = vmatpush1.msra.mxu0 0.0
    %1076 = vmatprep.subr.mxu0 0.0
    %1077 = vmatpush1.msra.mxu0 0.0
    %1078 = vmatprep.subr.mxu0 0.0
    %1079 = vmatpush1.msra.mxu0 0.0
    %1080 = vmatprep.subr.mxu0 0.0
    %1081 = vmatpush1.msra.mxu0 0.0
    %1082 = vmatprep.subr.mxu0 0.0
    %1083 = vmatpush1.msra.mxu0 0.0
    %1084 = vmatprep.subr.mxu0 0.0
    %1085 = vmatpush1.msra.mxu0 0.0
    %1086 = vmatprep.subr.mxu0 0.0
    %1087 = vmatpush1.msra.mxu0 0.0
    %1088 = vmatprep.subr.mxu0 0.0
    %1089 = vmatpush1.msra.mxu0 0.0
    %1090 = vmatprep.subr.mxu0 0.0
    %1091 = vmatpush1.msra.mxu0 0.0
    %1092 = vmatprep.subr.mxu0 0.0
    %1093 = vmatpush1.msra.mxu0 0.0
    %1094 = vmatprep.mubr.f32.mxu0 0.0
    %1095 = vmatmul.mubr.f32.gmra.mrb[0].mxu0 %v862
    %v1096 = vpop.f32.mrb[0].mxu0
    %v1097 = vadd.f32 %v460, %v1096
    %v1098 = vpop.f32.mrb[0].mxu0
    %1099 = vdwg.mxu0
    %v1100 = vtanh.pop %v1097
    %v1101 = vmul.f32 %v1100, 0.5
    %v1102 = vadd.f32 %v1101, 0.5
    %v1103 = vmul.f32 %v1102, %v852
    %1105 = vrot.lane.b32.xlu0 %v1100, 64
    %v1106 = vpop.permute.xlu0 %1105
    %v1108 = vmul.f32 %v1102, %v1106
    %1110 = vrot.lane.b32.xlu0 %v1108, 32
    %v1111 = vpop.permute.xlu0 %1110
    %v1113 = vadd.f32 %v1103, %v1111
    %v1114 = vtanh.pop %v1113
    %1116 = vrot.lane.b32.xlu0 %v1114, 64
    %v1117 = vpop.permute.xlu0 %1116
    %v1119 = vmul.f32 %v1102, %v1117
    %1121 = vrot.lane.b32.xlu0 %v1119, 32
    %v1122 = vpop.permute.xlu0 %1121
    %v1123 = vsel %vm74, %v1122, 0
    %1125 = vmatprep.subr.mxu0 0.0
    %1126 = vmatpush1.msra.mxu0 %v498
    %1127 = vmatprep.subr.mxu0 0.0
    %1128 = vmatpush1.msra.mxu0 %v499
    %1129 = vmatprep.subr.mxu0 0.0
    %1130 = vmatpush1.msra.mxu0 %v500
    %1131 = vmatprep.subr.mxu0 0.0
    %1132 = vmatpush1.msra.mxu0 %v501
    %1133 = vmatprep.subr.mxu0 0.0
    %1134 = vmatpush1.msra.mxu0 0.0
    %1135 = vmatprep.subr.mxu0 0.0
    %1136 = vmatpush1.msra.mxu0 0.0
    %1137 = vmatprep.subr.mxu0 0.0
    %1138 = vmatpush1.msra.mxu0 0.0
    %1139 = vmatprep.subr.mxu0 0.0
    %1140 = vmatpush1.msra.mxu0 0.0
    %1141 = vmatprep.subr.mxu0 0.0
    %1142 = vmatpush1.msra.mxu0 0.0
    %1143 = vmatprep.subr.mxu0 0.0
    %1144 = vmatpush1.msra.mxu0 0.0
    %1145 = vmatprep.subr.mxu0 0.0
    %1146 = vmatpush1.msra.mxu0 0.0
    %1147 = vmatprep.subr.mxu0 0.0
    %1148 = vmatpush1.msra.mxu0 0.0
    %1149 = vmatprep.subr.mxu0 0.0
    %1150 = vmatpush1.msra.mxu0 0.0
    %1151 = vmatprep.subr.mxu0 0.0
    %1152 = vmatpush1.msra.mxu0 0.0
    %1153 = vmatprep.subr.mxu0 0.0
    %1154 = vmatpush1.msra.mxu0 0.0
    %1155 = vmatprep.subr.mxu0 0.0
    %1156 = vmatpush1.msra.mxu0 0.0
    %1157 = vmatprep.subr.mxu0 0.0
    %1158 = vmatpush1.msra.mxu0 0.0
    %1159 = vmatprep.subr.mxu0 0.0
    %1160 = vmatpush1.msra.mxu0 0.0
    %1161 = vmatprep.subr.mxu0 0.0
    %1162 = vmatpush1.msra.mxu0 0.0
    %1163 = vmatprep.subr.mxu0 0.0
    %1164 = vmatpush1.msra.mxu0 0.0
    %1165 = vmatprep.subr.mxu0 0.0
    %1166 = vmatpush1.msra.mxu0 0.0
    %1167 = vmatprep.subr.mxu0 0.0
    %1168 = vmatpush1.msra.mxu0 0.0
    %1169 = vmatprep.subr.mxu0 0.0
    %1170 = vmatpush1.msra.mxu0 0.0
    %1171 = vmatprep.subr.mxu0 0.0
    %1172 = vmatpush1.msra.mxu0 0.0
    %1173 = vmatprep.subr.mxu0 0.0
    %1174 = vmatpush1.msra.mxu0 0.0
    %1175 = vmatprep.subr.mxu0 0.0
    %1176 = vmatpush1.msra.mxu0 0.0
    %1177 = vmatprep.subr.mxu0 0.0
    %1178 = vmatpush1.msra.mxu0 0.0
    %1179 = vmatprep.subr.mxu0 0.0
    %1180 = vmatpush1.msra.mxu0 0.0
    %1181 = vmatprep.subr.mxu0 0.0
    %1182 = vmatpush1.msra.mxu0 0.0
    %1183 = vmatprep.subr.mxu0 0.0
    %1184 = vmatpush1.msra.mxu0 0.0
    %1185 = vmatprep.subr.mxu0 0.0
    %1186 = vmatpush1.msra.mxu0 0.0
    %1187 = vmatprep.subr.mxu0 0.0
    %1188 = vmatpush1.msra.mxu0 0.0
    %1189 = vmatprep.mubr.f32.mxu0 0.0
    %1190 = vmatmul.mubr.f32.gmra.mrb[0].mxu0 %v1123
    %v1191 = vpop.f32.mrb[0].mxu0
    %v1192 = vadd.f32 0.0, %v1191
    %v1193 = vpop.f32.mrb[0].mxu0
    %1194 = vdwg.mxu0
    %1196 = vrot.lane.b32.xlu0 %v1029, 32
    %v1197 = vpop.permute.xlu0 %1196
    %v1198 = vsel %vm74, %v1197, 0
    %1200 = vmatprep.subr.mxu0 0.0
    %1201 = vmatpush1.msra.mxu0 %v493
    %1202 = vmatprep.subr.mxu0 0.0
    %1203 = vmatpush1.msra.mxu0 %v494
    %1204 = vmatprep.subr.mxu0 0.0
    %1205 = vmatpush1.msra.mxu0 %v495
    %1206 = vmatprep.subr.mxu0 0.0
    %1207 = vmatpush1.msra.mxu0 %v496
    %1208 = vmatprep.subr.mxu0 0.0
    %1209 = vmatpush1.msra.mxu0 0.0
    %1210 = vmatprep.subr.mxu0 0.0
    %1211 = vmatpush1.msra.mxu0 0.0
    %1212 = vmatprep.subr.mxu0 0.0
    %1213 = vmatpush1.msra.mxu0 0.0
    %1214 = vmatprep.subr.mxu0 0.0
    %1215 = vmatpush1.msra.mxu0 0.0
    %1216 = vmatprep.subr.mxu0 0.0
    %1217 = vmatpush1.msra.mxu0 0.0
    %1218 = vmatprep.subr.mxu0 0.0
    %1219 = vmatpush1.msra.mxu0 0.0
    %1220 = vmatprep.subr.mxu0 0.0
    %1221 = vmatpush1.msra.mxu0 0.0
    %1222 = vmatprep.subr.mxu0 0.0
    %1223 = vmatpush1.msra.mxu0 0.0
    %1224 = vmatprep.subr.mxu0 0.0
    %1225 = vmatpush1.msra.mxu0 0.0
    %1226 = vmatprep.subr.mxu0 0.0
    %1227 = vmatpush1.msra.mxu0 0.0
    %1228 = vmatprep.subr.mxu0 0.0
    %1229 = vmatpush1.msra.mxu0 0.0
    %1230 = vmatprep.subr.mxu0 0.0
    %1231 = vmatpush1.msra.mxu0 0.0
    %1232 = vmatprep.subr.mxu0 0.0
    %1233 = vmatpush1.msra.mxu0 0.0
    %1234 = vmatprep.subr.mxu0 0.0
    %1235 = vmatpush1.msra.mxu0 0.0
    %1236 = vmatprep.subr.mxu0 0.0
    %1237 = vmatpush1.msra.mxu0 0.0
    %1238 = vmatprep.subr.mxu0 0.0
    %1239 = vmatpush1.msra.mxu0 0.0
    %1240 = vmatprep.subr.mxu0 0.0
    %1241 = vmatpush1.msra.mxu0 0.0
    %1242 = vmatprep.subr.mxu0 0.0
    %1243 = vmatpush1.msra.mxu0 0.0
    %1244 = vmatprep.subr.mxu0 0.0
    %1245 = vmatpush1.msra.mxu0 0.0
    %1246 = vmatprep.subr.mxu0 0.0
    %1247 = vmatpush1.msra.mxu0 0.0
    %1248 = vmatprep.subr.mxu0 0.0
    %1249 = vmatpush1.msra.mxu0 0.0
    %1250 = vmatprep.subr.mxu0 0.0
    %1251 = vmatpush1.msra.mxu0 0.0
    %1252 = vmatprep.subr.mxu0 0.0
    %1253 = vmatpush1.msra.mxu0 0.0
    %1254 = vmatprep.subr.mxu0 0.0
    %1255 = vmatpush1.msra.mxu0 0.0
    %1256 = vmatprep.subr.mxu0 0.0
    %1257 = vmatpush1.msra.mxu0 0.0
    %1258 = vmatprep.subr.mxu0 0.0
    %1259 = vmatpush1.msra.mxu0 0.0
    %1260 = vmatprep.subr.mxu0 0.0
    %1261 = vmatpush1.msra.mxu0 0.0
    %1262 = vmatprep.subr.mxu0 0.0
    %1263 = vmatpush1.msra.mxu0 0.0
    %1264 = vmatprep.mubr.f32.mxu0 0.0
    %1265 = vmatmul.mubr.f32.gmra.mrb[0].mxu0 %v1198
    %v1266 = vpop.f32.mrb[0].mxu0
    %v1267 = vadd.f32 %v1192, %v1266
    %v1268 = vpop.f32.mrb[0].mxu0
    %1269 = vdwg.mxu0
    %v1270 = vadd.f32 %v1267, %v746
    %v1271 = vtanh.pop %v1270
    %v1272 = vmul.f32 %v1271, 0.5
    %v1273 = vadd.f32 %v1272, 0.5
    %v1274 = vmul.f32 %v1273, %v1023
    %1276 = vrot.lane.b32.xlu0 %v1271, 64
    %v1277 = vpop.permute.xlu0 %1276
    %v1279 = vmul.f32 %v1273, %v1277
    %1281 = vrot.lane.b32.xlu0 %v1279, 32
    %v1282 = vpop.permute.xlu0 %1281
    %v1284 = vadd.f32 %v1274, %v1282
    %v1285 = vtanh.pop %v1284
    %1287 = vrot.lane.b32.xlu0 %v1285, 64
    %v1288 = vpop.permute.xlu0 %1287
    %v1290 = vmul.f32 %v1273, %v1288
    %1291 = vmatprep.subr.mxu0 0.0
    %1292 = vmatpush1.msra.mxu0 %v488
    %1293 = vmatprep.subr.mxu0 0.0
    %1294 = vmatpush1.msra.mxu0 %v489
    %1295 = vmatprep.subr.mxu0 0.0
    %1296 = vmatpush1.msra.mxu0 %v490
    %1297 = vmatprep.subr.mxu0 0.0
    %1298 = vmatpush1.msra.mxu0 %v491
    %1299 = vmatprep.subr.mxu0 0.0
    %1300 = vmatpush1.msra.mxu0 0.0
    %1301 = vmatprep.subr.mxu0 0.0
    %1302 = vmatpush1.msra.mxu0 0.0
    %1303 = vmatprep.subr.mxu0 0.0
    %1304 = vmatpush1.msra.mxu0 0.0
    %1305 = vmatprep.subr.mxu0 0.0
    %1306 = vmatpush1.msra.mxu0 0.0
    %1307 = vmatprep.subr.mxu0 0.0
    %1308 = vmatpush1.msra.mxu0 0.0
    %1309 = vmatprep.subr.mxu0 0.0
    %1310 = vmatpush1.msra.mxu0 0.0
    %1311 = vmatprep.subr.mxu0 0.0
    %1312 = vmatpush1.msra.mxu0 0.0
    %1313 = vmatprep.subr.mxu0 0.0
    %1314 = vmatpush1.msra.mxu0 0.0
    %1315 = vmatprep.subr.mxu0 0.0
    %1316 = vmatpush1.msra.mxu0 0.0
    %1317 = vmatprep.subr.mxu0 0.0
    %1318 = vmatpush1.msra.mxu0 0.0
    %1319 = vmatprep.subr.mxu0 0.0
    %1320 = vmatpush1.msra.mxu0 0.0
    %1321 = vmatprep.subr.mxu0 0.0
    %1322 = vmatpush1.msra.mxu0 0.0
    %1323 = vmatprep.subr.mxu0 0.0
    %1324 = vmatpush1.msra.mxu0 0.0
    %1325 = vmatprep.subr.mxu0 0.0
    %1326 = vmatpush1.msra.mxu0 0.0
    %1327 = vmatprep.subr.mxu0 0.0
    %1328 = vmatpush1.msra.mxu0 0.0
    %1329 = vmatprep.subr.mxu0 0.0
    %1330 = vmatpush1.msra.mxu0 0.0
    %1331 = vmatprep.subr.mxu0 0.0
    %1332 = vmatpush1.msra.mxu0 0.0
    %1333 = vmatprep.subr.mxu0 0.0
    %1334 = vmatpush1.msra.mxu0 0.0
    %1335 = vmatprep.subr.mxu0 0.0
    %1336 = vmatpush1.msra.mxu0 0.0
    %1337 = vmatprep.subr.mxu0 0.0
    %1338 = vmatpush1.msra.mxu0 0.0
    %1339 = vmatprep.subr.mxu0 0.0
    %1340 = vmatpush1.msra.mxu0 0.0
    %1341 = vmatprep.subr.mxu0 0.0
    %1342 = vmatpush1.msra.mxu0 0.0
    %1343 = vmatprep.subr.mxu0 0.0
    %1344 = vmatpush1.msra.mxu0 0.0
    %1345 = vmatprep.subr.mxu0 0.0
    %1346 = vmatpush1.msra.mxu0 0.0
    %1347 = vmatprep.subr.mxu0 0.0
    %1348 = vmatpush1.msra.mxu0 0.0
    %1349 = vmatprep.subr.mxu0 0.0
    %1350 = vmatpush1.msra.mxu0 0.0
    %1351 = vmatprep.subr.mxu0 0.0
    %1352 = vmatpush1.msra.mxu0 0.0
    %1353 = vmatprep.subr.mxu0 0.0
    %1354 = vmatpush1.msra.mxu0 0.0
    %1355 = vmatprep.mubr.f32.mxu0 0.0
    %1356 = vmatmul.mubr.f32.gmra.mrb[0].mxu0 %v1123
    %v1357 = vpop.f32.mrb[0].mxu0
    %v1358 = vadd.f32 %v465, %v1357
    %v1359 = vpop.f32.mrb[0].mxu0
    %1360 = vdwg.mxu0
    %v1361 = vtanh.pop %v1358
    %v1362 = vmul.f32 %v1361, 0.5
    %v1363 = vadd.f32 %v1362, 0.5
    %v1364 = vmul.f32 %v1363, %v1113
    %1366 = vrot.lane.b32.xlu0 %v1361, 64
    %v1367 = vpop.permute.xlu0 %1366
    %v1369 = vmul.f32 %v1363, %v1367
    %1371 = vrot.lane.b32.xlu0 %v1369, 32
    %v1372 = vpop.permute.xlu0 %1371
    %v1374 = vadd.f32 %v1364, %v1372
    %v1375 = vtanh.pop %v1374
    %1377 = vrot.lane.b32.xlu0 %v1375, 64
    %v1378 = vpop.permute.xlu0 %1377
    %v1380 = vmul.f32 %v1363, %v1378
    %1382 = vrot.lane.b32.xlu0 %v1380, 32
    %v1383 = vpop.permute.xlu0 %1382
    %v1384 = vsel %vm74, %v1383, 0
    %1386 = vmatprep.subr.mxu0 0.0
    %1387 = vmatpush1.msra.mxu0 %v498
    %1388 = vmatprep.subr.mxu0 0.0
    %1389 = vmatpush1.msra.mxu0 %v499
    %1390 = vmatprep.subr.mxu0 0.0
    %1391 = vmatpush1.msra.mxu0 %v500
    %1392 = vmatprep.subr.mxu0 0.0
    %1393 = vmatpush1.msra.mxu0 %v501
    %1394 = vmatprep.subr.mxu0 0.0
    %1395 = vmatpush1.msra.mxu0 0.0
    %1396 = vmatprep.subr.mxu0 0.0
    %1397 = vmatpush1.msra.mxu0 0.0
    %1398 = vmatprep.subr.mxu0 0.0
    %1399 = vmatpush1.msra.mxu0 0.0
    %1400 = vmatprep.subr.mxu0 0.0
    %1401 = vmatpush1.msra.mxu0 0.0
    %1402 = vmatprep.subr.mxu0 0.0
    %1403 = vmatpush1.msra.mxu0 0.0
    %1404 = vmatprep.subr.mxu0 0.0
    %1405 = vmatpush1.msra.mxu0 0.0
    %1406 = vmatprep.subr.mxu0 0.0
    %1407 = vmatpush1.msra.mxu0 0.0
    %1408 = vmatprep.subr.mxu0 0.0
    %1409 = vmatpush1.msra.mxu0 0.0
    %1410 = vmatprep.subr.mxu0 0.0
    %1411 = vmatpush1.msra.mxu0 0.0
    %1412 = vmatprep.subr.mxu0 0.0
    %1413 = vmatpush1.msra.mxu0 0.0
    %1414 = vmatprep.subr.mxu0 0.0
    %1415 = vmatpush1.msra.mxu0 0.0
    %1416 = vmatprep.subr.mxu0 0.0
    %1417 = vmatpush1.msra.mxu0 0.0
    %1418 = vmatprep.subr.mxu0 0.0
    %1419 = vmatpush1.msra.mxu0 0.0
    %1420 = vmatprep.subr.mxu0 0.0
    %1421 = vmatpush1.msra.mxu0 0.0
    %1422 = vmatprep.subr.mxu0 0.0
    %1423 = vmatpush1.msra.mxu0 0.0
    %1424 = vmatprep.subr.mxu0 0.0
    %1425 = vmatpush1.msra.mxu0 0.0
    %1426 = vmatprep.subr.mxu0 0.0
    %1427 = vmatpush1.msra.mxu0 0.0
    %1428 = vmatprep.subr.mxu0 0.0
    %1429 = vmatpush1.msra.mxu0 0.0
    %1430 = vmatprep.subr.mxu0 0.0
    %1431 = vmatpush1.msra.mxu0 0.0
    %1432 = vmatprep.subr.mxu0 0.0
    %1433 = vmatpush1.msra.mxu0 0.0
    %1434 = vmatprep.subr.mxu0 0.0
    %1435 = vmatpush1.msra.mxu0 0.0
    %1436 = vmatprep.subr.mxu0 0.0
    %1437 = vmatpush1.msra.mxu0 0.0
    %1438 = vmatprep.subr.mxu0 0.0
    %1439 = vmatpush1.msra.mxu0 0.0
    %1440 = vmatprep.subr.mxu0 0.0
    %1441 = vmatpush1.msra.mxu0 0.0
    %1442 = vmatprep.subr.mxu0 0.0
    %1443 = vmatpush1.msra.mxu0 0.0
    %1444 = vmatprep.subr.mxu0 0.0
    %1445 = vmatpush1.msra.mxu0 0.0
    %1446 = vmatprep.subr.mxu0 0.0
    %1447 = vmatpush1.msra.mxu0 0.0
    %1448 = vmatprep.subr.mxu0 0.0
    %1449 = vmatpush1.msra.mxu0 0.0
    %1450 = vmatprep.mubr.f32.mxu0 0.0
    %1451 = vmatmul.mubr.f32.gmra.mrb[0].mxu0 %v1384
    %v1452 = vpop.f32.mrb[0].mxu0
    %v1453 = vadd.f32 0.0, %v1452
    %v1454 = vpop.f32.mrb[0].mxu0
    %1455 = vdwg.mxu0
    %1457 = vrot.lane.b32.xlu0 %v1290, 32
    %v1458 = vpop.permute.xlu0 %1457
    %v1459 = vsel %vm74, %v1458, 0
    %1461 = vmatprep.subr.mxu0 0.0
    %1462 = vmatpush1.msra.mxu0 %v493
    %1463 = vmatprep.subr.mxu0 0.0
    %1464 = vmatpush1.msra.mxu0 %v494
    %1465 = vmatprep.subr.mxu0 0.0
    %1466 = vmatpush1.msra.mxu0 %v495
    %1467 = vmatprep.subr.mxu0 0.0
    %1468 = vmatpush1.msra.mxu0 %v496
    %1469 = vmatprep.subr.mxu0 0.0
    %1470 = vmatpush1.msra.mxu0 0.0
    %1471 = vmatprep.subr.mxu0 0.0
    %1472 = vmatpush1.msra.mxu0 0.0
    %1473 = vmatprep.subr.mxu0 0.0
    %1474 = vmatpush1.msra.mxu0 0.0
    %1475 = vmatprep.subr.mxu0 0.0
    %1476 = vmatpush1.msra.mxu0 0.0
    %1477 = vmatprep.subr.mxu0 0.0
    %1478 = vmatpush1.msra.mxu0 0.0
    %1479 = vmatprep.subr.mxu0 0.0
    %1480 = vmatpush1.msra.mxu0 0.0
    %1481 = vmatprep.subr.mxu0 0.0
    %1482 = vmatpush1.msra.mxu0 0.0
    %1483 = vmatprep.subr.mxu0 0.0
    %1484 = vmatpush1.msra.mxu0 0.0
    %1485 = vmatprep.subr.mxu0 0.0
    %1486 = vmatpush1.msra.mxu0 0.0
    %1487 = vmatprep.subr.mxu0 0.0
    %1488 = vmatpush1.msra.mxu0 0.0
    %1489 = vmatprep.subr.mxu0 0.0
    %1490 = vmatpush1.msra.mxu0 0.0
    %1491 = vmatprep.subr.mxu0 0.0
    %1492 = vmatpush1.msra.mxu0 0.0
    %1493 = vmatprep.subr.mxu0 0.0
    %1494 = vmatpush1.msra.mxu0 0.0
    %1495 = vmatprep.subr.mxu0 0.0
    %1496 = vmatpush1.msra.mxu0 0.0
    %1497 = vmatprep.subr.mxu0 0.0
    %1498 = vmatpush1.msra.mxu0 0.0
    %1499 = vmatprep.subr.mxu0 0.0
    %1500 = vmatpush1.msra.mxu0 0.0
    %1501 = vmatprep.subr.mxu0 0.0
    %1502 = vmatpush1.msra.mxu0 0.0
    %1503 = vmatprep.subr.mxu0 0.0
    %1504 = vmatpush1.msra.mxu0 0.0
    %1505 = vmatprep.subr.mxu0 0.0
    %1506 = vmatpush1.msra.mxu0 0.0
    %1507 = vmatprep.subr.mxu0 0.0
    %1508 = vmatpush1.msra.mxu0 0.0
    %1509 = vmatprep.subr.mxu0 0.0
    %1510 = vmatpush1.msra.mxu0 0.0
    %1511 = vmatprep.subr.mxu0 0.0
    %1512 = vmatpush1.msra.mxu0 0.0
    %1513 = vmatprep.subr.mxu0 0.0
    %1514 = vmatpush1.msra.mxu0 0.0
    %1515 = vmatprep.subr.mxu0 0.0
    %1516 = vmatpush1.msra.mxu0 0.0
    %1517 = vmatprep.subr.mxu0 0.0
    %1518 = vmatpush1.msra.mxu0 0.0
    %1519 = vmatprep.subr.mxu0 0.0
    %1520 = vmatpush1.msra.mxu0 0.0
    %1521 = vmatprep.subr.mxu0 0.0
    %1522 = vmatpush1.msra.mxu0 0.0
    %1523 = vmatprep.subr.mxu0 0.0
    %1524 = vmatpush1.msra.mxu0 0.0
    %1525 = vmatprep.mubr.f32.mxu0 0.0
    %1526 = vmatmul.mubr.f32.gmra.mrb[0].mxu0 %v1459
    %v1527 = vpop.f32.mrb[0].mxu0
    %v1528 = vadd.f32 %v1453, %v1527
    %v1529 = vpop.f32.mrb[0].mxu0
    %1530 = vdwg.mxu0
    %v1531 = vadd.f32 %v1528, %v746
    %v1532 = vtanh.pop %v1531
    %v1533 = vmul.f32 %v1532, 0.5
    %v1534 = vadd.f32 %v1533, 0.5
    %v1535 = vmul.f32 %v1534, %v1284
    %1537 = vrot.lane.b32.xlu0 %v1532, 64
    %v1538 = vpop.permute.xlu0 %1537
    %v1540 = vmul.f32 %v1534, %v1538
    %1542 = vrot.lane.b32.xlu0 %v1540, 32
    %v1543 = vpop.permute.xlu0 %1542
    %v1545 = vadd.f32 %v1535, %v1543
    %v1546 = vtanh.pop %v1545
    %1548 = vrot.lane.b32.xlu0 %v1546, 64
    %v1549 = vpop.permute.xlu0 %1548
    %v1551 = vmul.f32 %v1534, %v1549
    %1552 = vmatprep.subr.mxu0 0.0
    %1553 = vmatpush1.msra.mxu0 %v488
    %1554 = vmatprep.subr.mxu0 0.0
    %1555 = vmatpush1.msra.mxu0 %v489
    %1556 = vmatprep.subr.mxu0 0.0
    %1557 = vmatpush1.msra.mxu0 %v490
    %1558 = vmatprep.subr.mxu0 0.0
    %1559 = vmatpush1.msra.mxu0 %v491
    %1560 = vmatprep.subr.mxu0 0.0
    %1561 = vmatpush1.msra.mxu0 0.0
    %1562 = vmatprep.subr.mxu0 0.0
    %1563 = vmatpush1.msra.mxu0 0.0
    %1564 = vmatprep.subr.mxu0 0.0
    %1565 = vmatpush1.msra.mxu0 0.0
    %1566 = vmatprep.subr.mxu0 0.0
    %1567 = vmatpush1.msra.mxu0 0.0
    %1568 = vmatprep.subr.mxu0 0.0
    %1569 = vmatpush1.msra.mxu0 0.0
    %1570 = vmatprep.subr.mxu0 0.0
    %1571 = vmatpush1.msra.mxu0 0.0
    %1572 = vmatprep.subr.mxu0 0.0
    %1573 = vmatpush1.msra.mxu0 0.0
    %1574 = vmatprep.subr.mxu0 0.0
    %1575 = vmatpush1.msra.mxu0 0.0
    %1576 = vmatprep.subr.mxu0 0.0
    %1577 = vmatpush1.msra.mxu0 0.0
    %1578 = vmatprep.subr.mxu0 0.0
    %1579 = vmatpush1.msra.mxu0 0.0
    %1580 = vmatprep.subr.mxu0 0.0
    %1581 = vmatpush1.msra.mxu0 0.0
    %1582 = vmatprep.subr.mxu0 0.0
    %1583 = vmatpush1.msra.mxu0 0.0
    %1584 = vmatprep.subr.mxu0 0.0
    %1585 = vmatpush1.msra.mxu0 0.0
    %1586 = vmatprep.subr.mxu0 0.0
    %1587 = vmatpush1.msra.mxu0 0.0
    %1588 = vmatprep.subr.mxu0 0.0
    %1589 = vmatpush1.msra.mxu0 0.0
    %1590 = vmatprep.subr.mxu0 0.0
    %1591 = vmatpush1.msra.mxu0 0.0
    %1592 = vmatprep.subr.mxu0 0.0
    %1593 = vmatpush1.msra.mxu0 0.0
    %1594 = vmatprep.subr.mxu0 0.0
    %1595 = vmatpush1.msra.mxu0 0.0
    %1596 = vmatprep.subr.mxu0 0.0
    %1597 = vmatpush1.msra.mxu0 0.0
    %1598 = vmatprep.subr.mxu0 0.0
    %1599 = vmatpush1.msra.mxu0 0.0
    %1600 = vmatprep.subr.mxu0 0.0
    %1601 = vmatpush1.msra.mxu0 0.0
    %1602 = vmatprep.subr.mxu0 0.0
    %1603 = vmatpush1.msra.mxu0 0.0
    %1604 = vmatprep.subr.mxu0 0.0
    %1605 = vmatpush1.msra.mxu0 0.0
    %1606 = vmatprep.subr.mxu0 0.0
    %1607 = vmatpush1.msra.mxu0 0.0
    %1608 = vmatprep.subr.mxu0 0.0
    %1609 = vmatpush1.msra.mxu0 0.0
    %1610 = vmatprep.subr.mxu0 0.0
    %1611 = vmatpush1.msra.mxu0 0.0
    %1612 = vmatprep.subr.mxu0 0.0
    %1613 = vmatpush1.msra.mxu0 0.0
    %1614 = vmatprep.subr.mxu0 0.0
    %1615 = vmatpush1.msra.mxu0 0.0
    %1616 = vmatprep.mubr.f32.mxu0 0.0
    %1617 = vmatmul.mubr.f32.gmra.mrb[0].mxu0 %v1384
    %v1618 = vpop.f32.mrb[0].mxu0
    %v1619 = vadd.f32 %v470, %v1618
    %v1620 = vpop.f32.mrb[0].mxu0
    %1621 = vdwg.mxu0
    %v1622 = vtanh.pop %v1619
    %v1623 = vmul.f32 %v1622, 0.5
    %v1624 = vadd.f32 %v1623, 0.5
    %v1625 = vmul.f32 %v1624, %v1374
    %1627 = vrot.lane.b32.xlu0 %v1622, 64
    %v1628 = vpop.permute.xlu0 %1627
    %v1630 = vmul.f32 %v1624, %v1628
    %1632 = vrot.lane.b32.xlu0 %v1630, 32
    %v1633 = vpop.permute.xlu0 %1632
    %v1635 = vadd.f32 %v1625, %v1633
    %v1636 = vtanh.pop %v1635
    %1638 = vrot.lane.b32.xlu0 %v1636, 64
    %v1639 = vpop.permute.xlu0 %1638
    %v1641 = vmul.f32 %v1624, %v1639
    %1643 = vrot.lane.b32.xlu0 %v1641, 32
    %v1644 = vpop.permute.xlu0 %1643
    %v1645 = vsel %vm74, %v1644, 0
    %1647 = vmatprep.subr.mxu0 0.0
    %1648 = vmatpush1.msra.mxu0 %v498
    %1649 = vmatprep.subr.mxu0 0.0
    %1650 = vmatpush1.msra.mxu0 %v499
    %1651 = vmatprep.subr.mxu0 0.0
    %1652 = vmatpush1.msra.mxu0 %v500
    %1653 = vmatprep.subr.mxu0 0.0
    %1654 = vmatpush1.msra.mxu0 %v501
    %1655 = vmatprep.subr.mxu0 0.0
    %1656 = vmatpush1.msra.mxu0 0.0
    %1657 = vmatprep.subr.mxu0 0.0
    %1658 = vmatpush1.msra.mxu0 0.0
    %1659 = vmatprep.subr.mxu0 0.0
    %1660 = vmatpush1.msra.mxu0 0.0
    %1661 = vmatprep.subr.mxu0 0.0
    %1662 = vmatpush1.msra.mxu0 0.0
    %1663 = vmatprep.subr.mxu0 0.0
    %1664 = vmatpush1.msra.mxu0 0.0
    %1665 = vmatprep.subr.mxu0 0.0
    %1666 = vmatpush1.msra.mxu0 0.0
    %1667 = vmatprep.subr.mxu0 0.0
    %1668 = vmatpush1.msra.mxu0 0.0
    %1669 = vmatprep.subr.mxu0 0.0
    %1670 = vmatpush1.msra.mxu0 0.0
    %1671 = vmatprep.subr.mxu0 0.0
    %1672 = vmatpush1.msra.mxu0 0.0
    %1673 = vmatprep.subr.mxu0 0.0
    %1674 = vmatpush1.msra.mxu0 0.0
    %1675 = vmatprep.subr.mxu0 0.0
    %1676 = vmatpush1.msra.mxu0 0.0
    %1677 = vmatprep.subr.mxu0 0.0
    %1678 = vmatpush1.msra.mxu0 0.0
    %1679 = vmatprep.subr.mxu0 0.0
    %1680 = vmatpush1.msra.mxu0 0.0
    %1681 = vmatprep.subr.mxu0 0.0
    %1682 = vmatpush1.msra.mxu0 0.0
    %1683 = vmatprep.subr.mxu0 0.0
    %1684 = vmatpush1.msra.mxu0 0.0
    %1685 = vmatprep.subr.mxu0 0.0
    %1686 = vmatpush1.msra.mxu0 0.0
    %1687 = vmatprep.subr.mxu0 0.0
    %1688 = vmatpush1.msra.mxu0 0.0
    %1689 = vmatprep.subr.mxu0 0.0
    %1690 = vmatpush1.msra.mxu0 0.0
    %1691 = vmatprep.subr.mxu0 0.0
    %1692 = vmatpush1.msra.mxu0 0.0
    %1693 = vmatprep.subr.mxu0 0.0
    %1694 = vmatpush1.msra.mxu0 0.0
    %1695 = vmatprep.subr.mxu0 0.0
    %1696 = vmatpush1.msra.mxu0 0.0
    %1697 = vmatprep.subr.mxu0 0.0
    %1698 = vmatpush1.msra.mxu0 0.0
    %1699 = vmatprep.subr.mxu0 0.0
    %1700 = vmatpush1.msra.mxu0 0.0
    %1701 = vmatprep.subr.mxu0 0.0
    %1702 = vmatpush1.msra.mxu0 0.0
    %1703 = vmatprep.subr.mxu0 0.0
    %1704 = vmatpush1.msra.mxu0 0.0
    %1705 = vmatprep.subr.mxu0 0.0
    %1706 = vmatpush1.msra.mxu0 0.0
    %1707 = vmatprep.subr.mxu0 0.0
    %1708 = vmatpush1.msra.mxu0 0.0
    %1709 = vmatprep.subr.mxu0 0.0
    %1710 = vmatpush1.msra.mxu0 0.0
    %1711 = vmatprep.mubr.f32.mxu0 0.0
    %1712 = vmatmul.mubr.f32.gmra.mrb[0].mxu0 %v1645
    %v1713 = vpop.f32.mrb[0].mxu0
    %v1714 = vadd.f32 0.0, %v1713
    %v1715 = vpop.f32.mrb[0].mxu0
    %1716 = vdwg.mxu0
    %1718 = vrot.lane.b32.xlu0 %v1551, 32
    %v1719 = vpop.permute.xlu0 %1718
    %v1720 = vsel %vm74, %v1719, 0
    %1722 = vmatprep.subr.mxu0 0.0
    %1723 = vmatpush1.msra.mxu0 %v493
    %1724 = vmatprep.subr.mxu0 0.0
    %1725 = vmatpush1.msra.mxu0 %v494
    %1726 = vmatprep.subr.mxu0 0.0
    %1727 = vmatpush1.msra.mxu0 %v495
    %1728 = vmatprep.subr.mxu0 0.0
    %1729 = vmatpush1.msra.mxu0 %v496
    %1730 = vmatprep.subr.mxu0 0.0
    %1731 = vmatpush1.msra.mxu0 0.0
    %1732 = vmatprep.subr.mxu0 0.0
    %1733 = vmatpush1.msra.mxu0 0.0
    %1734 = vmatprep.subr.mxu0 0.0
    %1735 = vmatpush1.msra.mxu0 0.0
    %1736 = vmatprep.subr.mxu0 0.0
    %1737 = vmatpush1.msra.mxu0 0.0
    %1738 = vmatprep.subr.mxu0 0.0
    %1739 = vmatpush1.msra.mxu0 0.0
    %1740 = vmatprep.subr.mxu0 0.0
    %1741 = vmatpush1.msra.mxu0 0.0
    %1742 = vmatprep.subr.mxu0 0.0
    %1743 = vmatpush1.msra.mxu0 0.0
    %1744 = vmatprep.subr.mxu0 0.0
    %1745 = vmatpush1.msra.mxu0 0.0
    %1746 = vmatprep.subr.mxu0 0.0
    %1747 = vmatpush1.msra.mxu0 0.0
    %1748 = vmatprep.subr.mxu0 0.0
    %1749 = vmatpush1.msra.mxu0 0.0
    %1750 = vmatprep.subr.mxu0 0.0
    %1751 = vmatpush1.msra.mxu0 0.0
    %1752 = vmatprep.subr.mxu0 0.0
    %1753 = vmatpush1.msra.mxu0 0.0
    %1754 = vmatprep.subr.mxu0 0.0
    %1755 = vmatpush1.msra.mxu0 0.0
    %1756 = vmatprep.subr.mxu0 0.0
    %1757 = vmatpush1.msra.mxu0 0.0
    %1758 = vmatprep.subr.mxu0 0.0
    %1759 = vmatpush1.msra.mxu0 0.0
    %1760 = vmatprep.subr.mxu0 0.0
    %1761 = vmatpush1.msra.mxu0 0.0
    %1762 = vmatprep.subr.mxu0 0.0
    %1763 = vmatpush1.msra.mxu0 0.0
    %1764 = vmatprep.subr.mxu0 0.0
    %1765 = vmatpush1.msra.mxu0 0.0
    %1766 = vmatprep.subr.mxu0 0.0
    %1767 = vmatpush1.msra.mxu0 0.0
    %1768 = vmatprep.subr.mxu0 0.0
    %1769 = vmatpush1.msra.mxu0 0.0
    %1770 = vmatprep.subr.mxu0 0.0
    %1771 = vmatpush1.msra.mxu0 0.0
    %1772 = vmatprep.subr.mxu0 0.0
    %1773 = vmatpush1.msra.mxu0 0.0
    %1774 = vmatprep.subr.mxu0 0.0
    %1775 = vmatpush1.msra.mxu0 0.0
    %1776 = vmatprep.subr.mxu0 0.0
    %1777 = vmatpush1.msra.mxu0 0.0
    %1778 = vmatprep.subr.mxu0 0.0
    %1779 = vmatpush1.msra.mxu0 0.0
    %1780 = vmatprep.subr.mxu0 0.0
    %1781 = vmatpush1.msra.mxu0 0.0
    %1782 = vmatprep.subr.mxu0 0.0
    %1783 = vmatpush1.msra.mxu0 0.0
    %1784 = vmatprep.subr.mxu0 0.0
    %1785 = vmatpush1.msra.mxu0 0.0
    %1786 = vmatprep.mubr.f32.mxu0 0.0
    %1787 = vmatmul.mubr.f32.gmra.mrb[0].mxu0 %v1720
    %v1788 = vpop.f32.mrb[0].mxu0
    %v1789 = vadd.f32 %v1714, %v1788
    %v1790 = vpop.f32.mrb[0].mxu0
    %1791 = vdwg.mxu0
    %v1792 = vadd.f32 %v1789, %v746
    %v1793 = vtanh.pop %v1792
    %v1794 = vmul.f32 %v1793, 0.5
    %v1795 = vadd.f32 %v1794, 0.5
    %v1796 = vmul.f32 %v1795, %v1545
    %1798 = vrot.lane.b32.xlu0 %v1793, 64
    %v1799 = vpop.permute.xlu0 %1798
    %v1801 = vmul.f32 %v1795, %v1799
    %1803 = vrot.lane.b32.xlu0 %v1801, 32
    %v1804 = vpop.permute.xlu0 %1803
    %v1806 = vadd.f32 %v1796, %v1804
    %v1807 = vtanh.pop %v1806
    %1809 = vrot.lane.b32.xlu0 %v1807, 64
    %v1810 = vpop.permute.xlu0 %1809
    %v1812 = vmul.f32 %v1795, %v1810
    %1813 = vmatprep.subr.mxu0 0.0
    %1814 = vmatpush1.msra.mxu0 %v488
    %1815 = vmatprep.subr.mxu0 0.0
    %1816 = vmatpush1.msra.mxu0 %v489
    %1817 = vmatprep.subr.mxu0 0.0
    %1818 = vmatpush1.msra.mxu0 %v490
    %1819 = vmatprep.subr.mxu0 0.0
    %1820 = vmatpush1.msra.mxu0 %v491
    %1821 = vmatprep.subr.mxu0 0.0
    %1822 = vmatpush1.msra.mxu0 0.0
    %1823 = vmatprep.subr.mxu0 0.0
    %1824 = vmatpush1.msra.mxu0 0.0
    %1825 = vmatprep.subr.mxu0 0.0
    %1826 = vmatpush1.msra.mxu0 0.0
    %1827 = vmatprep.subr.mxu0 0.0
    %1828 = vmatpush1.msra.mxu0 0.0
    %1829 = vmatprep.subr.mxu0 0.0
    %1830 = vmatpush1.msra.mxu0 0.0
    %1831 = vmatprep.subr.mxu0 0.0
    %1832 = vmatpush1.msra.mxu0 0.0
    %1833 = vmatprep.subr.mxu0 0.0
    %1834 = vmatpush1.msra.mxu0 0.0
    %1835 = vmatprep.subr.mxu0 0.0
    %1836 = vmatpush1.msra.mxu0 0.0
    %1837 = vmatprep.subr.mxu0 0.0
    %1838 = vmatpush1.msra.mxu0 0.0
    %1839 = vmatprep.subr.mxu0 0.0
    %1840 = vmatpush1.msra.mxu0 0.0
    %1841 = vmatprep.subr.mxu0 0.0
    %1842 = vmatpush1.msra.mxu0 0.0
    %1843 = vmatprep.subr.mxu0 0.0
    %1844 = vmatpush1.msra.mxu0 0.0
    %1845 = vmatprep.subr.mxu0 0.0
    %1846 = vmatpush1.msra.mxu0 0.0
    %1847 = vmatprep.subr.mxu0 0.0
    %1848 = vmatpush1.msra.mxu0 0.0
    %1849 = vmatprep.subr.mxu0 0.0
    %1850 = vmatpush1.msra.mxu0 0.0
    %1851 = vmatprep.subr.mxu0 0.0
    %1852 = vmatpush1.msra.mxu0 0.0
    %1853 = vmatprep.subr.mxu0 0.0
    %1854 = vmatpush1.msra.mxu0 0.0
    %1855 = vmatprep.subr.mxu0 0.0
    %1856 = vmatpush1.msra.mxu0 0.0
    %1857 = vmatprep.subr.mxu0 0.0
    %1858 = vmatpush1.msra.mxu0 0.0
    %1859 = vmatprep.subr.mxu0 0.0
    %1860 = vmatpush1.msra.mxu0 0.0
    %1861 = vmatprep.subr.mxu0 0.0
    %1862 = vmatpush1.msra.mxu0 0.0
    %1863 = vmatprep.subr.mxu0 0.0
    %1864 = vmatpush1.msra.mxu0 0.0
    %1865 = vmatprep.subr.mxu0 0.0
    %1866 = vmatpush1.msra.mxu0 0.0
    %1867 = vmatprep.subr.mxu0 0.0
    %1868 = vmatpush1.msra.mxu0 0.0
    %1869 = vmatprep.subr.mxu0 0.0
    %1870 = vmatpush1.msra.mxu0 0.0
    %1871 = vmatprep.subr.mxu0 0.0
    %1872 = vmatpush1.msra.mxu0 0.0
    %1873 = vmatprep.subr.mxu0 0.0
    %1874 = vmatpush1.msra.mxu0 0.0
    %1875 = vmatprep.subr.mxu0 0.0
    %1876 = vmatpush1.msra.mxu0 0.0
    %1877 = vmatprep.mubr.f32.mxu0 0.0
    %1878 = vmatmul.mubr.f32.gmra.mrb[0].mxu0 %v1645
    %v1879 = vpop.f32.mrb[0].mxu0
    %v1880 = vadd.f32 %v475, %v1879
    %v1881 = vpop.f32.mrb[0].mxu0
    %1882 = vdwg.mxu0
    %v1883 = vtanh.pop %v1880
    %v1884 = vmul.f32 %v1883, 0.5
    %v1885 = vadd.f32 %v1884, 0.5
    %v1886 = vmul.f32 %v1885, %v1635
    %1888 = vrot.lane.b32.xlu0 %v1883, 64
    %v1889 = vpop.permute.xlu0 %1888
    %v1891 = vmul.f32 %v1885, %v1889
    %1893 = vrot.lane.b32.xlu0 %v1891, 32
    %v1894 = vpop.permute.xlu0 %1893
    %v1896 = vadd.f32 %v1886, %v1894
    %v1897 = vtanh.pop %v1896
    %1899 = vrot.lane.b32.xlu0 %v1897, 64
    %v1900 = vpop.permute.xlu0 %1899
    %v1902 = vmul.f32 %v1885, %v1900
    %1904 = vrot.lane.b32.xlu0 %v1902, 32
    %v1905 = vpop.permute.xlu0 %1904
    %v1906 = vsel %vm74, %v1905, 0
    %1908 = vmatprep.subr.mxu0 0.0
    %1909 = vmatpush1.msra.mxu0 %v498
    %1910 = vmatprep.subr.mxu0 0.0
    %1911 = vmatpush1.msra.mxu0 %v499
    %1912 = vmatprep.subr.mxu0 0.0
    %1913 = vmatpush1.msra.mxu0 %v500
    %1914 = vmatprep.subr.mxu0 0.0
    %1915 = vmatpush1.msra.mxu0 %v501
    %1916 = vmatprep.subr.mxu0 0.0
    %1917 = vmatpush1.msra.mxu0 0.0
    %1918 = vmatprep.subr.mxu0 0.0
    %1919 = vmatpush1.msra.mxu0 0.0
    %1920 = vmatprep.subr.mxu0 0.0
    %1921 = vmatpush1.msra.mxu0 0.0
    %1922 = vmatprep.subr.mxu0 0.0
    %1923 = vmatpush1.msra.mxu0 0.0
    %1924 = vmatprep.subr.mxu0 0.0
    %1925 = vmatpush1.msra.mxu0 0.0
    %1926 = vmatprep.subr.mxu0 0.0
    %1927 = vmatpush1.msra.mxu0 0.0
    %1928 = vmatprep.subr.mxu0 0.0
    %1929 = vmatpush1.msra.mxu0 0.0
    %1930 = vmatprep.subr.mxu0 0.0
    %1931 = vmatpush1.msra.mxu0 0.0
    %1932 = vmatprep.subr.mxu0 0.0
    %1933 = vmatpush1.msra.mxu0 0.0
    %1934 = vmatprep.subr.mxu0 0.0
    %1935 = vmatpush1.msra.mxu0 0.0
    %1936 = vmatprep.subr.mxu0 0.0
    %1937 = vmatpush1.msra.mxu0 0.0
    %1938 = vmatprep.subr.mxu0 0.0
    %1939 = vmatpush1.msra.mxu0 0.0
    %1940 = vmatprep.subr.mxu0 0.0
    %1941 = vmatpush1.msra.mxu0 0.0
    %1942 = vmatprep.subr.mxu0 0.0
    %1943 = vmatpush1.msra.mxu0 0.0
    %1944 = vmatprep.subr.mxu0 0.0
    %1945 = vmatpush1.msra.mxu0 0.0
    %1946 = vmatprep.subr.mxu0 0.0
    %1947 = vmatpush1.msra.mxu0 0.0
    %1948 = vmatprep.subr.mxu0 0.0
    %1949 = vmatpush1.msra.mxu0 0.0
    %1950 = vmatprep.subr.mxu0 0.0
    %1951 = vmatpush1.msra.mxu0 0.0
    %1952 = vmatprep.subr.mxu0 0.0
    %1953 = vmatpush1.msra.mxu0 0.0
    %1954 = vmatprep.subr.mxu0 0.0
    %1955 = vmatpush1.msra.mxu0 0.0
    %1956 = vmatprep.subr.mxu0 0.0
    %1957 = vmatpush1.msra.mxu0 0.0
    %1958 = vmatprep.subr.mxu0 0.0
    %1959 = vmatpush1.msra.mxu0 0.0
    %1960 = vmatprep.subr.mxu0 0.0
    %1961 = vmatpush1.msra.mxu0 0.0
    %1962 = vmatprep.subr.mxu0 0.0
    %1963 = vmatpush1.msra.mxu0 0.0
    %1964 = vmatprep.subr.mxu0 0.0
    %1965 = vmatpush1.msra.mxu0 0.0
    %1966 = vmatprep.subr.mxu0 0.0
    %1967 = vmatpush1.msra.mxu0 0.0
    %1968 = vmatprep.subr.mxu0 0.0
    %1969 = vmatpush1.msra.mxu0 0.0
    %1970 = vmatprep.subr.mxu0 0.0
    %1971 = vmatpush1.msra.mxu0 0.0
    %1972 = vmatprep.mubr.f32.mxu0 0.0
    %1973 = vmatmul.mubr.f32.gmra.mrb[0].mxu0 %v1906
    %v1974 = vpop.f32.mrb[0].mxu0
    %v1975 = vadd.f32 0.0, %v1974
    %v1976 = vpop.f32.mrb[0].mxu0
    %1977 = vdwg.mxu0
    %1979 = vrot.lane.b32.xlu0 %v1812, 32
    %v1980 = vpop.permute.xlu0 %1979
    %v1981 = vsel %vm74, %v1980, 0
    %1983 = vmatprep.subr.mxu0 0.0
    %1984 = vmatpush1.msra.mxu0 %v493
    %1985 = vmatprep.subr.mxu0 0.0
    %1986 = vmatpush1.msra.mxu0 %v494
    %1987 = vmatprep.subr.mxu0 0.0
    %1988 = vmatpush1.msra.mxu0 %v495
    %1989 = vmatprep.subr.mxu0 0.0
    %1990 = vmatpush1.msra.mxu0 %v496
    %1991 = vmatprep.subr.mxu0 0.0
    %1992 = vmatpush1.msra.mxu0 0.0
    %1993 = vmatprep.subr.mxu0 0.0
    %1994 = vmatpush1.msra.mxu0 0.0
    %1995 = vmatprep.subr.mxu0 0.0
    %1996 = vmatpush1.msra.mxu0 0.0
    %1997 = vmatprep.subr.mxu0 0.0
    %1998 = vmatpush1.msra.mxu0 0.0
    %1999 = vmatprep.subr.mxu0 0.0
    %2000 = vmatpush1.msra.mxu0 0.0
    %2001 = vmatprep.subr.mxu0 0.0
    %2002 = vmatpush1.msra.mxu0 0.0
    %2003 = vmatprep.subr.mxu0 0.0
    %2004 = vmatpush1.msra.mxu0 0.0
    %2005 = vmatprep.subr.mxu0 0.0
    %2006 = vmatpush1.msra.mxu0 0.0
    %2007 = vmatprep.subr.mxu0 0.0
    %2008 = vmatpush1.msra.mxu0 0.0
    %2009 = vmatprep.subr.mxu0 0.0
    %2010 = vmatpush1.msra.mxu0 0.0
    %2011 = vmatprep.subr.mxu0 0.0
    %2012 = vmatpush1.msra.mxu0 0.0
    %2013 = vmatprep.subr.mxu0 0.0
    %2014 = vmatpush1.msra.mxu0 0.0
    %2015 = vmatprep.subr.mxu0 0.0
    %2016 = vmatpush1.msra.mxu0 0.0
    %2017 = vmatprep.subr.mxu0 0.0
    %2018 = vmatpush1.msra.mxu0 0.0
    %2019 = vmatprep.subr.mxu0 0.0
    %2020 = vmatpush1.msra.mxu0 0.0
    %2021 = vmatprep.subr.mxu0 0.0
    %2022 = vmatpush1.msra.mxu0 0.0
    %2023 = vmatprep.subr.mxu0 0.0
    %2024 = vmatpush1.msra.mxu0 0.0
    %2025 = vmatprep.subr.mxu0 0.0
    %2026 = vmatpush1.msra.mxu0 0.0
    %2027 = vmatprep.subr.mxu0 0.0
    %2028 = vmatpush1.msra.mxu0 0.0
    %2029 = vmatprep.subr.mxu0 0.0
    %2030 = vmatpush1.msra.mxu0 0.0
    %2031 = vmatprep.subr.mxu0 0.0
    %2032 = vmatpush1.msra.mxu0 0.0
    %2033 = vmatprep.subr.mxu0 0.0
    %2034 = vmatpush1.msra.mxu0 0.0
    %2035 = vmatprep.subr.mxu0 0.0
    %2036 = vmatpush1.msra.mxu0 0.0
    %2037 = vmatprep.subr.mxu0 0.0
    %2038 = vmatpush1.msra.mxu0 0.0
    %2039 = vmatprep.subr.mxu0 0.0
    %2040 = vmatpush1.msra.mxu0 0.0
    %2041 = vmatprep.subr.mxu0 0.0
    %2042 = vmatpush1.msra.mxu0 0.0
    %2043 = vmatprep.subr.mxu0 0.0
    %2044 = vmatpush1.msra.mxu0 0.0
    %2045 = vmatprep.subr.mxu0 0.0
    %2046 = vmatpush1.msra.mxu0 0.0
    %2047 = vmatprep.mubr.f32.mxu0 0.0
    %2048 = vmatmul.mubr.f32.gmra.mrb[0].mxu0 %v1981
    %v2049 = vpop.f32.mrb[0].mxu0
    %v2050 = vadd.f32 %v1975, %v2049
    %v2051 = vpop.f32.mrb[0].mxu0
    %2052 = vdwg.mxu0
    %v2053 = vadd.f32 %v2050, %v746
    %v2054 = vtanh.pop %v2053
    %v2055 = vmul.f32 %v2054, 0.5
    %v2056 = vadd.f32 %v2055, 0.5
    %v2057 = vmul.f32 %v2056, %v1806
    %2059 = vrot.lane.b32.xlu0 %v2054, 64
    %v2060 = vpop.permute.xlu0 %2059
    %v2062 = vmul.f32 %v2056, %v2060
    %2064 = vrot.lane.b32.xlu0 %v2062, 32
    %v2065 = vpop.permute.xlu0 %2064
    %v2067 = vadd.f32 %v2057, %v2065
    %v2068 = vtanh.pop %v2067
    %2070 = vrot.lane.b32.xlu0 %v2068, 64
    %v2071 = vpop.permute.xlu0 %2070
    %v2073 = vmul.f32 %v2056, %v2071
    %2074 = vmatprep.subr.mxu0 0.0
    %2075 = vmatpush1.msra.mxu0 %v488
    %2076 = vmatprep.subr.mxu0 0.0
    %2077 = vmatpush1.msra.mxu0 %v489
    %2078 = vmatprep.subr.mxu0 0.0
    %2079 = vmatpush1.msra.mxu0 %v490
    %2080 = vmatprep.subr.mxu0 0.0
    %2081 = vmatpush1.msra.mxu0 %v491
    %2082 = vmatprep.subr.mxu0 0.0
    %2083 = vmatpush1.msra.mxu0 0.0
    %2084 = vmatprep.subr.mxu0 0.0
    %2085 = vmatpush1.msra.mxu0 0.0
    %2086 = vmatprep.subr.mxu0 0.0
    %2087 = vmatpush1.msra.mxu0 0.0
    %2088 = vmatprep.subr.mxu0 0.0
    %2089 = vmatpush1.msra.mxu0 0.0
    %2090 = vmatprep.subr.mxu0 0.0
    %2091 = vmatpush1.msra.mxu0 0.0
    %2092 = vmatprep.subr.mxu0 0.0
    %2093 = vmatpush1.msra.mxu0 0.0
    %2094 = vmatprep.subr.mxu0 0.0
    %2095 = vmatpush1.msra.mxu0 0.0
    %2096 = vmatprep.subr.mxu0 0.0
    %2097 = vmatpush1.msra.mxu0 0.0
    %2098 = vmatprep.subr.mxu0 0.0
    %2099 = vmatpush1.msra.mxu0 0.0
    %2100 = vmatprep.subr.mxu0 0.0
    %2101 = vmatpush1.msra.mxu0 0.0
    %2102 = vmatprep.subr.mxu0 0.0
    %2103 = vmatpush1.msra.mxu0 0.0
    %2104 = vmatprep.subr.mxu0 0.0
    %2105 = vmatpush1.msra.mxu0 0.0
    %2106 = vmatprep.subr.mxu0 0.0
    %2107 = vmatpush1.msra.mxu0 0.0
    %2108 = vmatprep.subr.mxu0 0.0
    %2109 = vmatpush1.msra.mxu0 0.0
    %2110 = vmatprep.subr.mxu0 0.0
    %2111 = vmatpush1.msra.mxu0 0.0
    %2112 = vmatprep.subr.mxu0 0.0
    %2113 = vmatpush1.msra.mxu0 0.0
    %2114 = vmatprep.subr.mxu0 0.0
    %2115 = vmatpush1.msra.mxu0 0.0
    %2116 = vmatprep.subr.mxu0 0.0
    %2117 = vmatpush1.msra.mxu0 0.0
    %2118 = vmatprep.subr.mxu0 0.0
    %2119 = vmatpush1.msra.mxu0 0.0
    %2120 = vmatprep.subr.mxu0 0.0
    %2121 = vmatpush1.msra.mxu0 0.0
    %2122 = vmatprep.subr.mxu0 0.0
    %2123 = vmatpush1.msra.mxu0 0.0
    %2124 = vmatprep.subr.mxu0 0.0
    %2125 = vmatpush1.msra.mxu0 0.0
    %2126 = vmatprep.subr.mxu0 0.0
    %2127 = vmatpush1.msra.mxu0 0.0
    %2128 = vmatprep.subr.mxu0 0.0
    %2129 = vmatpush1.msra.mxu0 0.0
    %2130 = vmatprep.subr.mxu0 0.0
    %2131 = vmatpush1.msra.mxu0 0.0
    %2132 = vmatprep.subr.mxu0 0.0
    %2133 = vmatpush1.msra.mxu0 0.0
    %2134 = vmatprep.subr.mxu0 0.0
    %2135 = vmatpush1.msra.mxu0 0.0
    %2136 = vmatprep.subr.mxu0 0.0
    %2137 = vmatpush1.msra.mxu0 0.0
    %2138 = vmatprep.mubr.f32.mxu0 0.0
    %2139 = vmatmul.mubr.f32.gmra.mrb[0].mxu0 %v1906
    %v2140 = vpop.f32.mrb[0].mxu0
    %v2141 = vadd.f32 %v480, %v2140
    %v2142 = vpop.f32.mrb[0].mxu0
    %2143 = vdwg.mxu0
    %v2144 = vtanh.pop %v2141
    %v2145 = vmul.f32 %v2144, 0.5
    %v2146 = vadd.f32 %v2145, 0.5
    %v2147 = vmul.f32 %v2146, %v1896
    %2149 = vrot.lane.b32.xlu0 %v2144, 64
    %v2150 = vpop.permute.xlu0 %2149
    %v2152 = vmul.f32 %v2146, %v2150
    %2154 = vrot.lane.b32.xlu0 %v2152, 32
    %v2155 = vpop.permute.xlu0 %2154
    %v2157 = vadd.f32 %v2147, %v2155
    %v2158 = vtanh.pop %v2157
    %2160 = vrot.lane.b32.xlu0 %v2158, 64
    %v2161 = vpop.permute.xlu0 %2160
    %v2163 = vmul.f32 %v2146, %v2161
    %2165 = vrot.lane.b32.xlu0 %v2163, 32
    %v2166 = vpop.permute.xlu0 %2165
    %v2167 = vsel %vm74, %v2166, 0
    %2169 = vmatprep.subr.mxu0 0.0
    %2170 = vmatpush1.msra.mxu0 %v498
    %2171 = vmatprep.subr.mxu0 0.0
    %2172 = vmatpush1.msra.mxu0 %v499
    %2173 = vmatprep.subr.mxu0 0.0
    %2174 = vmatpush1.msra.mxu0 %v500
    %2175 = vmatprep.subr.mxu0 0.0
    %2176 = vmatpush1.msra.mxu0 %v501
    %2177 = vmatprep.subr.mxu0 0.0
    %2178 = vmatpush1.msra.mxu0 0.0
    %2179 = vmatprep.subr.mxu0 0.0
    %2180 = vmatpush1.msra.mxu0 0.0
    %2181 = vmatprep.subr.mxu0 0.0
    %2182 = vmatpush1.msra.mxu0 0.0
    %2183 = vmatprep.subr.mxu0 0.0
    %2184 = vmatpush1.msra.mxu0 0.0
    %2185 = vmatprep.subr.mxu0 0.0
    %2186 = vmatpush1.msra.mxu0 0.0
    %2187 = vmatprep.subr.mxu0 0.0
    %2188 = vmatpush1.msra.mxu0 0.0
    %2189 = vmatprep.subr.mxu0 0.0
    %2190 = vmatpush1.msra.mxu0 0.0
    %2191 = vmatprep.subr.mxu0 0.0
    %2192 = vmatpush1.msra.mxu0 0.0
    %2193 = vmatprep.subr.mxu0 0.0
    %2194 = vmatpush1.msra.mxu0 0.0
    %2195 = vmatprep.subr.mxu0 0.0
    %2196 = vmatpush1.msra.mxu0 0.0
    %2197 = vmatprep.subr.mxu0 0.0
    %2198 = vmatpush1.msra.mxu0 0.0
    %2199 = vmatprep.subr.mxu0 0.0
    %2200 = vmatpush1.msra.mxu0 0.0
    %2201 = vmatprep.subr.mxu0 0.0
    %2202 = vmatpush1.msra.mxu0 0.0
    %2203 = vmatprep.subr.mxu0 0.0
    %2204 = vmatpush1.msra.mxu0 0.0
    %2205 = vmatprep.subr.mxu0 0.0
    %2206 = vmatpush1.msra.mxu0 0.0
    %2207 = vmatprep.subr.mxu0 0.0
    %2208 = vmatpush1.msra.mxu0 0.0
    %2209 = vmatprep.subr.mxu0 0.0
    %2210 = vmatpush1.msra.mxu0 0.0
    %2211 = vmatprep.subr.mxu0 0.0
    %2212 = vmatpush1.msra.mxu0 0.0
    %2213 = vmatprep.subr.mxu0 0.0
    %2214 = vmatpush1.msra.mxu0 0.0
    %2215 = vmatprep.subr.mxu0 0.0
    %2216 = vmatpush1.msra.mxu0 0.0
    %2217 = vmatprep.subr.mxu0 0.0
    %2218 = vmatpush1.msra.mxu0 0.0
    %2219 = vmatprep.subr.mxu0 0.0
    %2220 = vmatpush1.msra.mxu0 0.0
    %2221 = vmatprep.subr.mxu0 0.0
    %2222 = vmatpush1.msra.mxu0 0.0
    %2223 = vmatprep.subr.mxu0 0.0
    %2224 = vmatpush1.msra.mxu0 0.0
    %2225 = vmatprep.subr.mxu0 0.0
    %2226 = vmatpush1.msra.mxu0 0.0
    %2227 = vmatprep.subr.mxu0 0.0
    %2228 = vmatpush1.msra.mxu0 0.0
    %2229 = vmatprep.subr.mxu0 0.0
    %2230 = vmatpush1.msra.mxu0 0.0
    %2231 = vmatprep.subr.mxu0 0.0
    %2232 = vmatpush1.msra.mxu0 0.0
    %2233 = vmatprep.mubr.f32.mxu0 0.0
    %2234 = vmatmul.mubr.f32.gmra.mrb[0].mxu0 %v2167
    %v2235 = vpop.f32.mrb[0].mxu0
    %v2236 = vadd.f32 0.0, %v2235
    %v2237 = vpop.f32.mrb[0].mxu0
    %2238 = vdwg.mxu0
    %2240 = vrot.lane.b32.xlu0 %v2073, 32
    %v2241 = vpop.permute.xlu0 %2240
    %v2242 = vsel %vm74, %v2241, 0
    %2244 = vmatprep.subr.mxu0 0.0
    %2245 = vmatpush1.msra.mxu0 %v493
    %2246 = vmatprep.subr.mxu0 0.0
    %2247 = vmatpush1.msra.mxu0 %v494
    %2248 = vmatprep.subr.mxu0 0.0
    %2249 = vmatpush1.msra.mxu0 %v495
    %2250 = vmatprep.subr.mxu0 0.0
    %2251 = vmatpush1.msra.mxu0 %v496
    %2252 = vmatprep.subr.mxu0 0.0
    %2253 = vmatpush1.msra.mxu0 0.0
    %2254 = vmatprep.subr.mxu0 0.0
    %2255 = vmatpush1.msra.mxu0 0.0
    %2256 = vmatprep.subr.mxu0 0.0
    %2257 = vmatpush1.msra.mxu0 0.0
    %2258 = vmatprep.subr.mxu0 0.0
    %2259 = vmatpush1.msra.mxu0 0.0
    %2260 = vmatprep.subr.mxu0 0.0
    %2261 = vmatpush1.msra.mxu0 0.0
    %2262 = vmatprep.subr.mxu0 0.0
    %2263 = vmatpush1.msra.mxu0 0.0
    %2264 = vmatprep.subr.mxu0 0.0
    %2265 = vmatpush1.msra.mxu0 0.0
    %2266 = vmatprep.subr.mxu0 0.0
    %2267 = vmatpush1.msra.mxu0 0.0
    %2268 = vmatprep.subr.mxu0 0.0
    %2269 = vmatpush1.msra.mxu0 0.0
    %2270 = vmatprep.subr.mxu0 0.0
    %2271 = vmatpush1.msra.mxu0 0.0
    %2272 = vmatprep.subr.mxu0 0.0
    %2273 = vmatpush1.msra.mxu0 0.0
    %2274 = vmatprep.subr.mxu0 0.0
    %2275 = vmatpush1.msra.mxu0 0.0
    %2276 = vmatprep.subr.mxu0 0.0
    %2277 = vmatpush1.msra.mxu0 0.0
    %2278 = vmatprep.subr.mxu0 0.0
    %2279 = vmatpush1.msra.mxu0 0.0
    %2280 = vmatprep.subr.mxu0 0.0
    %2281 = vmatpush1.msra.mxu0 0.0
    %2282 = vmatprep.subr.mxu0 0.0
    %2283 = vmatpush1.msra.mxu0 0.0
    %2284 = vmatprep.subr.mxu0 0.0
    %2285 = vmatpush1.msra.mxu0 0.0
    %2286 = vmatprep.subr.mxu0 0.0
    %2287 = vmatpush1.msra.mxu0 0.0
    %2288 = vmatprep.subr.mxu0 0.0
    %2289 = vmatpush1.msra.mxu0 0.0
    %2290 = vmatprep.subr.mxu0 0.0
    %2291 = vmatpush1.msra.mxu0 0.0
    %2292 = vmatprep.subr.mxu0 0.0
    %2293 = vmatpush1.msra.mxu0 0.0
    %2294 = vmatprep.subr.mxu0 0.0
    %2295 = vmatpush1.msra.mxu0 0.0
    %2296 = vmatprep.subr.mxu0 0.0
    %2297 = vmatpush1.msra.mxu0 0.0
    %2298 = vmatprep.subr.mxu0 0.0
    %2299 = vmatpush1.msra.mxu0 0.0
    %2300 = vmatprep.subr.mxu0 0.0
    %2301 = vmatpush1.msra.mxu0 0.0
    %2302 = vmatprep.subr.mxu0 0.0
    %2303 = vmatpush1.msra.mxu0 0.0
    %2304 = vmatprep.subr.mxu0 0.0
    %2305 = vmatpush1.msra.mxu0 0.0
    %2306 = vmatprep.subr.mxu0 0.0
    %2307 = vmatpush1.msra.mxu0 0.0
    %2308 = vmatprep.mubr.f32.mxu0 0.0
    %2309 = vmatmul.mubr.f32.gmra.mrb[0].mxu0 %v2242
    %v2310 = vpop.f32.mrb[0].mxu0
    %v2311 = vadd.f32 %v2236, %v2310
    %v2312 = vpop.f32.mrb[0].mxu0
    %2313 = vdwg.mxu0
    %v2314 = vadd.f32 %v2311, %v746
    %v2315 = vtanh.pop %v2314
    %v2316 = vmul.f32 %v2315, 0.5
    %v2317 = vadd.f32 %v2316, 0.5
    %v2318 = vmul.f32 %v2317, %v2067
    %2320 = vrot.lane.b32.xlu0 %v2315, 64
    %v2321 = vpop.permute.xlu0 %2320
    %v2323 = vmul.f32 %v2317, %v2321
    %2325 = vrot.lane.b32.xlu0 %v2323, 32
    %v2326 = vpop.permute.xlu0 %2325
    %v2328 = vadd.f32 %v2318, %v2326
    %v2329 = vtanh.pop %v2328
    %2331 = vrot.lane.b32.xlu0 %v2329, 64
    %v2332 = vpop.permute.xlu0 %2331
    %v2334 = vmul.f32 %v2317, %v2332
    %2335 = vmatprep.subr.mxu0 0.0
    %2336 = vmatpush1.msra.mxu0 %v488
    %2337 = vmatprep.subr.mxu0 0.0
    %2338 = vmatpush1.msra.mxu0 %v489
    %2339 = vmatprep.subr.mxu0 0.0
    %2340 = vmatpush1.msra.mxu0 %v490
    %2341 = vmatprep.subr.mxu0 0.0
    %2342 = vmatpush1.msra.mxu0 %v491
    %2343 = vmatprep.subr.mxu0 0.0
    %2344 = vmatpush1.msra.mxu0 0.0
    %2345 = vmatprep.subr.mxu0 0.0
    %2346 = vmatpush1.msra.mxu0 0.0
    %2347 = vmatprep.subr.mxu0 0.0
    %2348 = vmatpush1.msra.mxu0 0.0
    %2349 = vmatprep.subr.mxu0 0.0
    %2350 = vmatpush1.msra.mxu0 0.0
    %2351 = vmatprep.subr.mxu0 0.0
    %2352 = vmatpush1.msra.mxu0 0.0
    %2353 = vmatprep.subr.mxu0 0.0
    %2354 = vmatpush1.msra.mxu0 0.0
    %2355 = vmatprep.subr.mxu0 0.0
    %2356 = vmatpush1.msra.mxu0 0.0
    %2357 = vmatprep.subr.mxu0 0.0
    %2358 = vmatpush1.msra.mxu0 0.0
    %2359 = vmatprep.subr.mxu0 0.0
    %2360 = vmatpush1.msra.mxu0 0.0
    %2361 = vmatprep.subr.mxu0 0.0
    %2362 = vmatpush1.msra.mxu0 0.0
    %2363 = vmatprep.subr.mxu0 0.0
    %2364 = vmatpush1.msra.mxu0 0.0
    %2365 = vmatprep.subr.mxu0 0.0
    %2366 = vmatpush1.msra.mxu0 0.0
    %2367 = vmatprep.subr.mxu0 0.0
    %2368 = vmatpush1.msra.mxu0 0.0
    %2369 = vmatprep.subr.mxu0 0.0
    %2370 = vmatpush1.msra.mxu0 0.0
    %2371 = vmatprep.subr.mxu0 0.0
    %2372 = vmatpush1.msra.mxu0 0.0
    %2373 = vmatprep.subr.mxu0 0.0
    %2374 = vmatpush1.msra.mxu0 0.0
    %2375 = vmatprep.subr.mxu0 0.0
    %2376 = vmatpush1.msra.mxu0 0.0
    %2377 = vmatprep.subr.mxu0 0.0
    %2378 = vmatpush1.msra.mxu0 0.0
    %2379 = vmatprep.subr.mxu0 0.0
    %2380 = vmatpush1.msra.mxu0 0.0
    %2381 = vmatprep.subr.mxu0 0.0
    %2382 = vmatpush1.msra.mxu0 0.0
    %2383 = vmatprep.subr.mxu0 0.0
    %2384 = vmatpush1.msra.mxu0 0.0
    %2385 = vmatprep.subr.mxu0 0.0
    %2386 = vmatpush1.msra.mxu0 0.0
    %2387 = vmatprep.subr.mxu0 0.0
    %2388 = vmatpush1.msra.mxu0 0.0
    %2389 = vmatprep.subr.mxu0 0.0
    %2390 = vmatpush1.msra.mxu0 0.0
    %2391 = vmatprep.subr.mxu0 0.0
    %2392 = vmatpush1.msra.mxu0 0.0
    %2393 = vmatprep.subr.mxu0 0.0
    %2394 = vmatpush1.msra.mxu0 0.0
    %2395 = vmatprep.subr.mxu0 0.0
    %2396 = vmatpush1.msra.mxu0 0.0
    %2397 = vmatprep.subr.mxu0 0.0
    %2398 = vmatpush1.msra.mxu0 0.0
    %2399 = vmatprep.mubr.f32.mxu0 0.0
    %2400 = vmatmul.mubr.f32.gmra.mrb[0].mxu0 %v2167
    %v2401 = vpop.f32.mrb[0].mxu0
    %v2402 = vadd.f32 %v485, %v2401
    %v2403 = vpop.f32.mrb[0].mxu0
    %2404 = vdwg.mxu0
    %v2405 = vtanh.pop %v2402
    %v2406 = vmul.f32 %v2405, 0.5
    %v2407 = vadd.f32 %v2406, 0.5
    %v2408 = vmul.f32 %v2407, %v2157
    %2410 = vrot.lane.b32.xlu0 %v2405, 64
    %v2411 = vpop.permute.xlu0 %2410
    %v2413 = vmul.f32 %v2407, %v2411
    %2415 = vrot.lane.b32.xlu0 %v2413, 32
    %v2416 = vpop.permute.xlu0 %2415
    %v2418 = vadd.f32 %v2408, %v2416
    %v2419 = vtanh.pop %v2418
    %2421 = vrot.lane.b32.xlu0 %v2419, 64
    %v2422 = vpop.permute.xlu0 %2421
    %v2424 = vmul.f32 %v2407, %v2422
    %2426 = vrot.lane.b32.xlu0 %v2424, 32
    %v2427 = vpop.permute.xlu0 %2426
    %v2428 = vsel %vm74, %v2427, 0
    %2430 = vmatprep.subr.mxu0 0.0
    %2431 = vmatpush1.msra.mxu0 %v498
    %2432 = vmatprep.subr.mxu0 0.0
    %2433 = vmatpush1.msra.mxu0 %v499
    %2434 = vmatprep.subr.mxu0 0.0
    %2435 = vmatpush1.msra.mxu0 %v500
    %2436 = vmatprep.subr.mxu0 0.0
    %2437 = vmatpush1.msra.mxu0 %v501
    %2438 = vmatprep.subr.mxu0 0.0
    %2439 = vmatpush1.msra.mxu0 0.0
    %2440 = vmatprep.subr.mxu0 0.0
    %2441 = vmatpush1.msra.mxu0 0.0
    %2442 = vmatprep.subr.mxu0 0.0
    %2443 = vmatpush1.msra.mxu0 0.0
    %2444 = vmatprep.subr.mxu0 0.0
    %2445 = vmatpush1.msra.mxu0 0.0
    %2446 = vmatprep.subr.mxu0 0.0
    %2447 = vmatpush1.msra.mxu0 0.0
    %2448 = vmatprep.subr.mxu0 0.0
    %2449 = vmatpush1.msra.mxu0 0.0
    %2450 = vmatprep.subr.mxu0 0.0
    %2451 = vmatpush1.msra.mxu0 0.0
    %2452 = vmatprep.subr.mxu0 0.0
    %2453 = vmatpush1.msra.mxu0 0.0
    %2454 = vmatprep.subr.mxu0 0.0
    %2455 = vmatpush1.msra.mxu0 0.0
    %2456 = vmatprep.subr.mxu0 0.0
    %2457 = vmatpush1.msra.mxu0 0.0
    %2458 = vmatprep.subr.mxu0 0.0
    %2459 = vmatpush1.msra.mxu0 0.0
    %2460 = vmatprep.subr.mxu0 0.0
    %2461 = vmatpush1.msra.mxu0 0.0
    %2462 = vmatprep.subr.mxu0 0.0
    %2463 = vmatpush1.msra.mxu0 0.0
    %2464 = vmatprep.subr.mxu0 0.0
    %2465 = vmatpush1.msra.mxu0 0.0
    %2466 = vmatprep.subr.mxu0 0.0
    %2467 = vmatpush1.msra.mxu0 0.0
    %2468 = vmatprep.subr.mxu0 0.0
    %2469 = vmatpush1.msra.mxu0 0.0
    %2470 = vmatprep.subr.mxu0 0.0
    %2471 = vmatpush1.msra.mxu0 0.0
    %2472 = vmatprep.subr.mxu0 0.0
    %2473 = vmatpush1.msra.mxu0 0.0
    %2474 = vmatprep.subr.mxu0 0.0
    %2475 = vmatpush1.msra.mxu0 0.0
    %2476 = vmatprep.subr.mxu0 0.0
    %2477 = vmatpush1.msra.mxu0 0.0
    %2478 = vmatprep.subr.mxu0 0.0
    %2479 = vmatpush1.msra.mxu0 0.0
    %2480 = vmatprep.subr.mxu0 0.0
    %2481 = vmatpush1.msra.mxu0 0.0
    %2482 = vmatprep.subr.mxu0 0.0
    %2483 = vmatpush1.msra.mxu0 0.0
    %2484 = vmatprep.subr.mxu0 0.0
    %2485 = vmatpush1.msra.mxu0 0.0
    %2486 = vmatprep.subr.mxu0 0.0
    %2487 = vmatpush1.msra.mxu0 0.0
    %2488 = vmatprep.subr.mxu0 0.0
    %2489 = vmatpush1.msra.mxu0 0.0
    %2490 = vmatprep.subr.mxu0 0.0
    %2491 = vmatpush1.msra.mxu0 0.0
    %2492 = vmatprep.subr.mxu0 0.0
    %2493 = vmatpush1.msra.mxu0 0.0
    %2494 = vmatprep.mubr.f32.mxu0 0.0
    %2495 = vmatmul.mubr.f32.gmra.mrb[0].mxu0 %v2428
    %v2496 = vpop.f32.mrb[0].mxu0
    %v2497 = vadd.f32 0.0, %v2496
    %v2498 = vpop.f32.mrb[0].mxu0
    %2499 = vdwg.mxu0
    %2501 = vrot.lane.b32.xlu0 %v2334, 32
    %v2502 = vpop.permute.xlu0 %2501
    %v2503 = vsel %vm74, %v2502, 0
    %2505 = vmatprep.subr.mxu0 0.0
    %2506 = vmatpush1.msra.mxu0 %v493
    %2507 = vmatprep.subr.mxu0 0.0
    %2508 = vmatpush1.msra.mxu0 %v494
    %2509 = vmatprep.subr.mxu0 0.0
    %2510 = vmatpush1.msra.mxu0 %v495
    %2511 = vmatprep.subr.mxu0 0.0
    %2512 = vmatpush1.msra.mxu0 %v496
    %2513 = vmatprep.subr.mxu0 0.0
    %2514 = vmatpush1.msra.mxu0 0.0
    %2515 = vmatprep.subr.mxu0 0.0
    %2516 = vmatpush1.msra.mxu0 0.0
    %2517 = vmatprep.subr.mxu0 0.0
    %2518 = vmatpush1.msra.mxu0 0.0
    %2519 = vmatprep.subr.mxu0 0.0
    %2520 = vmatpush1.msra.mxu0 0.0
    %2521 = vmatprep.subr.mxu0 0.0
    %2522 = vmatpush1.msra.mxu0 0.0
    %2523 = vmatprep.subr.mxu0 0.0
    %2524 = vmatpush1.msra.mxu0 0.0
    %2525 = vmatprep.subr.mxu0 0.0
    %2526 = vmatpush1.msra.mxu0 0.0
    %2527 = vmatprep.subr.mxu0 0.0
    %2528 = vmatpush1.msra.mxu0 0.0
    %2529 = vmatprep.subr.mxu0 0.0
    %2530 = vmatpush1.msra.mxu0 0.0
    %2531 = vmatprep.subr.mxu0 0.0
    %2532 = vmatpush1.msra.mxu0 0.0
    %2533 = vmatprep.subr.mxu0 0.0
    %2534 = vmatpush1.msra.mxu0 0.0
    %2535 = vmatprep.subr.mxu0 0.0
    %2536 = vmatpush1.msra.mxu0 0.0
    %2537 = vmatprep.subr.mxu0 0.0
    %2538 = vmatpush1.msra.mxu0 0.0
    %2539 = vmatprep.subr.mxu0 0.0
    %2540 = vmatpush1.msra.mxu0 0.0
    %2541 = vmatprep.subr.mxu0 0.0
    %2542 = vmatpush1.msra.mxu0 0.0
    %2543 = vmatprep.subr.mxu0 0.0
    %2544 = vmatpush1.msra.mxu0 0.0
    %2545 = vmatprep.subr.mxu0 0.0
    %2546 = vmatpush1.msra.mxu0 0.0
    %2547 = vmatprep.subr.mxu0 0.0
    %2548 = vmatpush1.msra.mxu0 0.0
    %2549 = vmatprep.subr.mxu0 0.0
    %2550 = vmatpush1.msra.mxu0 0.0
    %2551 = vmatprep.subr.mxu0 0.0
    %2552 = vmatpush1.msra.mxu0 0.0
    %2553 = vmatprep.subr.mxu0 0.0
    %2554 = vmatpush1.msra.mxu0 0.0
    %2555 = vmatprep.subr.mxu0 0.0
    %2556 = vmatpush1.msra.mxu0 0.0
    %2557 = vmatprep.subr.mxu0 0.0
    %2558 = vmatpush1.msra.mxu0 0.0
    %2559 = vmatprep.subr.mxu0 0.0
    %2560 = vmatpush1.msra.mxu0 0.0
    %2561 = vmatprep.subr.mxu0 0.0
    %2562 = vmatpush1.msra.mxu0 0.0
    %2563 = vmatprep.subr.mxu0 0.0
    %2564 = vmatpush1.msra.mxu0 0.0
    %2565 = vmatprep.subr.mxu0 0.0
    %2566 = vmatpush1.msra.mxu0 0.0
    %2567 = vmatprep.subr.mxu0 0.0
    %2568 = vmatpush1.msra.mxu0 0.0
    %2569 = vmatprep.mubr.f32.mxu0 0.0
    %2570 = vmatmul.mubr.f32.gmra.mrb[0].mxu0 %v2503
    %v2571 = vpop.f32.mrb[0].mxu0
    %v2572 = vadd.f32 %v2497, %v2571
    %v2573 = vpop.f32.mrb[0].mxu0
    %2574 = vdwg.mxu0
    %v2575 = vadd.f32 %v2572, %v746
    %v2576 = vtanh.pop %v2575
    %v2577 = vmul.f32 %v2576, 0.5
    %v2578 = vadd.f32 %v2577, 0.5
    %v2579 = vmul.f32 %v2578, %v2328
    %2581 = vrot.lane.b32.xlu0 %v2576, 64
    %v2582 = vpop.permute.xlu0 %2581
    %v2584 = vmul.f32 %v2578, %v2582
    %2586 = vrot.lane.b32.xlu0 %v2584, 32
    %v2587 = vpop.permute.xlu0 %2586
    %v2589 = vadd.f32 %v2579, %v2587
    %v2590 = vtanh.pop %v2589
    %2592 = vrot.lane.b32.xlu0 %v2590, 64
    %v2593 = vpop.permute.xlu0 %2592
    %v2595 = vmul.f32 %v2578, %v2593
    %2597 = vrot.lane.b32.xlu0 %v1029, 64
    %v2598 = vpop.permute.xlu0 %2597
    %2600 = vrot.lane.b32.xlu0 %v1290, 96
    %v2601 = vpop.permute.xlu0 %2600
    %2604 = vrot.lane.b32.xlu0 %v2073, 64
    %v2605 = vpop.permute.xlu0 %2604
    %2607 = vrot.lane.b32.xlu0 %v2334, 96
    %v2608 = vpop.permute.xlu0 %2607
    %v2610 = vsel %vm74, %v936, %v2598
    %vm2611 = vcmask 523264
    %v2612 = vsel %vm2611, %v2610, %v2601
    %vm2613 = vcmask 785408
    %v2614 = vsel %vm2613, %v2612, %v1551
    %v2615 = vsel %vm74, %v1980, %v2605
    %v2616 = vsel %vm2611, %v2615, %v2608
    %v2617 = vsel %vm2613, %v2616, %v2595
    %v2618 = vld [vmem:[#allocation5] sm:$0xff]
    %v2619 = vld [vmem:[#allocation5 + $0x8] sm:$0xff]
    %v2620 = vld [vmem:[#allocation5 + $0x10] sm:$0xff]
    %v2621 = vld [vmem:[#allocation5 + $0x18] sm:$0xff]
    %v2622 = vld [vmem:[#allocation5 + $0x20] sm:$0xff]
    %v2623 = vld [vmem:[#allocation5 + $0x28] sm:$0xff]
    %v2624 = vld [vmem:[#allocation5 + $0x30] sm:$0xff]
    %v2625 = vld [vmem:[#allocation5 + $0x38] sm:$0xff]
    %v2626 = vld [vmem:[#allocation5 + $0x40] sm:$0xff]
    %v2627 = vld [vmem:[#allocation5 + $0x48] sm:$0xff]
    %v2628 = vld [vmem:[#allocation5 + $0x50] sm:$0xff]
    %v2629 = vld [vmem:[#allocation5 + $0x58] sm:$0xff]
    %v2630 = vld [vmem:[#allocation5 + $0x60] sm:$0xff]
    %v2631 = vld [vmem:[#allocation5 + $0x68] sm:$0xff]
    %v2632 = vld [vmem:[#allocation5 + $0x70] sm:$0xff]
    %v2633 = vld [vmem:[#allocation5 + $0x78] sm:$0xff]
    %v2634 = vld [vmem:[#allocation5 + $0x80] sm:$0xff]
    %v2635 = vld [vmem:[#allocation5 + $0x88] sm:$0xff]
    %v2636 = vld [vmem:[#allocation5 + $0x90] sm:$0xff]
    %v2637 = vld [vmem:[#allocation5 + $0x98] sm:$0xff]
    %v2638 = vld [vmem:[#allocation5 + $0xa0] sm:$0xff]
    %v2639 = vld [vmem:[#allocation5 + $0xa8] sm:$0xff]
    %v2640 = vld [vmem:[#allocation5 + $0xb0] sm:$0xff]
    %v2641 = vld [vmem:[#allocation5 + $0xb8] sm:$0xff]
    %v2642 = vld [vmem:[#allocation5 + $0xc0] sm:$0xff]
    %v2643 = vld [vmem:[#allocation5 + $0xc8] sm:$0xff]
    %v2644 = vld [vmem:[#allocation5 + $0xd0] sm:$0xff]
    %v2645 = vld [vmem:[#allocation5 + $0xd8] sm:$0xff]
    %v2646 = vld [vmem:[#allocation5 + $0xe0] sm:$0xff]
    %v2647 = vld [vmem:[#allocation5 + $0xe8] sm:$0xff]
    %v2648 = vld [vmem:[#allocation5 + $0xf0] sm:$0xff]
    %v2649 = vld [vmem:[#allocation5 + $0xf8] sm:$0xff]
    %v2650 = vld [vmem:[%s9] sm:$0x1]
    %v2652 = vlaneseq
    %v2653 = vshrl.u32 %v2652, 7
    %v2654 = vsub.s32 0, %v2653
    %v2655 = vrot.slane %v2650, %v2654
    %2657 = vmatprep.subr.mxu0 0.0
    %2658 = vmatpush1.msra.mxu0 %v2618
    %2659 = vmatprep.subr.mxu0 0.0
    %2660 = vmatpush1.msra.mxu0 %v2619
    %2661 = vmatprep.subr.mxu0 0.0
    %2662 = vmatpush1.msra.mxu0 %v2620
    %2663 = vmatprep.subr.mxu0 0.0
    %2664 = vmatpush1.msra.mxu0 %v2621
    %2665 = vmatprep.subr.mxu0 0.0
    %2666 = vmatpush1.msra.mxu0 %v2622
    %2667 = vmatprep.subr.mxu0 0.0
    %2668 = vmatpush1.msra.mxu0 %v2623
    %2669 = vmatprep.subr.mxu0 0.0
    %2670 = vmatpush1.msra.mxu0 %v2624
    %2671 = vmatprep.subr.mxu0 0.0
    %2672 = vmatpush1.msra.mxu0 %v2625
    %2673 = vmatprep.subr.mxu0 0.0
    %2674 = vmatpush1.msra.mxu0 %v2626
    %2675 = vmatprep.subr.mxu0 0.0
    %2676 = vmatpush1.msra.mxu0 %v2627
    %2677 = vmatprep.subr.mxu0 0.0
    %2678 = vmatpush1.msra.mxu0 %v2628
    %2679 = vmatprep.subr.mxu0 0.0
    %2680 = vmatpush1.msra.mxu0 %v2629
    %2681 = vmatprep.subr.mxu0 0.0
    %2682 = vmatpush1.msra.mxu0 %v2630
    %2683 = vmatprep.subr.mxu0 0.0
    %2684 = vmatpush1.msra.mxu0 %v2631
    %2685 = vmatprep.subr.mxu0 0.0
    %2686 = vmatpush1.msra.mxu0 %v2632
    %2687 = vmatprep.subr.mxu0 0.0
    %2688 = vmatpush1.msra.mxu0 %v2633
    %2689 = vmatprep.subr.mxu0 0.0
    %2690 = vmatpush1.msra.mxu0 %v2634
    %2691 = vmatprep.subr.mxu0 0.0
    %2692 = vmatpush1.msra.mxu0 %v2635
    %2693 = vmatprep.subr.mxu0 0.0
    %2694 = vmatpush1.msra.mxu0 %v2636
    %2695 = vmatprep.subr.mxu0 0.0
    %2696 = vmatpush1.msra.mxu0 %v2637
    %2697 = vmatprep.subr.mxu0 0.0
    %2698 = vmatpush1.msra.mxu0 %v2638
    %2699 = vmatprep.subr.mxu0 0.0
    %2700 = vmatpush1.msra.mxu0 %v2639
    %2701 = vmatprep.subr.mxu0 0.0
    %2702 = vmatpush1.msra.mxu0 %v2640
    %2703 = vmatprep.subr.mxu0 0.0
    %2704 = vmatpush1.msra.mxu0 %v2641
    %2705 = vmatprep.subr.mxu0 0.0
    %2706 = vmatpush1.msra.mxu0 %v2642
    %2707 = vmatprep.subr.mxu0 0.0
    %2708 = vmatpush1.msra.mxu0 %v2643
    %2709 = vmatprep.subr.mxu0 0.0
    %2710 = vmatpush1.msra.mxu0 %v2644
    %2711 = vmatprep.subr.mxu0 0.0
    %2712 = vmatpush1.msra.mxu0 %v2645
    %2713 = vmatprep.subr.mxu0 0.0
    %2714 = vmatpush1.msra.mxu0 %v2646
    %2715 = vmatprep.subr.mxu0 0.0
    %2716 = vmatpush1.msra.mxu0 %v2647
    %2717 = vmatprep.subr.mxu0 0.0
    %2718 = vmatpush1.msra.mxu0 %v2648
    %2719 = vmatprep.subr.mxu0 0.0
    %2720 = vmatpush1.msra.mxu0 %v2649
    %2721 = vmatprep.mubr.f32.mxu0 %v2617
    %2722 = vmatmul.mubr.f32.gmra.mrb[0].mxu0 %v2614
    %v2723 = vpop.f32.mrb[0].mxu0
    %v2724 = vadd.f32 %v2655, %v2723
    %v2725 = vpop.f32.mrb[0].mxu0
    %2726 = vdwg.mxu0
    %2727 = vst [vmem:[#allocation7] sm:$0xff] %v2724
    // Predicated region
    $region50: #{tpu_custom_call.1} parent=1 // pred_check
      _
    $region51: #{tpu_custom_call.1} parent=1 // pred_check_branch
      %2729 = sbr.rel (0) target = $region53
    $region52: #{tpu_custom_call.1} parent=1 // pred_region
      %s2731 = ssub.s32 128, 128
      %2732 = vsyncadd [#allocation4], %s2731
      %s2734 = sshll.u32 [#allocation7], 4
      %s2735 = int_to_ptr.vmem [resolvable:$true] %s2734
      %2737 = dma.vmem_to_hbm [thread:$0]  %s2735, 128, %s10, [#allocation4]
    $region53: #{tpu_custom_call.1} parent=1 // pred_fallthru
      _
    // Predicated region
    $region54: #{tpu_custom_call.1} parent=1 // pred_check
      _
    $region55: #{tpu_custom_call.1} parent=1 // pred_check_branch
      %2739 = sbr.rel (0) target = $region57
    $region56: #{tpu_custom_call.1} parent=1 // pred_region
      %2740 = dma.done [#allocation4], 128
    $region57: #{tpu_custom_call.1} parent=1 // pred_fallthru
      _
    %2741 = vsyncpa [#allocation3], 1
    %2742 = vsyncpa [#allocation6], 1
    %2743 = vsyncpa [#allocation4], 1

</llo_original>
